<compile_context>
chip_gen: v7x
topology: tpu7x:2x2x1
jax: 0.10.0
libtpu: 0.0.40
codegen_flags: <defaults>
</compile_context>

<pallas_src>
import functools

import jax
import jax.numpy as jnp
from jax.experimental import pallas as pl
from jax.experimental.pallas import tpu as pltpu

BN_EPS = 1e-5
LRELU_SLOPE = 0.2
LANE = 128


def _round_up(x, m):
    return ((x + m - 1) // m) * m


def _vmem_limit_bytes():
    cap = 128 * 1024 * 1024
    try:
        cap = int(pltpu.get_tpu_info().vmem_capacity_bytes)
    except Exception:
        pass  # fall back to a conservative assumption
    # Half of physical VMEM, clamped: 32 MiB on v7x (64 MiB/TC), 64 MiB on v5e/v6e.
    return max(32 * 1024 * 1024, min(cap // 2, 96 * 1024 * 1024))


_VMEM_LIMIT = _vmem_limit_bytes()
_TILE_BUDGET = min(_VMEM_LIMIT // 3, 16 * 1024 * 1024)


def _pick_tile_rows(H, W, cin, coutp):
    """Largest divisor of H whose double-buffered working set fits the budget."""
    wp2 = W + 2

    def work_bytes(th):
        l_in = _round_up((th + 2) * wp2 + 2, 8)
        in_b = l_in * cin * 2                  # bf16 input tile
        out_b = th * wp2 * coutp * 4           # f32 conv output tile
        stat_b = 2 * coutp * 4
        w_b = 9 * cin * coutp * 2              # resident bf16 weights
        acc_b = th * wp2 * coutp * 4           # f32 accumulator value
        return 2 * (in_b + out_b + stat_b) + w_b + acc_b

    divisors = [d for d in range(1, H + 1) if H % d == 0]
    fitting = [d for d in divisors if work_bytes(d) <= _TILE_BUDGET]
    if not fitting:
        return 1
    preferred = [d for d in fitting if d * wp2 <= 4096]
    return max(preferred) if preferred else min(fitting)


# --------------------------------------------------------------------------- #
# Pass 1: 3x3 conv (nine shifted bf16 dots, f32 acc) + per-tile BN partials.  #
# --------------------------------------------------------------------------- #
def _conv3x3_stats_kernel(x_ref, w_ref, mask_ref, o_ref, stat_ref, *, row_stride):
    """x_ref:    (1, L, Cin)        bf16  flattened padded tile (row stride = W+2)
       w_ref:    (3, 3, Cin, Coutp) bf16  VMEM-resident across the grid
       mask_ref: (M, 1)             f32   1.0 on real output columns, 0.0 on junk
       o_ref:    (1, M, Coutp)      f32   pre-BN conv output (padded-width layout)
       stat_ref: (1, 2, Coutp)      f32   per-tile [sum(y), sum(y*y)] (masked)
    """
    m_out = o_ref.shape[1]
    coutp = o_ref.shape[-1]

    acc = None
    for dy in range(3):
        for dx in range(3):
            off = dy * row_stride + dx
            patch = x_ref[0, off:off + m_out, :]            # (M, Cin) bf16
            part = jnp.dot(patch, w_ref[dy, dx],
                           preferred_element_type=jnp.float32)
            acc = part if acc is None else acc + part       # (M, Coutp) f32

    o_ref[...] = acc.reshape(1, m_out, coutp)

    mask = mask_ref[...]                                    # (M, 1) f32
    s = jnp.sum(acc * mask, axis=0, keepdims=True)          # (1, Coutp)
    ss = jnp.sum(acc * acc * mask, axis=0, keepdims=True)   # (1, Coutp)
    stat_ref[...] = jnp.concatenate([s, ss], axis=0).reshape(1, 2, coutp)


def _conv3x3_with_stats(x_nhwc_bf16, w_bf16, tile_rows):
    N, H, W, Cin = x_nhwc_bf16.shape
    Coutp = w_bf16.shape[-1]
    th = tile_rows
    R = H // th
    NR = N * R
    wp2 = W + 2
    m_out = th * wp2

    xp = jnp.pad(x_nhwc_bf16, ((0, 0), (1, 1), (1, 1), (0, 0)))
    # Overlapping row tiles (1-row halo top/bottom) -> duplicates only 2/th rows.
    tiles = jnp.stack([xp[:, r * th:r * th + th + 2] for r in range(R)], axis=1)
    tiles = tiles.reshape(NR, (th + 2) * wp2, Cin)
    # Two extra zero rows so the (dy=2, dx=2) shifted slice stays in bounds.
    L = _round_up((th + 2) * wp2 + 2, 8)
    tiles = jnp.pad(tiles, ((0, 0), (0, L - (th + 2) * wp2), (0, 0)))

    # 1.0 on real output columns, 0.0 on the 2 junk padded-width columns per row.
    col = jnp.arange(m_out, dtype=jnp.int32) % wp2
    mask = (col < W).astype(jnp.float32).reshape(m_out, 1)

    flops = 2 * NR * m_out * 9 * Cin * Coutp
    bytes_accessed = (tiles.size * 2 + w_bf16.size * 2 + mask.size * 4
                      + NR * m_out * Coutp * 4 + NR * 2 * Coutp * 4)

    kernel = functools.partial(_conv3x3_stats_kernel, row_stride=wp2)
    y, stats = pl.pallas_call(
        kernel,
        out_shape=(jax.ShapeDtypeStruct((NR, m_out, Coutp), jnp.float32),
                   jax.ShapeDtypeStruct((NR, 2, Coutp), jnp.float32)),
        grid=(NR,),
        in_specs=[
            pl.BlockSpec((1, L, Cin), lambda i: (i, 0, 0)),
            pl.BlockSpec((3, 3, Cin, Coutp), lambda i: (0, 0, 0, 0)),
            pl.BlockSpec((m_out, 1), lambda i: (0, 0)),
        ],
        out_specs=(
            pl.BlockSpec((1, m_out, Coutp), lambda i: (i, 0, 0)),
            pl.BlockSpec((1, 2, Coutp), lambda i: (i, 0, 0)),
        ),
        compiler_params=pltpu.CompilerParams(
            dimension_semantics=("parallel",),
            vmem_limit_bytes=_VMEM_LIMIT),
        cost_estimate=pl.CostEstimate(flops=flops, transcendentals=0,
                                      bytes_accessed=bytes_accessed),
    )(tiles, w_bf16, mask)
    return y, stats


# --------------------------------------------------------------------------- #
# Pass 2: folded BatchNorm (scale, bias) + LeakyReLU(0.2), tiled elementwise.  #
# --------------------------------------------------------------------------- #
def _bn_lrelu_kernel(y_ref, scale_ref, bias_ref, o_ref):
    y = y_ref[...]                                   # (1, M, Coutp) f32
    s = scale_ref[...].reshape(1, 1, -1)
    b = bias_ref[...].reshape(1, 1, -1)
    v = y * s + b                                    # single FMA per element
    o_ref[...] = jnp.where(v >= 0.0, v, LRELU_SLOPE * v).astype(o_ref.dtype)


def _bn_lrelu(y, stats, gamma, beta, count, out_dtype):
    NR, TM, Coutp = y.shape
    tot = jnp.sum(stats, axis=0)                     # (2, Coutp), f32 accumulation
    mean = tot[0] / count
    var = jnp.maximum(tot[1] / count - mean * mean, 0.0)   # biased variance
    scale = gamma[0] * jax.lax.rsqrt(var + BN_EPS)
    bias = beta[0] - mean * scale
    scale = scale.reshape(1, Coutp)
    bias = bias.reshape(1, Coutp)

    out_itemsize = 2 if out_dtype == jnp.bfloat16 else 4
    bytes_accessed = y.size * 4 + y.size * out_itemsize + 2 * Coutp * 4

    return pl.pallas_call(
        _bn_lrelu_kernel,
        out_shape=jax.ShapeDtypeStruct((NR, TM, Coutp), out_dtype),
        grid=(NR,),
        in_specs=[
            pl.BlockSpec((1, TM, Coutp), lambda i: (i, 0, 0)),
            pl.BlockSpec((1, Coutp), lambda i: (0, 0)),
            pl.BlockSpec((1, Coutp), lambda i: (0, 0)),
        ],
        out_specs=pl.BlockSpec((1, TM, Coutp), lambda i: (i, 0, 0)),
        compiler_params=pltpu.CompilerParams(
            dimension_semantics=("parallel",),
            vmem_limit_bytes=_VMEM_LIMIT),
        cost_estimate=pl.CostEstimate(flops=3 * y.size, transcendentals=0,
                                      bytes_accessed=bytes_accessed),
    )(y, scale, bias)


def _conv_bn_lrelu_stage(x_nhwc_bf16, w, gamma, beta, out_dtype):
    N, H, W, Cin = x_nhwc_bf16.shape
    coutp = w.shape[-1]
    th = _pick_tile_rows(H, W, Cin, coutp)
    y, stats = _conv3x3_with_stats(x_nhwc_bf16, w, th)
    h = _bn_lrelu(y, stats, gamma, beta, count=N * H * W, out_dtype=out_dtype)
    R = H // th
    h = h.reshape(N, R, th, W + 2, coutp)[:, :, :, :W, :]   # drop junk columns
    return h.reshape(N, H, W, coutp)


def down_forward(params, x, *, out_ch):
    """Forward pass of `down` (default flags).  x is NCHW float32."""
    N, C, H, W = x.shape
    x = jnp.transpose(x, (0, 2, 3, 1))                      # NHWC; channels last
    # AvgPool2d(2, 2, ceil_mode=False): floor spatial dims, mean of 2x2 windows.
    H2, W2 = H // 2, W // 2
    x = x[:, :2 * H2, :2 * W2, :].reshape(N, H2, 2, W2, 2, C).mean(axis=(2, 4))
    x = x.astype(jnp.bfloat16)                              # bf16 into the MXU

    h = _conv_bn_lrelu_stage(x, params["w1"], params["g1"], params["b1"],
                             jnp.bfloat16)
    h = _conv_bn_lrelu_stage(h, params["w2"], params["g2"], params["b2"],
                             jnp.float32)
    h = h[:, :, :, :out_ch]                                 # drop lane padding
    return jnp.transpose(h, (0, 3, 1, 2))                   # back to NCHW


def init_params(key, in_ch, out_ch):
    """Synthetic parameters stored in kernel layout (HWIO, C_out padded to 128).

    PyTorch mapping: w_here[dy, dx, ci, co] == conv.weight[co, ci, dy, dx];
    g/b are the BatchNorm2d weight/bias.  Padded gamma/beta lanes are zero so
    padded channels stay exactly zero through both stages.
    """
    coutp = _round_up(out_ch, LANE)
    k1, k2, k3, k4, k5, k6 = jax.random.split(key, 6)
    w1 = 0.1 * jax.random.normal(k1, (3, 3, in_ch, out_ch), jnp.float32)
    w2 = 0.1 * jax.random.normal(k2, (3, 3, out_ch, out_ch), jnp.float32)
    g1 = 1.0 + 0.1 * jax.random.normal(k3, (out_ch,), jnp.float32)
    b1 = 0.1 * jax.random.normal(k4, (out_ch,), jnp.float32)
    g2 = 1.0 + 0.1 * jax.random.normal(k5, (out_ch,), jnp.float32)
    b2 = 0.1 * jax.random.normal(k6, (out_ch,), jnp.float32)

    w1p = jnp.zeros((3, 3, in_ch, coutp), jnp.float32).at[..., :out_ch].set(w1)
    w2p = jnp.zeros((3, 3, coutp, coutp), jnp.float32)
    w2p = w2p.at[:, :, :out_ch, :out_ch].set(w2)

    def pad_vec(v):
        return jnp.zeros((1, coutp), jnp.float32).at[0, :out_ch].set(v)

    return {
        "w1": w1p.astype(jnp.bfloat16),
        "w2": w2p.astype(jnp.bfloat16),
        "g1": pad_vec(g1), "b1": pad_vec(b1),
        "g2": pad_vec(g2), "b2": pad_vec(b2),
    }


def _reference_down(params, x, out_ch):
    """Pure-JAX (lax.conv) reference for a loose correctness sanity check."""
    N, C, H, W = x.shape
    xh = jnp.transpose(x, (0, 2, 3, 1))
    H2, W2 = H // 2, W // 2
    xh = xh[:, :2 * H2, :2 * W2, :].reshape(N, H2, 2, W2, 2, C).mean(axis=(2, 4))

    def conv(a, w):
        return jax.lax.conv_general_dilated(
            a, w, window_strides=(1, 1), padding=((1, 1), (1, 1)),
            dimension_numbers=("NHWC", "HWIO", "NHWC"))

    def bn_lrelu(y, g, b):
        mean = jnp.mean(y, axis=(0, 1, 2))
        var = jnp.mean(jnp.square(y - mean), axis=(0, 1, 2))
        v = (y - mean) * jax.lax.rsqrt(var + BN_EPS) * g + b
        return jnp.where(v >= 0.0, v, LRELU_SLOPE * v)

    h = bn_lrelu(conv(xh, params["w1"].astype(jnp.float32)),
                 params["g1"][0], params["b1"][0])
    h = bn_lrelu(conv(h, params["w2"].astype(jnp.float32)),
                 params["g2"][0], params["b2"][0])
    return jnp.transpose(h[..., :out_ch], (0, 3, 1, 2))


if __name__ == "__main__":
    key = jax.random.PRNGKey(0)
    kp, kx = jax.random.split(key)

    in_ch, out_ch = 4, 8
    params = init_params(kp, in_ch, out_ch)

    # PyTorch conv input convention: NCHW.
    x = jax.random.normal(kx, (2, in_ch, 16, 16), jnp.float32)

    fwd = jax.jit(functools.partial(down_forward, out_ch=out_ch))
    y = fwd(params, x)
    jax.block_until_ready(y)

    assert y.shape == (2, out_ch, 8, 8), y.shape
    assert y.dtype == jnp.float32

    # Loose tolerance: the Pallas path runs the matmuls in bf16 (f32 accumulation).
    y_ref = _reference_down(params, x, out_ch)
    err = float(jnp.max(jnp.abs(y - y_ref)))
    assert err < 1e-1, f"max abs error vs reference: {err}"

    print("KERNEL_OK")
</pallas_src>

<mosaic_0001>
module attributes {stable_mosaic.version = 11 : i64} {
  func.func @_bn_lrelu_kernel(%arg0: i32, %arg1: memref<1x80x128xf32, #tpu.memory_space<vmem>>, %arg2: memref<1x128xf32, #tpu.memory_space<vmem>>, %arg3: memref<1x128xf32, #tpu.memory_space<vmem>>, %arg4: memref<1x80x128xbf16, #tpu.memory_space<vmem>>) attributes {dimension_semantics = [#tpu.dimension_semantics<parallel>], iteration_bounds = array<i64: 2>, scalar_prefetch = 0 : i64, scratch_operands = 0 : i64, tpu.core_type = #tpu.core_type<tc>, window_params = [{transform_indices = @transform_0, window_bounds = array<i64: 1, 80, 128>}, {pipeline_mode = #tpu.pipeline_mode<synchronous>, transform_indices = @transform_1, window_bounds = array<i64: 1, 128>}, {pipeline_mode = #tpu.pipeline_mode<synchronous>, transform_indices = @transform_2, window_bounds = array<i64: 1, 128>}, {transform_indices = @transform_3, window_bounds = array<i64: 1, 80, 128>}]} {
    %c0 = arith.constant 0 : index
    %c0_0 = arith.constant 0 : index
    %c0_1 = arith.constant 0 : index
    %0 = vector.load %arg1[%c0, %c0_0, %c0_1] : memref<1x80x128xf32, #tpu.memory_space<vmem>>, vector<1x80x128xf32>
    %c0_2 = arith.constant 0 : index
    %c0_3 = arith.constant 0 : index
    %1 = vector.load %arg2[%c0_2, %c0_3] : memref<1x128xf32, #tpu.memory_space<vmem>>, vector<1x128xf32>
    %2 = vector.shape_cast %1 : vector<1x128xf32> to vector<1x1x128xf32>
    %c0_4 = arith.constant 0 : index
    %c0_5 = arith.constant 0 : index
    %3 = vector.load %arg3[%c0_4, %c0_5] : memref<1x128xf32, #tpu.memory_space<vmem>>, vector<1x128xf32>
    %4 = vector.shape_cast %3 : vector<1x128xf32> to vector<1x1x128xf32>
    %5 = vector.broadcast %2 : vector<1x1x128xf32> to vector<1x80x128xf32>
    %6 = arith.mulf %0, %5 : vector<1x80x128xf32>
    %7 = vector.broadcast %4 : vector<1x1x128xf32> to vector<1x80x128xf32>
    %8 = arith.addf %6, %7 : vector<1x80x128xf32>
    %cst = arith.constant 0.000000e+00 : f32
    %9 = vector.broadcast %cst : f32 to vector<1x80x128xf32>
    %10 = arith.cmpf oge, %8, %9 : vector<1x80x128xf32>
    %cst_6 = arith.constant 2.000000e-01 : f32
    %11 = vector.broadcast %cst_6 : f32 to vector<1x80x128xf32>
    %12 = arith.mulf %11, %8 : vector<1x80x128xf32>
    %13 = arith.select %10, %8, %12 : vector<1x80x128xi1>, vector<1x80x128xf32>
    %14 = arith.truncf %13 : vector<1x80x128xf32> to vector<1x80x128xbf16>
    %c0_7 = arith.constant 0 : index
    %c0_8 = arith.constant 0 : index
    %c0_9 = arith.constant 0 : index
    %15 = vector.load %arg4[%c0_7, %c0_8, %c0_9] : memref<1x80x128xbf16, #tpu.memory_space<vmem>>, vector<1x80x128xbf16>
    tpu.vector_store %arg4[%c0_7, %c0_8, %c0_9], %14 {strides = array<i32>} : memref<1x80x128xbf16, #tpu.memory_space<vmem>>, vector<1x80x128xbf16>,
    return
  }
  func.func @transform_0(%arg0: i32) -> (i32, i32, i32) {
    %c0_i32 = arith.constant 0 : i32
    %c0_i32_0 = arith.constant 0 : i32
    %c0_i32_1 = arith.constant 0 : i32
    return %arg0, %c0_i32, %c0_i32_0 : i32, i32, i32
  }
  func.func @transform_1(%arg0: i32) -> (i32, i32) {
    %c0_i32 = arith.constant 0 : i32
    %c0_i32_0 = arith.constant 0 : i32
    %c0_i32_1 = arith.constant 0 : i32
    return %c0_i32, %c0_i32_0 : i32, i32
  }
  func.func @transform_2(%arg0: i32) -> (i32, i32) {
    %c0_i32 = arith.constant 0 : i32
    %c0_i32_0 = arith.constant 0 : i32
    %c0_i32_1 = arith.constant 0 : i32
    return %c0_i32, %c0_i32_0 : i32, i32
  }
  func.func @transform_3(%arg0: i32) -> (i32, i32, i32) {
    %c0_i32 = arith.constant 0 : i32
    %c0_i32_0 = arith.constant 0 : i32
    %c0_i32_1 = arith.constant 0 : i32
    return %arg0, %c0_i32, %c0_i32_0 : i32, i32, i32
  }
}

module attributes {stable_mosaic.version = 11 : i64} {
  func.func @_conv3x3_stats_kernel(%arg0: i32, %arg1: memref<1x104x4xbf16, #tpu.memory_space<vmem>>, %arg2: memref<3x3x4x128xbf16, #tpu.memory_space<vmem>>, %arg3: memref<80x1xf32, #tpu.memory_space<vmem>>, %arg4: memref<1x80x128xf32, #tpu.memory_space<vmem>>, %arg5: memref<1x2x128xf32, #tpu.memory_space<vmem>>) attributes {dimension_semantics = [#tpu.dimension_semantics<parallel>], iteration_bounds = array<i64: 2>, scalar_prefetch = 0 : i64, scratch_operands = 0 : i64, tpu.core_type = #tpu.core_type<tc>, window_params = [{transform_indices = @transform_0, window_bounds = array<i64: 1, 104, 4>}, {pipeline_mode = #tpu.pipeline_mode<synchronous>, transform_indices = @transform_1, window_bounds = array<i64: 3, 3, 4, 128>}, {pipeline_mode = #tpu.pipeline_mode<synchronous>, transform_indices = @transform_2, window_bounds = array<i64: 80, 1>}, {transform_indices = @transform_3, window_bounds = array<i64: 1, 80, 128>}, {transform_indices = @transform_4, window_bounds = array<i64: 1, 2, 128>}]} {
    %c0 = arith.constant 0 : index
    %c0_0 = arith.constant 0 : index
    %c0_1 = arith.constant 0 : index
    %0 = vector.load %arg1[%c0, %c0_0, %c0_1] : memref<1x104x4xbf16, #tpu.memory_space<vmem>>, vector<1x80x4xbf16>
    %1 = vector.shape_cast %0 : vector<1x80x4xbf16> to vector<80x4xbf16>
    %c0_2 = arith.constant 0 : index
    %c0_3 = arith.constant 0 : index
    %c0_4 = arith.constant 0 : index
    %c0_5 = arith.constant 0 : index
    %2 = vector.load %arg2[%c0_2, %c0_3, %c0_4, %c0_5] : memref<3x3x4x128xbf16, #tpu.memory_space<vmem>>, vector<1x1x4x128xbf16>
    %3 = vector.shape_cast %2 : vector<1x1x4x128xbf16> to vector<4x128xbf16>
    %cst = arith.constant dense<0.000000e+00> : vector<80x128xf32>
    %4 = tpu.matmul %1, %3, %cst {dimension_numbers = #tpu.dot_dimension_numbers<[1], [0], [0], [1], [0, 0, 1, 1], [], []>} : vector<80x4xbf16>, vector<4x128xbf16>, vector<80x128xf32> -> vector<80x128xf32>
    %c0_6 = arith.constant 0 : index
    %c1 = arith.constant 1 : index
    %c0_7 = arith.constant 0 : index
    %5 = vector.load %arg1[%c0_6, %c1, %c0_7] : memref<1x104x4xbf16, #tpu.memory_space<vmem>>, vector<1x80x4xbf16>
    %6 = vector.shape_cast %5 : vector<1x80x4xbf16> to vector<80x4xbf16>
    %c0_8 = arith.constant 0 : index
    %c1_9 = arith.constant 1 : index
    %c0_10 = arith.constant 0 : index
    %c0_11 = arith.constant 0 : index
    %7 = vector.load %arg2[%c0_8, %c1_9, %c0_10, %c0_11] : memref<3x3x4x128xbf16, #tpu.memory_space<vmem>>, vector<1x1x4x128xbf16>
    %8 = vector.shape_cast %7 : vector<1x1x4x128xbf16> to vector<4x128xbf16>
    %cst_12 = arith.constant dense<0.000000e+00> : vector<80x128xf32>
    %9 = tpu.matmul %6, %8, %cst_12 {dimension_numbers = #tpu.dot_dimension_numbers<[1], [0], [0], [1], [0, 0, 1, 1], [], []>} : vector<80x4xbf16>, vector<4x128xbf16>, vector<80x128xf32> -> vector<80x128xf32>
    %10 = arith.addf %4, %9 : vector<80x128xf32>
    %c0_13 = arith.constant 0 : index
    %c2 = arith.constant 2 : index
    %c0_14 = arith.constant 0 : index
    %11 = vector.load %arg1[%c0_13, %c2, %c0_14] : memref<1x104x4xbf16, #tpu.memory_space<vmem>>, vector<1x80x4xbf16>
    %12 = vector.shape_cast %11 : vector<1x80x4xbf16> to vector<80x4xbf16>
    %c0_15 = arith.constant 0 : index
    %c2_16 = arith.constant 2 : index
    %c0_17 = arith.constant 0 : index
    %c0_18 = arith.constant 0 : index
    %13 = vector.load %arg2[%c0_15, %c2_16, %c0_17, %c0_18] : memref<3x3x4x128xbf16, #tpu.memory_space<vmem>>, vector<1x1x4x128xbf16>
    %14 = vector.shape_cast %13 : vector<1x1x4x128xbf16> to vector<4x128xbf16>
    %cst_19 = arith.constant dense<0.000000e+00> : vector<80x128xf32>
    %15 = tpu.matmul %12, %14, %cst_19 {dimension_numbers = #tpu.dot_dimension_numbers<[1], [0], [0], [1], [0, 0, 1, 1], [], []>} : vector<80x4xbf16>, vector<4x128xbf16>, vector<80x128xf32> -> vector<80x128xf32>
    %16 = arith.addf %10, %15 : vector<80x128xf32>
    %c0_20 = arith.constant 0 : index
    %c10 = arith.constant 10 : index
    %c0_21 = arith.constant 0 : index
    %17 = vector.load %arg1[%c0_20, %c10, %c0_21] : memref<1x104x4xbf16, #tpu.memory_space<vmem>>, vector<1x80x4xbf16>
    %18 = vector.shape_cast %17 : vector<1x80x4xbf16> to vector<80x4xbf16>
    %c1_22 = arith.constant 1 : index
    %c0_23 = arith.constant 0 : index
    %c0_24 = arith.constant 0 : index
    %c0_25 = arith.constant 0 : index
    %19 = vector.load %arg2[%c1_22, %c0_23, %c0_24, %c0_25] : memref<3x3x4x128xbf16, #tpu.memory_space<vmem>>, vector<1x1x4x128xbf16>
    %20 = vector.shape_cast %19 : vector<1x1x4x128xbf16> to vector<4x128xbf16>
    %cst_26 = arith.constant dense<0.000000e+00> : vector<80x128xf32>
    %21 = tpu.matmul %18, %20, %cst_26 {dimension_numbers = #tpu.dot_dimension_numbers<[1], [0], [0], [1], [0, 0, 1, 1], [], []>} : vector<80x4xbf16>, vector<4x128xbf16>, vector<80x128xf32> -> vector<80x128xf32>
    %22 = arith.addf %16, %21 : vector<80x128xf32>
    %c0_27 = arith.constant 0 : index
    %c11 = arith.constant 11 : index
    %c0_28 = arith.constant 0 : index
    %23 = vector.load %arg1[%c0_27, %c11, %c0_28] : memref<1x104x4xbf16, #tpu.memory_space<vmem>>, vector<1x80x4xbf16>
    %24 = vector.shape_cast %23 : vector<1x80x4xbf16> to vector<80x4xbf16>
    %c1_29 = arith.constant 1 : index
    %c1_30 = arith.constant 1 : index
    %c0_31 = arith.constant 0 : index
    %c0_32 = arith.constant 0 : index
    %25 = vector.load %arg2[%c1_29, %c1_30, %c0_31, %c0_32] : memref<3x3x4x128xbf16, #tpu.memory_space<vmem>>, vector<1x1x4x128xbf16>
    %26 = vector.shape_cast %25 : vector<1x1x4x128xbf16> to vector<4x128xbf16>
    %cst_33 = arith.constant dense<0.000000e+00> : vector<80x128xf32>
    %27 = tpu.matmul %24, %26, %cst_33 {dimension_numbers = #tpu.dot_dimension_numbers<[1], [0], [0], [1], [0, 0, 1, 1], [], []>} : vector<80x4xbf16>, vector<4x128xbf16>, vector<80x128xf32> -> vector<80x128xf32>
    %28 = arith.addf %22, %27 : vector<80x128xf32>
    %c0_34 = arith.constant 0 : index
    %c12 = arith.constant 12 : index
    %c0_35 = arith.constant 0 : index
    %29 = vector.load %arg1[%c0_34, %c12, %c0_35] : memref<1x104x4xbf16, #tpu.memory_space<vmem>>, vector<1x80x4xbf16>
    %30 = vector.shape_cast %29 : vector<1x80x4xbf16> to vector<80x4xbf16>
    %c1_36 = arith.constant 1 : index
    %c2_37 = arith.constant 2 : index
    %c0_38 = arith.constant 0 : index
    %c0_39 = arith.constant 0 : index
    %31 = vector.load %arg2[%c1_36, %c2_37, %c0_38, %c0_39] : memref<3x3x4x128xbf16, #tpu.memory_space<vmem>>, vector<1x1x4x128xbf16>
    %32 = vector.shape_cast %31 : vector<1x1x4x128xbf16> to vector<4x128xbf16>
    %cst_40 = arith.constant dense<0.000000e+00> : vector<80x128xf32>
    %33 = tpu.matmul %30, %32, %cst_40 {dimension_numbers = #tpu.dot_dimension_numbers<[1], [0], [0], [1], [0, 0, 1, 1], [], []>} : vector<80x4xbf16>, vector<4x128xbf16>, vector<80x128xf32> -> vector<80x128xf32>
    %34 = arith.addf %28, %33 : vector<80x128xf32>
    %c0_41 = arith.constant 0 : index
    %c20 = arith.constant 20 : index
    %c0_42 = arith.constant 0 : index
    %35 = vector.load %arg1[%c0_41, %c20, %c0_42] : memref<1x104x4xbf16, #tpu.memory_space<vmem>>, vector<1x80x4xbf16>
    %36 = vector.shape_cast %35 : vector<1x80x4xbf16> to vector<80x4xbf16>
    %c2_43 = arith.constant 2 : index
    %c0_44 = arith.constant 0 : index
    %c0_45 = arith.constant 0 : index
    %c0_46 = arith.constant 0 : index
    %37 = vector.load %arg2[%c2_43, %c0_44, %c0_45, %c0_46] : memref<3x3x4x128xbf16, #tpu.memory_space<vmem>>, vector<1x1x4x128xbf16>
    %38 = vector.shape_cast %37 : vector<1x1x4x128xbf16> to vector<4x128xbf16>
    %cst_47 = arith.constant dense<0.000000e+00> : vector<80x128xf32>
    %39 = tpu.matmul %36, %38, %cst_47 {dimension_numbers = #tpu.dot_dimension_numbers<[1], [0], [0], [1], [0, 0, 1, 1], [], []>} : vector<80x4xbf16>, vector<4x128xbf16>, vector<80x128xf32> -> vector<80x128xf32>
    %40 = arith.addf %34, %39 : vector<80x128xf32>
    %c0_48 = arith.constant 0 : index
    %c21 = arith.constant 21 : index
    %c0_49 = arith.constant 0 : index
    %41 = vector.load %arg1[%c0_48, %c21, %c0_49] : memref<1x104x4xbf16, #tpu.memory_space<vmem>>, vector<1x80x4xbf16>
    %42 = vector.shape_cast %41 : vector<1x80x4xbf16> to vector<80x4xbf16>
    %c2_50 = arith.constant 2 : index
    %c1_51 = arith.constant 1 : index
    %c0_52 = arith.constant 0 : index
    %c0_53 = arith.constant 0 : index
    %43 = vector.load %arg2[%c2_50, %c1_51, %c0_52, %c0_53] : memref<3x3x4x128xbf16, #tpu.memory_space<vmem>>, vector<1x1x4x128xbf16>
    %44 = vector.shape_cast %43 : vector<1x1x4x128xbf16> to vector<4x128xbf16>
    %cst_54 = arith.constant dense<0.000000e+00> : vector<80x128xf32>
    %45 = tpu.matmul %42, %44, %cst_54 {dimension_numbers = #tpu.dot_dimension_numbers<[1], [0], [0], [1], [0, 0, 1, 1], [], []>} : vector<80x4xbf16>, vector<4x128xbf16>, vector<80x128xf32> -> vector<80x128xf32>
    %46 = arith.addf %40, %45 : vector<80x128xf32>
    %c0_55 = arith.constant 0 : index
    %c22 = arith.constant 22 : index
    %c0_56 = arith.constant 0 : index
    %47 = vector.load %arg1[%c0_55, %c22, %c0_56] : memref<1x104x4xbf16, #tpu.memory_space<vmem>>, vector<1x80x4xbf16>
    %48 = vector.shape_cast %47 : vector<1x80x4xbf16> to vector<80x4xbf16>
    %c2_57 = arith.constant 2 : index
    %c2_58 = arith.constant 2 : index
    %c0_59 = arith.constant 0 : index
    %c0_60 = arith.constant 0 : index
    %49 = vector.load %arg2[%c2_57, %c2_58, %c0_59, %c0_60] : memref<3x3x4x128xbf16, #tpu.memory_space<vmem>>, vector<1x1x4x128xbf16>
    %50 = vector.shape_cast %49 : vector<1x1x4x128xbf16> to vector<4x128xbf16>
    %cst_61 = arith.constant dense<0.000000e+00> : vector<80x128xf32>
    %51 = tpu.matmul %48, %50, %cst_61 {dimension_numbers = #tpu.dot_dimension_numbers<[1], [0], [0], [1], [0, 0, 1, 1], [], []>} : vector<80x4xbf16>, vector<4x128xbf16>, vector<80x128xf32> -> vector<80x128xf32>
    %52 = arith.addf %46, %51 : vector<80x128xf32>
    %53 = vector.shape_cast %52 : vector<80x128xf32> to vector<1x80x128xf32>
    %c0_62 = arith.constant 0 : index
    %c0_63 = arith.constant 0 : index
    %c0_64 = arith.constant 0 : index
    %54 = vector.load %arg4[%c0_62, %c0_63, %c0_64] : memref<1x80x128xf32, #tpu.memory_space<vmem>>, vector<1x80x128xf32>
    tpu.vector_store %arg4[%c0_62, %c0_63, %c0_64], %53 {strides = array<i32>} : memref<1x80x128xf32, #tpu.memory_space<vmem>>, vector<1x80x128xf32>,
    %c0_65 = arith.constant 0 : index
    %c0_66 = arith.constant 0 : index
    %55 = vector.load %arg3[%c0_65, %c0_66] : memref<80x1xf32, #tpu.memory_space<vmem>>, vector<80x1xf32>
    %56 = vector.broadcast %55 : vector<80x1xf32> to vector<80x128xf32>
    %57 = arith.mulf %52, %56 : vector<80x128xf32>
    %cst_67 = arith.constant dense<0.000000e+00> : vector<128xf32>
    %58 = vector.multi_reduction <add>, %57, %cst_67 [0] : vector<80x128xf32> to vector<128xf32>
    %59 = vector.shape_cast %58 : vector<128xf32> to vector<1x128xf32>
    %60 = arith.mulf %52, %52 : vector<80x128xf32>
    %61 = vector.broadcast %55 : vector<80x1xf32> to vector<80x128xf32>
    %62 = arith.mulf %60, %61 : vector<80x128xf32>
    %cst_68 = arith.constant dense<0.000000e+00> : vector<128xf32>
    %63 = vector.multi_reduction <add>, %62, %cst_68 [0] : vector<80x128xf32> to vector<128xf32>
    %64 = vector.shape_cast %63 : vector<128xf32> to vector<1x128xf32>
    %65 = tpu.concatenate %59, %64 in 0 : vector<1x128xf32>, vector<1x128xf32> -> vector<2x128xf32>
    %66 = vector.shape_cast %65 : vector<2x128xf32> to vector<1x2x128xf32>
    %c0_69 = arith.constant 0 : index
    %c0_70 = arith.constant 0 : index
    %c0_71 = arith.constant 0 : index
    %67 = vector.load %arg5[%c0_69, %c0_70, %c0_71] : memref<1x2x128xf32, #tpu.memory_space<vmem>>, vector<1x2x128xf32>
    tpu.vector_store %arg5[%c0_69, %c0_70, %c0_71], %66 {strides = array<i32>} : memref<1x2x128xf32, #tpu.memory_space<vmem>>, vector<1x2x128xf32>,
    return
  }
  func.func @transform_0(%arg0: i32) -> (i32, i32, i32) {
    %c0_i32 = arith.constant 0 : i32
    %c0_i32_0 = arith.constant 0 : i32
    %c0_i32_1 = arith.constant 0 : i32
    return %arg0, %c0_i32, %c0_i32_0 : i32, i32, i32
  }
  func.func @transform_1(%arg0: i32) -> (i32, i32, i32, i32) {
    %c0_i32 = arith.constant 0 : i32
    %c0_i32_0 = arith.constant 0 : i32
    %c0_i32_1 = arith.constant 0 : i32
    %c0_i32_2 = arith.constant 0 : i32
    %c0_i32_3 = arith.constant 0 : i32
    return %c0_i32, %c0_i32_0, %c0_i32_1, %c0_i32_2 : i32, i32, i32, i32
  }
  func.func @transform_2(%arg0: i32) -> (i32, i32) {
    %c0_i32 = arith.constant 0 : i32
    %c0_i32_0 = arith.constant 0 : i32
    %c0_i32_1 = arith.constant 0 : i32
    return %c0_i32, %c0_i32_0 : i32, i32
  }
  func.func @transform_3(%arg0: i32) -> (i32, i32, i32) {
    %c0_i32 = arith.constant 0 : i32
    %c0_i32_0 = arith.constant 0 : i32
    %c0_i32_1 = arith.constant 0 : i32
    return %arg0, %c0_i32, %c0_i32_0 : i32, i32, i32
  }
  func.func @transform_4(%arg0: i32) -> (i32, i32, i32) {
    %c0_i32 = arith.constant 0 : i32
    %c0_i32_0 = arith.constant 0 : i32
    %c0_i32_1 = arith.constant 0 : i32
    return %arg0, %c0_i32, %c0_i32_0 : i32, i32, i32
  }
}

module attributes {stable_mosaic.version = 11 : i64} {
  func.func @_conv3x3_stats_kernel(%arg0: i32, %arg1: memref<1x104x128xbf16, #tpu.memory_space<vmem>>, %arg2: memref<3x3x128x128xbf16, #tpu.memory_space<vmem>>, %arg3: memref<80x1xf32, #tpu.memory_space<vmem>>, %arg4: memref<1x80x128xf32, #tpu.memory_space<vmem>>, %arg5: memref<1x2x128xf32, #tpu.memory_space<vmem>>) attributes {dimension_semantics = [#tpu.dimension_semantics<parallel>], iteration_bounds = array<i64: 2>, scalar_prefetch = 0 : i64, scratch_operands = 0 : i64, tpu.core_type = #tpu.core_type<tc>, window_params = [{transform_indices = @transform_0, window_bounds = array<i64: 1, 104, 128>}, {pipeline_mode = #tpu.pipeline_mode<synchronous>, transform_indices = @transform_1, window_bounds = array<i64: 3, 3, 128, 128>}, {pipeline_mode = #tpu.pipeline_mode<synchronous>, transform_indices = @transform_2, window_bounds = array<i64: 80, 1>}, {transform_indices = @transform_3, window_bounds = array<i64: 1, 80, 128>}, {transform_indices = @transform_4, window_bounds = array<i64: 1, 2, 128>}]} {
    %c0 = arith.constant 0 : index
    %c0_0 = arith.constant 0 : index
    %c0_1 = arith.constant 0 : index
    %0 = vector.load %arg1[%c0, %c0_0, %c0_1] : memref<1x104x128xbf16, #tpu.memory_space<vmem>>, vector<1x80x128xbf16>
    %1 = vector.shape_cast %0 : vector<1x80x128xbf16> to vector<80x128xbf16>
    %c0_2 = arith.constant 0 : index
    %c0_3 = arith.constant 0 : index
    %c0_4 = arith.constant 0 : index
    %c0_5 = arith.constant 0 : index
    %2 = vector.load %arg2[%c0_2, %c0_3, %c0_4, %c0_5] : memref<3x3x128x128xbf16, #tpu.memory_space<vmem>>, vector<1x1x128x128xbf16>
    %3 = vector.shape_cast %2 : vector<1x1x128x128xbf16> to vector<128x128xbf16>
    %cst = arith.constant dense<0.000000e+00> : vector<80x128xf32>
    %4 = tpu.matmul %1, %3, %cst {dimension_numbers = #tpu.dot_dimension_numbers<[1], [0], [0], [1], [0, 0, 1, 1], [], []>} : vector<80x128xbf16>, vector<128x128xbf16>, vector<80x128xf32> -> vector<80x128xf32>
    %c0_6 = arith.constant 0 : index
    %c1 = arith.constant 1 : index
    %c0_7 = arith.constant 0 : index
    %5 = vector.load %arg1[%c0_6, %c1, %c0_7] : memref<1x104x128xbf16, #tpu.memory_space<vmem>>, vector<1x80x128xbf16>
    %6 = vector.shape_cast %5 : vector<1x80x128xbf16> to vector<80x128xbf16>
    %c0_8 = arith.constant 0 : index
    %c1_9 = arith.constant 1 : index
    %c0_10 = arith.constant 0 : index
    %c0_11 = arith.constant 0 : index
    %7 = vector.load %arg2[%c0_8, %c1_9, %c0_10, %c0_11] : memref<3x3x128x128xbf16, #tpu.memory_space<vmem>>, vector<1x1x128x128xbf16>
    %8 = vector.shape_cast %7 : vector<1x1x128x128xbf16> to vector<128x128xbf16>
    %cst_12 = arith.constant dense<0.000000e+00> : vector<80x128xf32>
    %9 = tpu.matmul %6, %8, %cst_12 {dimension_numbers = #tpu.dot_dimension_numbers<[1], [0], [0], [1], [0, 0, 1, 1], [], []>} : vector<80x128xbf16>, vector<128x128xbf16>, vector<80x128xf32> -> vector<80x128xf32>
    %10 = arith.addf %4, %9 : vector<80x128xf32>
    %c0_13 = arith.constant 0 : index
    %c2 = arith.constant 2 : index
    %c0_14 = arith.constant 0 : index
    %11 = vector.load %arg1[%c0_13, %c2, %c0_14] : memref<1x104x128xbf16, #tpu.memory_space<vmem>>, vector<1x80x128xbf16>
    %12 = vector.shape_cast %11 : vector<1x80x128xbf16> to vector<80x128xbf16>
    %c0_15 = arith.constant 0 : index
    %c2_16 = arith.constant 2 : index
    %c0_17 = arith.constant 0 : index
    %c0_18 = arith.constant 0 : index
    %13 = vector.load %arg2[%c0_15, %c2_16, %c0_17, %c0_18] : memref<3x3x128x128xbf16, #tpu.memory_space<vmem>>, vector<1x1x128x128xbf16>
    %14 = vector.shape_cast %13 : vector<1x1x128x128xbf16> to vector<128x128xbf16>
    %cst_19 = arith.constant dense<0.000000e+00> : vector<80x128xf32>
    %15 = tpu.matmul %12, %14, %cst_19 {dimension_numbers = #tpu.dot_dimension_numbers<[1], [0], [0], [1], [0, 0, 1, 1], [], []>} : vector<80x128xbf16>, vector<128x128xbf16>, vector<80x128xf32> -> vector<80x128xf32>
    %16 = arith.addf %10, %15 : vector<80x128xf32>
    %c0_20 = arith.constant 0 : index
    %c10 = arith.constant 10 : index
    %c0_21 = arith.constant 0 : index
    %17 = vector.load %arg1[%c0_20, %c10, %c0_21] : memref<1x104x128xbf16, #tpu.memory_space<vmem>>, vector<1x80x128xbf16>
    %18 = vector.shape_cast %17 : vector<1x80x128xbf16> to vector<80x128xbf16>
    %c1_22 = arith.constant 1 : index
    %c0_23 = arith.constant 0 : index
    %c0_24 = arith.constant 0 : index
    %c0_25 = arith.constant 0 : index
    %19 = vector.load %arg2[%c1_22, %c0_23, %c0_24, %c0_25] : memref<3x3x128x128xbf16, #tpu.memory_space<vmem>>, vector<1x1x128x128xbf16>
    %20 = vector.shape_cast %19 : vector<1x1x128x128xbf16> to vector<128x128xbf16>
    %cst_26 = arith.constant dense<0.000000e+00> : vector<80x128xf32>
    %21 = tpu.matmul %18, %20, %cst_26 {dimension_numbers = #tpu.dot_dimension_numbers<[1], [0], [0], [1], [0, 0, 1, 1], [], []>} : vector<80x128xbf16>, vector<128x128xbf16>, vector<80x128xf32> -> vector<80x128xf32>
    %22 = arith.addf %16, %21 : vector<80x128xf32>
    %c0_27 = arith.constant 0 : index
    %c11 = arith.constant 11 : index
    %c0_28 = arith.constant 0 : index
    %23 = vector.load %arg1[%c0_27, %c11, %c0_28] : memref<1x104x128xbf16, #tpu.memory_space<vmem>>, vector<1x80x128xbf16>
    %24 = vector.shape_cast %23 : vector<1x80x128xbf16> to vector<80x128xbf16>
    %c1_29 = arith.constant 1 : index
    %c1_30 = arith.constant 1 : index
    %c0_31 = arith.constant 0 : index
    %c0_32 = arith.constant 0 : index
    %25 = vector.load %arg2[%c1_29, %c1_30, %c0_31, %c0_32] : memref<3x3x128x128xbf16, #tpu.memory_space<vmem>>, vector<1x1x128x128xbf16>
    %26 = vector.shape_cast %25 : vector<1x1x128x128xbf16> to vector<128x128xbf16>
    %cst_33 = arith.constant dense<0.000000e+00> : vector<80x128xf32>
    %27 = tpu.matmul %24, %26, %cst_33 {dimension_numbers = #tpu.dot_dimension_numbers<[1], [0], [0], [1], [0, 0, 1, 1], [], []>} : vector<80x128xbf16>, vector<128x128xbf16>, vector<80x128xf32> -> vector<80x128xf32>
    %28 = arith.addf %22, %27 : vector<80x128xf32>
    %c0_34 = arith.constant 0 : index
    %c12 = arith.constant 12 : index
    %c0_35 = arith.constant 0 : index
    %29 = vector.load %arg1[%c0_34, %c12, %c0_35] : memref<1x104x128xbf16, #tpu.memory_space<vmem>>, vector<1x80x128xbf16>
    %30 = vector.shape_cast %29 : vector<1x80x128xbf16> to vector<80x128xbf16>
    %c1_36 = arith.constant 1 : index
    %c2_37 = arith.constant 2 : index
    %c0_38 = arith.constant 0 : index
    %c0_39 = arith.constant 0 : index
    %31 = vector.load %arg2[%c1_36, %c2_37, %c0_38, %c0_39] : memref<3x3x128x128xbf16, #tpu.memory_space<vmem>>, vector<1x1x128x128xbf16>
    %32 = vector.shape_cast %31 : vector<1x1x128x128xbf16> to vector<128x128xbf16>
    %cst_40 = arith.constant dense<0.000000e+00> : vector<80x128xf32>
    %33 = tpu.matmul %30, %32, %cst_40 {dimension_numbers = #tpu.dot_dimension_numbers<[1], [0], [0], [1], [0, 0, 1, 1], [], []>} : vector<80x128xbf16>, vector<128x128xbf16>, vector<80x128xf32> -> vector<80x128xf32>
    %34 = arith.addf %28, %33 : vector<80x128xf32>
    %c0_41 = arith.constant 0 : index
    %c20 = arith.constant 20 : index
    %c0_42 = arith.constant 0 : index
    %35 = vector.load %arg1[%c0_41, %c20, %c0_42] : memref<1x104x128xbf16, #tpu.memory_space<vmem>>, vector<1x80x128xbf16>
    %36 = vector.shape_cast %35 : vector<1x80x128xbf16> to vector<80x128xbf16>
    %c2_43 = arith.constant 2 : index
    %c0_44 = arith.constant 0 : index
    %c0_45 = arith.constant 0 : index
    %c0_46 = arith.constant 0 : index
    %37 = vector.load %arg2[%c2_43, %c0_44, %c0_45, %c0_46] : memref<3x3x128x128xbf16, #tpu.memory_space<vmem>>, vector<1x1x128x128xbf16>
    %38 = vector.shape_cast %37 : vector<1x1x128x128xbf16> to vector<128x128xbf16>
    %cst_47 = arith.constant dense<0.000000e+00> : vector<80x128xf32>
    %39 = tpu.matmul %36, %38, %cst_47 {dimension_numbers = #tpu.dot_dimension_numbers<[1], [0], [0], [1], [0, 0, 1, 1], [], []>} : vector<80x128xbf16>, vector<128x128xbf16>, vector<80x128xf32> -> vector<80x128xf32>
    %40 = arith.addf %34, %39 : vector<80x128xf32>
    %c0_48 = arith.constant 0 : index
    %c21 = arith.constant 21 : index
    %c0_49 = arith.constant 0 : index
    %41 = vector.load %arg1[%c0_48, %c21, %c0_49] : memref<1x104x128xbf16, #tpu.memory_space<vmem>>, vector<1x80x128xbf16>
    %42 = vector.shape_cast %41 : vector<1x80x128xbf16> to vector<80x128xbf16>
    %c2_50 = arith.constant 2 : index
    %c1_51 = arith.constant 1 : index
    %c0_52 = arith.constant 0 : index
    %c0_53 = arith.constant 0 : index
    %43 = vector.load %arg2[%c2_50, %c1_51, %c0_52, %c0_53] : memref<3x3x128x128xbf16, #tpu.memory_space<vmem>>, vector<1x1x128x128xbf16>
    %44 = vector.shape_cast %43 : vector<1x1x128x128xbf16> to vector<128x128xbf16>
    %cst_54 = arith.constant dense<0.000000e+00> : vector<80x128xf32>
    %45 = tpu.matmul %42, %44, %cst_54 {dimension_numbers = #tpu.dot_dimension_numbers<[1], [0], [0], [1], [0, 0, 1, 1], [], []>} : vector<80x128xbf16>, vector<128x128xbf16>, vector<80x128xf32> -> vector<80x128xf32>
    %46 = arith.addf %40, %45 : vector<80x128xf32>
    %c0_55 = arith.constant 0 : index
    %c22 = arith.constant 22 : index
    %c0_56 = arith.constant 0 : index
    %47 = vector.load %arg1[%c0_55, %c22, %c0_56] : memref<1x104x128xbf16, #tpu.memory_space<vmem>>, vector<1x80x128xbf16>
    %48 = vector.shape_cast %47 : vector<1x80x128xbf16> to vector<80x128xbf16>
    %c2_57 = arith.constant 2 : index
    %c2_58 = arith.constant 2 : index
    %c0_59 = arith.constant 0 : index
    %c0_60 = arith.constant 0 : index
    %49 = vector.load %arg2[%c2_57, %c2_58, %c0_59, %c0_60] : memref<3x3x128x128xbf16, #tpu.memory_space<vmem>>, vector<1x1x128x128xbf16>
    %50 = vector.shape_cast %49 : vector<1x1x128x128xbf16> to vector<128x128xbf16>
    %cst_61 = arith.constant dense<0.000000e+00> : vector<80x128xf32>
    %51 = tpu.matmul %48, %50, %cst_61 {dimension_numbers = #tpu.dot_dimension_numbers<[1], [0], [0], [1], [0, 0, 1, 1], [], []>} : vector<80x128xbf16>, vector<128x128xbf16>, vector<80x128xf32> -> vector<80x128xf32>
    %52 = arith.addf %46, %51 : vector<80x128xf32>
    %53 = vector.shape_cast %52 : vector<80x128xf32> to vector<1x80x128xf32>
    %c0_62 = arith.constant 0 : index
    %c0_63 = arith.constant 0 : index
    %c0_64 = arith.constant 0 : index
    %54 = vector.load %arg4[%c0_62, %c0_63, %c0_64] : memref<1x80x128xf32, #tpu.memory_space<vmem>>, vector<1x80x128xf32>
    tpu.vector_store %arg4[%c0_62, %c0_63, %c0_64], %53 {strides = array<i32>} : memref<1x80x128xf32, #tpu.memory_space<vmem>>, vector<1x80x128xf32>,
    %c0_65 = arith.constant 0 : index
    %c0_66 = arith.constant 0 : index
    %55 = vector.load %arg3[%c0_65, %c0_66] : memref<80x1xf32, #tpu.memory_space<vmem>>, vector<80x1xf32>
    %56 = vector.broadcast %55 : vector<80x1xf32> to vector<80x128xf32>
    %57 = arith.mulf %52, %56 : vector<80x128xf32>
    %cst_67 = arith.constant dense<0.000000e+00> : vector<128xf32>
    %58 = vector.multi_reduction <add>, %57, %cst_67 [0] : vector<80x128xf32> to vector<128xf32>
    %59 = vector.shape_cast %58 : vector<128xf32> to vector<1x128xf32>
    %60 = arith.mulf %52, %52 : vector<80x128xf32>
    %61 = vector.broadcast %55 : vector<80x1xf32> to vector<80x128xf32>
    %62 = arith.mulf %60, %61 : vector<80x128xf32>
    %cst_68 = arith.constant dense<0.000000e+00> : vector<128xf32>
    %63 = vector.multi_reduction <add>, %62, %cst_68 [0] : vector<80x128xf32> to vector<128xf32>
    %64 = vector.shape_cast %63 : vector<128xf32> to vector<1x128xf32>
    %65 = tpu.concatenate %59, %64 in 0 : vector<1x128xf32>, vector<1x128xf32> -> vector<2x128xf32>
    %66 = vector.shape_cast %65 : vector<2x128xf32> to vector<1x2x128xf32>
    %c0_69 = arith.constant 0 : index
    %c0_70 = arith.constant 0 : index
    %c0_71 = arith.constant 0 : index
    %67 = vector.load %arg5[%c0_69, %c0_70, %c0_71] : memref<1x2x128xf32, #tpu.memory_space<vmem>>, vector<1x2x128xf32>
    tpu.vector_store %arg5[%c0_69, %c0_70, %c0_71], %66 {strides = array<i32>} : memref<1x2x128xf32, #tpu.memory_space<vmem>>, vector<1x2x128xf32>,
    return
  }
  func.func @transform_0(%arg0: i32) -> (i32, i32, i32) {
    %c0_i32 = arith.constant 0 : i32
    %c0_i32_0 = arith.constant 0 : i32
    %c0_i32_1 = arith.constant 0 : i32
    return %arg0, %c0_i32, %c0_i32_0 : i32, i32, i32
  }
  func.func @transform_1(%arg0: i32) -> (i32, i32, i32, i32) {
    %c0_i32 = arith.constant 0 : i32
    %c0_i32_0 = arith.constant 0 : i32
    %c0_i32_1 = arith.constant 0 : i32
    %c0_i32_2 = arith.constant 0 : i32
    %c0_i32_3 = arith.constant 0 : i32
    return %c0_i32, %c0_i32_0, %c0_i32_1, %c0_i32_2 : i32, i32, i32, i32
  }
  func.func @transform_2(%arg0: i32) -> (i32, i32) {
    %c0_i32 = arith.constant 0 : i32
    %c0_i32_0 = arith.constant 0 : i32
    %c0_i32_1 = arith.constant 0 : i32
    return %c0_i32, %c0_i32_0 : i32, i32
  }
  func.func @transform_3(%arg0: i32) -> (i32, i32, i32) {
    %c0_i32 = arith.constant 0 : i32
    %c0_i32_0 = arith.constant 0 : i32
    %c0_i32_1 = arith.constant 0 : i32
    return %arg0, %c0_i32, %c0_i32_0 : i32, i32, i32
  }
  func.func @transform_4(%arg0: i32) -> (i32, i32, i32) {
    %c0_i32 = arith.constant 0 : i32
    %c0_i32_0 = arith.constant 0 : i32
    %c0_i32_1 = arith.constant 0 : i32
    return %arg0, %c0_i32, %c0_i32_0 : i32, i32, i32
  }
}

module attributes {stable_mosaic.version = 11 : i64} {
  func.func @_bn_lrelu_kernel(%arg0: i32, %arg1: memref<1x80x128xf32, #tpu.memory_space<vmem>>, %arg2: memref<1x128xf32, #tpu.memory_space<vmem>>, %arg3: memref<1x128xf32, #tpu.memory_space<vmem>>, %arg4: memref<1x80x128xf32, #tpu.memory_space<vmem>>) attributes {dimension_semantics = [#tpu.dimension_semantics<parallel>], iteration_bounds = array<i64: 2>, scalar_prefetch = 0 : i64, scratch_operands = 0 : i64, tpu.core_type = #tpu.core_type<tc>, window_params = [{transform_indices = @transform_0, window_bounds = array<i64: 1, 80, 128>}, {pipeline_mode = #tpu.pipeline_mode<synchronous>, transform_indices = @transform_1, window_bounds = array<i64: 1, 128>}, {pipeline_mode = #tpu.pipeline_mode<synchronous>, transform_indices = @transform_2, window_bounds = array<i64: 1, 128>}, {transform_indices = @transform_3, window_bounds = array<i64: 1, 80, 128>}]} {
    %c0 = arith.constant 0 : index
    %c0_0 = arith.constant 0 : index
    %c0_1 = arith.constant 0 : index
    %0 = vector.load %arg1[%c0, %c0_0, %c0_1] : memref<1x80x128xf32, #tpu.memory_space<vmem>>, vector<1x80x128xf32>
    %c0_2 = arith.constant 0 : index
    %c0_3 = arith.constant 0 : index
    %1 = vector.load %arg2[%c0_2, %c0_3] : memref<1x128xf32, #tpu.memory_space<vmem>>, vector<1x128xf32>
    %2 = vector.shape_cast %1 : vector<1x128xf32> to vector<1x1x128xf32>
    %c0_4 = arith.constant 0 : index
    %c0_5 = arith.constant 0 : index
    %3 = vector.load %arg3[%c0_4, %c0_5] : memref<1x128xf32, #tpu.memory_space<vmem>>, vector<1x128xf32>
    %4 = vector.shape_cast %3 : vector<1x128xf32> to vector<1x1x128xf32>
    %5 = vector.broadcast %2 : vector<1x1x128xf32> to vector<1x80x128xf32>
    %6 = arith.mulf %0, %5 : vector<1x80x128xf32>
    %7 = vector.broadcast %4 : vector<1x1x128xf32> to vector<1x80x128xf32>
    %8 = arith.addf %6, %7 : vector<1x80x128xf32>
    %cst = arith.constant 0.000000e+00 : f32
    %9 = vector.broadcast %cst : f32 to vector<1x80x128xf32>
    %10 = arith.cmpf oge, %8, %9 : vector<1x80x128xf32>
    %cst_6 = arith.constant 2.000000e-01 : f32
    %11 = vector.broadcast %cst_6 : f32 to vector<1x80x128xf32>
    %12 = arith.mulf %11, %8 : vector<1x80x128xf32>
    %13 = arith.select %10, %8, %12 : vector<1x80x128xi1>, vector<1x80x128xf32>
    %c0_7 = arith.constant 0 : index
    %c0_8 = arith.constant 0 : index
    %c0_9 = arith.constant 0 : index
    %14 = vector.load %arg4[%c0_7, %c0_8, %c0_9] : memref<1x80x128xf32, #tpu.memory_space<vmem>>, vector<1x80x128xf32>
    tpu.vector_store %arg4[%c0_7, %c0_8, %c0_9], %13 {strides = array<i32>} : memref<1x80x128xf32, #tpu.memory_space<vmem>>, vector<1x80x128xf32>,
    return
  }
  func.func @transform_0(%arg0: i32) -> (i32, i32, i32) {
    %c0_i32 = arith.constant 0 : i32
    %c0_i32_0 = arith.constant 0 : i32
    %c0_i32_1 = arith.constant 0 : i32
    return %arg0, %c0_i32, %c0_i32_0 : i32, i32, i32
  }
  func.func @transform_1(%arg0: i32) -> (i32, i32) {
    %c0_i32 = arith.constant 0 : i32
    %c0_i32_0 = arith.constant 0 : i32
    %c0_i32_1 = arith.constant 0 : i32
    return %c0_i32, %c0_i32_0 : i32, i32
  }
  func.func @transform_2(%arg0: i32) -> (i32, i32) {
    %c0_i32 = arith.constant 0 : i32
    %c0_i32_0 = arith.constant 0 : i32
    %c0_i32_1 = arith.constant 0 : i32
    return %c0_i32, %c0_i32_0 : i32, i32
  }
  func.func @transform_3(%arg0: i32) -> (i32, i32, i32) {
    %c0_i32 = arith.constant 0 : i32
    %c0_i32_0 = arith.constant 0 : i32
    %c0_i32_1 = arith.constant 0 : i32
    return %arg0, %c0_i32, %c0_i32_0 : i32, i32, i32
  }
}

</mosaic_0001>

<llo_original>
// kernel: down_forward.5
$region0: #{down_forward.5}
  #allocation0 [shape = 'u32[]', space=smem, size = 0x4, offset = 0x4, fixed_abs, tag = 'smem constant byte address 0x4 - core index']
  #allocation1 [shape = 'u32[144,128]{1,0:T(1,128)}', space=vmem, size = 0x12000, scoped, tag = 'internal scratch']
  %s0 = inlined_call_operand.hbm [shape: f32[2,80,128], index: 0, kind: input, shape index: {}]
  %s1 = inlined_call_operand.hbm [shape: f32[1,128], index: 1, kind: input, shape index: {}]
  %s2 = inlined_call_operand.hbm [shape: f32[1,128], index: 2, kind: input, shape index: {}]
  %s3 = inlined_call_operand.hbm [shape: bf16[2,80,128], index: 3, kind: output, shape index: {}]
  %s4 = sld [smem:[#allocation0]]
  $region57: #{down_forward.5} parent=0
    _
  %s6 = ssub.s32 1, %s4
  %s7 = scalar_select 0, %s6, %s4
  $region1: #{down_forward.5} parent=0
    #allocation2 [shape = 'u8[81920]{0}', space=vmem, size = 0x14000, scoped, tag = 'input window, operand 0']
    #allocation3 [shape = 's32[2]{0}', space=sflag, size = 0x8, scoped, tag = 'scoped memory for down_forward.5']
    #allocation4 [shape = 's32[2]{0}', space=sflag, size = 0x8, scoped, tag = 'scoped memory for down_forward.5']
    #allocation5 [shape = 'u8[512]{0}', space=vmem, size = 0x400, scoped, tag = 'input window, operand 1, single buffered']
    #allocation6 [shape = 's32[1]{0}', space=sflag, size = 0x4, scoped, tag = 'scoped memory for down_forward.5']
    #allocation7 [shape = 'u8[512]{0}', space=vmem, size = 0x400, scoped, tag = 'input window, operand 2, single buffered']
    #allocation8 [shape = 'u8[40960]{0}', space=vmem, size = 0xa000, scoped, tag = 'output window, operand 0']
    %8 = vsyncpa [#allocation3], 0
    %s9 = scalar_lea.sflag [#allocation3], 1
    %10 = vsyncpa %s9, 0
    %11 = vsyncpa [#allocation6], 0
    %12 = vsyncpa [#allocation4], 0
    %s13 = scalar_lea.sflag [#allocation4], 1
    %14 = vsyncpa %s13, 0
    loop: start=0, step=1, limit=4
    $region2: #{down_forward.5} parent=1 // loop_pre_header
      _
    $region3: #{down_forward.5} parent=1 // loop_header
      %s16 = sphi 0, %s20
      %p17 = scmp.ge.s32.totalorder %s16, 4
      %s26 = sphi 0, %s28
      %s29 = sphi 0, %s26
      %s30 = sphi 0, %s29
      %s46 = sphi 0, %s30
      %s50 = sphi 0, %s50
      %s52 = sphi 0, %s50
      %s53 = sphi 0, %s52
      %s67 = sphi 0, %s53
      %s71 = sphi 0, %s71
      %s73 = sphi 0, %s71
      %s74 = sphi 0, %s73
      %s88 = sphi 0, %s74
      %s94 = sphi 0, %s96
      %s97 = sphi 0, %s94
      %s98 = sphi 0, %s97
      %s114 = sphi 0, %s98
    $region4: #{down_forward.5} parent=1 // loop_header_branch
      %19 = sbr.rel (%p17) target = $region8
    $region5: #{down_forward.5} parent=1 // loop_body
      %s21 = ssub.s32 %s16, 1
      %s22 = ssub.s32 %s16, 2
      %s23 = sadd.s32 %s16, 1
      %s24 = ssub.s32 %s16, %s23
      %p25 = scmp.eq.s32.totalorder %s24, 0
      %s27 = sadd.s32 %s26, 1
      %s28 = scalar_select %p25, %s26, %s27
      %p31 = pneg %p25
      %p32 = scmp.eq.s32.totalorder %s16, 1
      %p33 = por %p31, %p32
      %p34 = scmp.ne.s32.totalorder %s26, %s29
      %p35 = scmp.eq.s32.totalorder %s16, 0
      %p36 = por %p34, %p35
      %p37 = scmp.ne.s32.totalorder %s26, %s29
      %p38 = scmp.eq.s32.totalorder %s21, 1
      %p39 = por %p37, %p38
      %p40 = scmp.ne.s32.totalorder %s29, %s30
      %p41 = scmp.eq.s32.totalorder %s21, 0
      %p42 = por %p40, %p41
      %p43 = scmp.ne.s32.totalorder %s29, %s30
      %p44 = scmp.eq.s32.totalorder %s22, 1
      %p45 = por %p43, %p44
      %p47 = scmp.ne.s32.totalorder %s30, %s46
      %p48 = scmp.eq.s32.totalorder %s22, 0
      %p49 = por %p47, %p48
      %s51 = sadd.s32 %s50, 1
      %p54 = scmp.eq.s32.totalorder %s16, 1
      %p55 = scmp.ne.s32.totalorder %s50, %s52
      %p56 = scmp.eq.s32.totalorder %s16, 0
      %p57 = por %p55, %p56
      %p58 = scmp.ne.s32.totalorder %s50, %s52
      %p59 = scmp.eq.s32.totalorder %s21, 1
      %p60 = por %p58, %p59
      %p61 = scmp.ne.s32.totalorder %s52, %s53
      %p62 = scmp.eq.s32.totalorder %s21, 0
      %p63 = por %p61, %p62
      %p64 = scmp.ne.s32.totalorder %s52, %s53
      %p65 = scmp.eq.s32.totalorder %s22, 1
      %p66 = por %p64, %p65
      %p68 = scmp.ne.s32.totalorder %s53, %s67
      %p69 = scmp.eq.s32.totalorder %s22, 0
      %p70 = por %p68, %p69
      %s72 = sadd.s32 %s71, 1
      %p75 = scmp.eq.s32.totalorder %s16, 1
      %p76 = scmp.ne.s32.totalorder %s71, %s73
      %p77 = scmp.eq.s32.totalorder %s16, 0
      %p78 = por %p76, %p77
      %p79 = scmp.ne.s32.totalorder %s71, %s73
      %p80 = scmp.eq.s32.totalorder %s21, 1
      %p81 = por %p79, %p80
      %p82 = scmp.ne.s32.totalorder %s73, %s74
      %p83 = scmp.eq.s32.totalorder %s21, 0
      %p84 = por %p82, %p83
      %p85 = scmp.ne.s32.totalorder %s73, %s74
      %p86 = scmp.eq.s32.totalorder %s22, 1
      %p87 = por %p85, %p86
      %p89 = scmp.ne.s32.totalorder %s74, %s88
      %p90 = scmp.eq.s32.totalorder %s22, 0
      %p91 = por %p89, %p90
      %s92 = ssub.s32 %s16, %s23
      %p93 = scmp.eq.s32.totalorder %s92, 0
      %s95 = sadd.s32 %s94, 1
      %s96 = scalar_select %p93, %s94, %s95
      %p99 = pneg %p93
      %p100 = scmp.eq.s32.totalorder %s16, 1
      %p101 = por %p99, %p100
      %p102 = scmp.ne.s32.totalorder %s94, %s97
      %p103 = scmp.eq.s32.totalorder %s16, 0
      %p104 = por %p102, %p103
      %p105 = scmp.ne.s32.totalorder %s94, %s97
      %p106 = scmp.eq.s32.totalorder %s21, 1
      %p107 = por %p105, %p106
      %p108 = scmp.ne.s32.totalorder %s97, %s98
      %p109 = scmp.eq.s32.totalorder %s21, 0
      %p110 = por %p108, %p109
      %p111 = scmp.ne.s32.totalorder %s97, %s98
      %p112 = scmp.eq.s32.totalorder %s22, 1
      %p113 = por %p111, %p112
      %p115 = scmp.ne.s32.totalorder %s98, %s114
      %p116 = scmp.eq.s32.totalorder %s22, 0
      %p117 = por %p115, %p116
      %p118 = scmp.le.s32.totalorder 1, %s16
      %p119 = scmp.lt.s32.totalorder %s16, 3
      %p120 = pnand %p118, %p119
      %p121 = pneg %p120
      // Predicated region
      $region9: #{down_forward.5} parent=5 // pred_check
        _
      $region10: #{down_forward.5} parent=5 // pred_check_branch
        %123 = sbr.rel (%p120) target = $region12
      $region11: #{down_forward.5} parent=5 // pred_region
        %s124 = ssub.s32 %s16, 1
        // Predicated region
        $region13: #{down_forward.5} parent=11 // pred_check
          %p125 = pneg %p63
        $region14: #{down_forward.5} parent=11 // pred_check_branch
          %127 = sbr.rel (%p125) target = $region16
        $region15: #{down_forward.5} parent=11 // pred_region
          %s129 = ssub.s32 16, 16
          %130 = vsyncadd [#allocation6], %s129
          %s132 = sshll.u32 [#allocation5], 4
          %s133 = int_to_ptr.vmem [resolvable:$true] %s132
          %135 = dma.hbm_to_vmem [thread:$0]  %s1, 16, %s133, [#allocation6]
        $region16: #{down_forward.5} parent=11 // pred_fallthru
          _
        // Predicated region
        $region17: #{down_forward.5} parent=11 // pred_check
          %p136 = pneg %p84
        $region18: #{down_forward.5} parent=11 // pred_check_branch
          %138 = sbr.rel (%p136) target = $region20
        $region19: #{down_forward.5} parent=11 // pred_region
          %s140 = ssub.s32 16, 16
          %141 = vsyncadd [#allocation6], %s140
          %s143 = sshll.u32 [#allocation7], 4
          %s144 = int_to_ptr.vmem [resolvable:$true] %s143
          %146 = dma.hbm_to_vmem [thread:$0]  %s2, 16, %s144, [#allocation6]
        $region20: #{down_forward.5} parent=11 // pred_fallthru
          _
      $region12: #{down_forward.5} parent=5 // pred_fallthru
        _
      %p147 = scmp.lt.s32.totalorder %s16, 2
      // Predicated region
      $region21: #{down_forward.5} parent=5 // pred_check
        %p148 = pneg %p147
      $region22: #{down_forward.5} parent=5 // pred_check_branch
        %150 = sbr.rel (%p148) target = $region24
      $region23: #{down_forward.5} parent=5 // pred_region
        // Predicated region
        $region25: #{down_forward.5} parent=23 // pred_check
          %p151 = pneg %p36
        $region26: #{down_forward.5} parent=23 // pred_check_branch
          %153 = sbr.rel (%p151) target = $region28
        $region27: #{down_forward.5} parent=23 // pred_region
          %s154 = sand.u32 %s26, 1
          %s155 = scalar_lea.sflag [#allocation3], %s154
          %s156 = sand.u32 %s26, 1
          %s157 = smul.addr %s156, 80
          %s158 = scalar_lea.vmem [#allocation2], %s157
          %s160 = ssub.s32 1280, 1280
          %161 = vsyncadd %s155, %s160
          %s162 = smul.addr %s16, 10
          %s163 = smul.addr %s162, 128
          %s164 = scalar_lea.hbm %s0, %s163
          %s165 = sshll.u32 %s158, 4
          %s166 = int_to_ptr.vmem [resolvable:$true] %s165
          %171 = dma.hbm_to_vmem [thread:$0]  %s164, 1280, %s166, %s155, 128, 128, 8
        $region28: #{down_forward.5} parent=23 // pred_fallthru
          _
      $region24: #{down_forward.5} parent=5 // pred_fallthru
        _
      %p172 = scmp.le.s32.totalorder 1, %s16
      %p173 = scmp.lt.s32.totalorder %s16, 3
      %p174 = pnand %p172, %p173
      %p175 = pneg %p174
      // Predicated region
      $region29: #{down_forward.5} parent=5 // pred_check
        _
      $region30: #{down_forward.5} parent=5 // pred_check_branch
        %177 = sbr.rel (%p174) target = $region32
      $region31: #{down_forward.5} parent=5 // pred_region
        %s178 = ssub.s32 %s16, 1
        %s179 = sand.u32 %s29, 1
        %s180 = scalar_lea.sflag [#allocation3], %s179
        %s181 = sand.u32 %s29, 1
        %s182 = smul.addr %s181, 80
        %s183 = scalar_lea.vmem [#allocation2], %s182
        // Predicated region
        $region33: #{down_forward.5} parent=31 // pred_check
          %p184 = pneg %p42
        $region34: #{down_forward.5} parent=31 // pred_check_branch
          %186 = sbr.rel (%p184) target = $region36
        $region35: #{down_forward.5} parent=31 // pred_region
          %187 = dma.done %s180, 1280
        $region36: #{down_forward.5} parent=31 // pred_fallthru
          _
        // Predicated region
        $region37: #{down_forward.5} parent=31 // pred_check
          %p188 = pneg %p63
        $region38: #{down_forward.5} parent=31 // pred_check_branch
          %190 = sbr.rel (%p188) target = $region40
        $region39: #{down_forward.5} parent=31 // pred_region
          %191 = dma.done [#allocation6], 16
        $region40: #{down_forward.5} parent=31 // pred_fallthru
          _
        // Predicated region
        $region41: #{down_forward.5} parent=31 // pred_check
          %p192 = pneg %p84
        $region42: #{down_forward.5} parent=31 // pred_check_branch
          %194 = sbr.rel (%p192) target = $region44
        $region43: #{down_forward.5} parent=31 // pred_region
          %195 = dma.done [#allocation6], 16
        $region44: #{down_forward.5} parent=31 // pred_fallthru
          _
        %s196 = sand.u32 %s29, 1
        %s197 = scalar_lea.sflag [#allocation3], %s196
        %s198 = sand.u32 %s29, 1
        %s199 = smul.addr %s198, 80
        %s200 = scalar_lea.vmem [#allocation2], %s199
        %p201 = pneg %p42
        %p202 = pneg %p39
        %p203 = pneg %p63
        %p204 = pneg %p60
        %p205 = pneg %p84
        %p206 = pneg %p81
        %p207 = pneg %p110
        %p208 = pneg %p107
        %s209 = sand.u32 %s97, 1
        %s210 = scalar_lea.sflag [#allocation4], %s209
        %s211 = sand.u32 %s97, 1
        %s212 = smul.addr %s211, 40
        %s213 = scalar_lea.vmem [#allocation8], %s212
        %v214 = vld [vmem:[%s183] sm:$0xff]
        %v215 = vld [vmem:[%s183 + $0x8] sm:$0xff]
        %v216 = vld [vmem:[%s183 + $0x10] sm:$0xff]
        %v217 = vld [vmem:[%s183 + $0x18] sm:$0xff]
        %v218 = vld [vmem:[%s183 + $0x20] sm:$0xff]
        %v219 = vld [vmem:[%s183 + $0x28] sm:$0xff]
        %v220 = vld [vmem:[%s183 + $0x30] sm:$0xff]
        %v221 = vld [vmem:[%s183 + $0x38] sm:$0xff]
        %v222 = vld [vmem:[%s183 + $0x40] sm:$0xff]
        %v223 = vld [vmem:[%s183 + $0x48] sm:$0xff]
        %v224 = vld [vmem:[#allocation5] sm:$0x1]
        %v225 = vld [vmem:[#allocation7] sm:$0x1]
        %v227 = vlaneseq
        %v228 = vshrl.u32 %v227, 7
        %v229 = vsub.s32 0, %v228
        %v230 = vrot.slane %v224, %v229
        %v232 = vmul.f32 %v214, %v230
        %v233 = vmul.f32 %v215, %v230
        %v234 = vmul.f32 %v216, %v230
        %v235 = vmul.f32 %v217, %v230
        %v236 = vmul.f32 %v218, %v230
        %v237 = vmul.f32 %v219, %v230
        %v238 = vmul.f32 %v220, %v230
        %v239 = vmul.f32 %v221, %v230
        %v240 = vmul.f32 %v222, %v230
        %v241 = vmul.f32 %v223, %v230
        %v243 = vlaneseq
        %v244 = vshrl.u32 %v243, 7
        %v245 = vsub.s32 0, %v244
        %v246 = vrot.slane %v225, %v245
        %v248 = vadd.f32 %v232, %v246
        %v249 = vadd.f32 %v233, %v246
        %v250 = vadd.f32 %v234, %v246
        %v251 = vadd.f32 %v235, %v246
        %v252 = vadd.f32 %v236, %v246
        %v253 = vadd.f32 %v237, %v246
        %v254 = vadd.f32 %v238, %v246
        %v255 = vadd.f32 %v239, %v246
        %v256 = vadd.f32 %v240, %v246
        %v257 = vadd.f32 %v241, %v246
        %vm258 = vcmp.ge.f32.partialorder %v248, 0.0
        %vm259 = vcmp.ge.f32.partialorder %v249, 0.0
        %vm260 = vcmp.ge.f32.partialorder %v250, 0.0
        %vm261 = vcmp.ge.f32.partialorder %v251, 0.0
        %vm262 = vcmp.ge.f32.partialorder %v252, 0.0
        %vm263 = vcmp.ge.f32.partialorder %v253, 0.0
        %vm264 = vcmp.ge.f32.partialorder %v254, 0.0
        %vm265 = vcmp.ge.f32.partialorder %v255, 0.0
        %vm266 = vcmp.ge.f32.partialorder %v256, 0.0
        %vm267 = vcmp.ge.f32.partialorder %v257, 0.0
        %v268 = vmul.f32 %v248, 0.2
        %v269 = vmul.f32 %v249, 0.2
        %v270 = vmul.f32 %v250, 0.2
        %v271 = vmul.f32 %v251, 0.2
        %v272 = vmul.f32 %v252, 0.2
        %v273 = vmul.f32 %v253, 0.2
        %v274 = vmul.f32 %v254, 0.2
        %v275 = vmul.f32 %v255, 0.2
        %v276 = vmul.f32 %v256, 0.2
        %v277 = vmul.f32 %v257, 0.2
        %v278 = vsel %vm258, %v248, %v268
        %v279 = vsel %vm259, %v249, %v269
        %v280 = vsel %vm260, %v250, %v270
        %v281 = vsel %vm261, %v251, %v271
        %v282 = vsel %vm262, %v252, %v272
        %v283 = vsel %vm263, %v253, %v273
        %v284 = vsel %vm264, %v254, %v274
        %v285 = vsel %vm265, %v255, %v275
        %v286 = vsel %vm266, %v256, %v276
        %v287 = vsel %vm267, %v257, %v277
        %v288 = vpack.c.bf16 %v279, %v278
        %v289 = vpack.c.bf16 %v281, %v280
        %v290 = vpack.c.bf16 %v283, %v282
        %v291 = vpack.c.bf16 %v285, %v284
        %v292 = vpack.c.bf16 %v287, %v286
        %v298 = vunpack.c.l.b16 %v288
        %v299 = vunpack.c.h.b16 %v288
        %v300 = vunpack.c.l.b16 %v289
        %v301 = vunpack.c.h.b16 %v289
        %v302 = vunpack.c.l.b16 %v290
        %v303 = vunpack.c.h.b16 %v290
        %v304 = vunpack.c.l.b16 %v291
        %v305 = vunpack.c.h.b16 %v291
        %v306 = vunpack.c.l.b16 %v292
        %v307 = vunpack.c.h.b16 %v292
        %v308 = vpack.c.b16 %v298, %v298
        %v309 = vpack.c.b16 %v299, %v299
        %v310 = vpack.c.b16 %v300, %v300
        %v311 = vpack.c.b16 %v301, %v301
        %v312 = vpack.c.b16 %v302, %v302
        %v313 = vpack.c.b16 %v303, %v303
        %v314 = vpack.c.b16 %v304, %v304
        %v315 = vpack.c.b16 %v305, %v305
        %v316 = vpack.c.b16 %v306, %v306
        %v317 = vpack.c.b16 %v307, %v307
        %328 = vst [vmem:[%s213] sm:$0xf] %v308
        %329 = vst [vmem:[%s213 + $0x4] sm:$0xf] %v309
        %330 = vst [vmem:[%s213 + $0x8] sm:$0xf] %v310
        %331 = vst [vmem:[%s213 + $0xc] sm:$0xf] %v311
        %332 = vst [vmem:[%s213 + $0x10] sm:$0xf] %v312
        %333 = vst [vmem:[%s213 + $0x14] sm:$0xf] %v313
        %334 = vst [vmem:[%s213 + $0x18] sm:$0xf] %v314
        %335 = vst [vmem:[%s213 + $0x1c] sm:$0xf] %v315
        %336 = vst [vmem:[%s213 + $0x20] sm:$0xf] %v316
        %337 = vst [vmem:[%s213 + $0x24] sm:$0xf] %v317
        %s338 = sand.u32 %s97, 1
        %s339 = scalar_lea.sflag [#allocation4], %s338
        %s340 = sand.u32 %s97, 1
        %s341 = smul.addr %s340, 40
        %s342 = scalar_lea.vmem [#allocation8], %s341
        // Predicated region
        $region45: #{down_forward.5} parent=31 // pred_check
          %p343 = pneg %p107
        $region46: #{down_forward.5} parent=31 // pred_check_branch
          %345 = sbr.rel (%p343) target = $region48
        $region47: #{down_forward.5} parent=31 // pred_region
          %s347 = ssub.s32 640, 640
          %348 = vsyncadd %s339, %s347
          %s349 = smul.addr %s21, 10
          %s350 = smul.addr %s349, 64
          %s351 = scalar_lea.hbm %s3, %s350
          %s352 = sshll.u32 %s342, 4
          %s353 = int_to_ptr.vmem [resolvable:$true] %s352
          %358 = dma.vmem_to_hbm [thread:$0]  %s353, 640, %s351, %s339, 64, 64, 4
        $region48: #{down_forward.5} parent=31 // pred_fallthru
          _
      $region32: #{down_forward.5} parent=5 // pred_fallthru
        _
      %p359 = scmp.le.s32.totalorder 2, %s16
      // Predicated region
      $region49: #{down_forward.5} parent=5 // pred_check
        %p360 = pneg %p359
      $region50: #{down_forward.5} parent=5 // pred_check_branch
        %362 = sbr.rel (%p360) target = $region52
      $region51: #{down_forward.5} parent=5 // pred_region
        %s363 = ssub.s32 %s16, 2
        // Predicated region
        $region53: #{down_forward.5} parent=51 // pred_check
          %p364 = pneg %p113
        $region54: #{down_forward.5} parent=51 // pred_check_branch
          %366 = sbr.rel (%p364) target = $region56
        $region55: #{down_forward.5} parent=51 // pred_region
          %s367 = sand.u32 %s98, 1
          %s368 = scalar_lea.sflag [#allocation4], %s367
          %s369 = sand.u32 %s98, 1
          %s370 = smul.addr %s369, 40
          %s371 = scalar_lea.vmem [#allocation8], %s370
          %372 = dma.done %s368, 640
        $region56: #{down_forward.5} parent=51 // pred_fallthru
          _
      $region52: #{down_forward.5} parent=5 // pred_fallthru
        _
    $region6: #{down_forward.5} parent=1 // loop_footer
      %s20 = sadd.s32 1, %s16
    $region7: #{down_forward.5} parent=1 // loop_footer_branch
      %15 = sbr.rel target = $region3
    $region8: #{down_forward.5} parent=1 // loop_exit
      _
    %373 = vsyncpa [#allocation3], 1
    %s374 = scalar_lea.sflag [#allocation3], 1
    %375 = vsyncpa %s374, 1
    %376 = vsyncpa [#allocation6], 1
    %377 = vsyncpa [#allocation4], 1
    %s378 = scalar_lea.sflag [#allocation4], 1
    %379 = vsyncpa %s378, 1

// kernel: down_forward.4
$region0: #{down_forward.4}
  #allocation0 [shape = 'u32[]', space=smem, size = 0x4, offset = 0x4, fixed_abs, tag = 'smem constant byte address 0x4 - core index']
  #allocation1 [shape = 'u32[144,128]{1,0:T(1,128)}', space=vmem, size = 0x12000, scoped, tag = 'internal scratch']
  %s0 = inlined_call_operand.hbm [shape: bf16[2,104,4], index: 0, kind: input, shape index: {}]
  %s1 = inlined_call_operand.hbm [shape: bf16[3,3,4,128], index: 1, kind: input, shape index: {}]
  %s2 = inlined_call_operand.hbm [shape: f32[80,1], index: 2, kind: input, shape index: {}]
  %s3 = inlined_call_operand.hbm [shape: f32[2,80,128], index: 3, kind: output, shape index: {0}]
  %s4 = inlined_call_operand.hbm [shape: f32[2,2,128], index: 4, kind: output, shape index: {1}]
  %5 = xla_tuple %s3, %s4
  %s6 = sld [smem:[#allocation0]]
  $region65: #{down_forward.4} parent=0
    _
  %s8 = ssub.s32 1, %s6
  %s9 = scalar_select 0, %s8, %s6
  $region1: #{down_forward.4} parent=0
    #allocation2 [shape = 'u8[53248]{0}', space=vmem, size = 0xd000, scoped, tag = 'input window, operand 0']
    #allocation3 [shape = 's32[2]{0}', space=sflag, size = 0x8, scoped, tag = 'scoped memory for down_forward.4']
    #allocation4 [shape = 's32[2]{0}', space=sflag, size = 0x8, scoped, tag = 'scoped memory for down_forward.4']
    #allocation5 [shape = 'u8[9216]{0}', space=vmem, size = 0x2400, scoped, tag = 'input window, operand 1, single buffered']
    #allocation6 [shape = 's32[1]{0}', space=sflag, size = 0x4, scoped, tag = 'scoped memory for down_forward.4']
    #allocation7 [shape = 'u8[40960]{0}', space=vmem, size = 0xa000, scoped, tag = 'input window, operand 2, single buffered']
    #allocation8 [shape = 'u8[81920]{0}', space=vmem, size = 0x14000, scoped, tag = 'output window, operand 0']
    #allocation9 [shape = 'u8[2048]{0}', space=vmem, size = 0x800, scoped, tag = 'output window, operand 1']
    #allocation10 [shape = 's32[2]{0}', space=sflag, size = 0x8, scoped, tag = 'scoped memory for down_forward.4']
    %10 = vsyncpa [#allocation3], 0
    %s11 = scalar_lea.sflag [#allocation3], 1
    %12 = vsyncpa %s11, 0
    %13 = vsyncpa [#allocation6], 0
    %14 = vsyncpa [#allocation4], 0
    %s15 = scalar_lea.sflag [#allocation4], 1
    %16 = vsyncpa %s15, 0
    %17 = vsyncpa [#allocation10], 0
    %s18 = scalar_lea.sflag [#allocation10], 1
    %19 = vsyncpa %s18, 0
    loop: start=0, step=1, limit=4
    $region2: #{down_forward.4} parent=1 // loop_pre_header
      _
    $region3: #{down_forward.4} parent=1 // loop_header
      %s21 = sphi 0, %s25
      %p22 = scmp.ge.s32.totalorder %s21, 4
      %s31 = sphi 0, %s33
      %s34 = sphi 0, %s31
      %s35 = sphi 0, %s34
      %s51 = sphi 0, %s35
      %s55 = sphi 0, %s55
      %s57 = sphi 0, %s55
      %s58 = sphi 0, %s57
      %s72 = sphi 0, %s58
      %s76 = sphi 0, %s76
      %s78 = sphi 0, %s76
      %s79 = sphi 0, %s78
      %s93 = sphi 0, %s79
      %s99 = sphi 0, %s101
      %s102 = sphi 0, %s99
      %s103 = sphi 0, %s102
      %s119 = sphi 0, %s103
      %s125 = sphi 0, %s127
      %s128 = sphi 0, %s125
      %s129 = sphi 0, %s128
      %s145 = sphi 0, %s129
    $region4: #{down_forward.4} parent=1 // loop_header_branch
      %24 = sbr.rel (%p22) target = $region8
    $region5: #{down_forward.4} parent=1 // loop_body
      %s26 = ssub.s32 %s21, 1
      %s27 = ssub.s32 %s21, 2
      %s28 = sadd.s32 %s21, 1
      %s29 = ssub.s32 %s21, %s28
      %p30 = scmp.eq.s32.totalorder %s29, 0
      %s32 = sadd.s32 %s31, 1
      %s33 = scalar_select %p30, %s31, %s32
      %p36 = pneg %p30
      %p37 = scmp.eq.s32.totalorder %s21, 1
      %p38 = por %p36, %p37
      %p39 = scmp.ne.s32.totalorder %s31, %s34
      %p40 = scmp.eq.s32.totalorder %s21, 0
      %p41 = por %p39, %p40
      %p42 = scmp.ne.s32.totalorder %s31, %s34
      %p43 = scmp.eq.s32.totalorder %s26, 1
      %p44 = por %p42, %p43
      %p45 = scmp.ne.s32.totalorder %s34, %s35
      %p46 = scmp.eq.s32.totalorder %s26, 0
      %p47 = por %p45, %p46
      %p48 = scmp.ne.s32.totalorder %s34, %s35
      %p49 = scmp.eq.s32.totalorder %s27, 1
      %p50 = por %p48, %p49
      %p52 = scmp.ne.s32.totalorder %s35, %s51
      %p53 = scmp.eq.s32.totalorder %s27, 0
      %p54 = por %p52, %p53
      %s56 = sadd.s32 %s55, 1
      %p59 = scmp.eq.s32.totalorder %s21, 1
      %p60 = scmp.ne.s32.totalorder %s55, %s57
      %p61 = scmp.eq.s32.totalorder %s21, 0
      %p62 = por %p60, %p61
      %p63 = scmp.ne.s32.totalorder %s55, %s57
      %p64 = scmp.eq.s32.totalorder %s26, 1
      %p65 = por %p63, %p64
      %p66 = scmp.ne.s32.totalorder %s57, %s58
      %p67 = scmp.eq.s32.totalorder %s26, 0
      %p68 = por %p66, %p67
      %p69 = scmp.ne.s32.totalorder %s57, %s58
      %p70 = scmp.eq.s32.totalorder %s27, 1
      %p71 = por %p69, %p70
      %p73 = scmp.ne.s32.totalorder %s58, %s72
      %p74 = scmp.eq.s32.totalorder %s27, 0
      %p75 = por %p73, %p74
      %s77 = sadd.s32 %s76, 1
      %p80 = scmp.eq.s32.totalorder %s21, 1
      %p81 = scmp.ne.s32.totalorder %s76, %s78
      %p82 = scmp.eq.s32.totalorder %s21, 0
      %p83 = por %p81, %p82
      %p84 = scmp.ne.s32.totalorder %s76, %s78
      %p85 = scmp.eq.s32.totalorder %s26, 1
      %p86 = por %p84, %p85
      %p87 = scmp.ne.s32.totalorder %s78, %s79
      %p88 = scmp.eq.s32.totalorder %s26, 0
      %p89 = por %p87, %p88
      %p90 = scmp.ne.s32.totalorder %s78, %s79
      %p91 = scmp.eq.s32.totalorder %s27, 1
      %p92 = por %p90, %p91
      %p94 = scmp.ne.s32.totalorder %s79, %s93
      %p95 = scmp.eq.s32.totalorder %s27, 0
      %p96 = por %p94, %p95
      %s97 = ssub.s32 %s21, %s28
      %p98 = scmp.eq.s32.totalorder %s97, 0
      %s100 = sadd.s32 %s99, 1
      %s101 = scalar_select %p98, %s99, %s100
      %p104 = pneg %p98
      %p105 = scmp.eq.s32.totalorder %s21, 1
      %p106 = por %p104, %p105
      %p107 = scmp.ne.s32.totalorder %s99, %s102
      %p108 = scmp.eq.s32.totalorder %s21, 0
      %p109 = por %p107, %p108
      %p110 = scmp.ne.s32.totalorder %s99, %s102
      %p111 = scmp.eq.s32.totalorder %s26, 1
      %p112 = por %p110, %p111
      %p113 = scmp.ne.s32.totalorder %s102, %s103
      %p114 = scmp.eq.s32.totalorder %s26, 0
      %p115 = por %p113, %p114
      %p116 = scmp.ne.s32.totalorder %s102, %s103
      %p117 = scmp.eq.s32.totalorder %s27, 1
      %p118 = por %p116, %p117
      %p120 = scmp.ne.s32.totalorder %s103, %s119
      %p121 = scmp.eq.s32.totalorder %s27, 0
      %p122 = por %p120, %p121
      %s123 = ssub.s32 %s21, %s28
      %p124 = scmp.eq.s32.totalorder %s123, 0
      %s126 = sadd.s32 %s125, 1
      %s127 = scalar_select %p124, %s125, %s126
      %p130 = pneg %p124
      %p131 = scmp.eq.s32.totalorder %s21, 1
      %p132 = por %p130, %p131
      %p133 = scmp.ne.s32.totalorder %s125, %s128
      %p134 = scmp.eq.s32.totalorder %s21, 0
      %p135 = por %p133, %p134
      %p136 = scmp.ne.s32.totalorder %s125, %s128
      %p137 = scmp.eq.s32.totalorder %s26, 1
      %p138 = por %p136, %p137
      %p139 = scmp.ne.s32.totalorder %s128, %s129
      %p140 = scmp.eq.s32.totalorder %s26, 0
      %p141 = por %p139, %p140
      %p142 = scmp.ne.s32.totalorder %s128, %s129
      %p143 = scmp.eq.s32.totalorder %s27, 1
      %p144 = por %p142, %p143
      %p146 = scmp.ne.s32.totalorder %s129, %s145
      %p147 = scmp.eq.s32.totalorder %s27, 0
      %p148 = por %p146, %p147
      %p149 = scmp.le.s32.totalorder 1, %s21
      %p150 = scmp.lt.s32.totalorder %s21, 3
      %p151 = pnand %p149, %p150
      %p152 = pneg %p151
      // Predicated region
      $region9: #{down_forward.4} parent=5 // pred_check
        _
      $region10: #{down_forward.4} parent=5 // pred_check_branch
        %154 = sbr.rel (%p151) target = $region12
      $region11: #{down_forward.4} parent=5 // pred_region
        %s155 = ssub.s32 %s21, 1
        // Predicated region
        $region13: #{down_forward.4} parent=11 // pred_check
          %p156 = pneg %p68
        $region14: #{down_forward.4} parent=11 // pred_check_branch
          %158 = sbr.rel (%p156) target = $region16
        $region15: #{down_forward.4} parent=11 // pred_region
          %s160 = ssub.s32 288, 288
          %161 = vsyncadd [#allocation6], %s160
          %s162 = sshll.u32 [#allocation5], 4
          %s163 = int_to_ptr.vmem [resolvable:$true] %s162
          %168 = dma.hbm_to_vmem [thread:$0]  %s1, 288, %s163, [#allocation6], 32, 32, 2
        $region16: #{down_forward.4} parent=11 // pred_fallthru
          _
        // Predicated region
        $region17: #{down_forward.4} parent=11 // pred_check
          %p169 = pneg %p89
        $region18: #{down_forward.4} parent=11 // pred_check_branch
          %171 = sbr.rel (%p169) target = $region20
        $region19: #{down_forward.4} parent=11 // pred_region
          %s173 = ssub.s32 1280, 1280
          %174 = vsyncadd [#allocation6], %s173
          %s175 = sshll.u32 [#allocation7], 4
          %s176 = int_to_ptr.vmem [resolvable:$true] %s175
          %181 = dma.hbm_to_vmem [thread:$0]  %s2, 1280, %s176, [#allocation6], 128, 128, 8
        $region20: #{down_forward.4} parent=11 // pred_fallthru
          _
      $region12: #{down_forward.4} parent=5 // pred_fallthru
        _
      %p182 = scmp.lt.s32.totalorder %s21, 2
      // Predicated region
      $region21: #{down_forward.4} parent=5 // pred_check
        %p183 = pneg %p182
      $region22: #{down_forward.4} parent=5 // pred_check_branch
        %185 = sbr.rel (%p183) target = $region24
      $region23: #{down_forward.4} parent=5 // pred_region
        // Predicated region
        $region25: #{down_forward.4} parent=23 // pred_check
          %p186 = pneg %p41
        $region26: #{down_forward.4} parent=23 // pred_check_branch
          %188 = sbr.rel (%p186) target = $region28
        $region27: #{down_forward.4} parent=23 // pred_region
          %s189 = sand.u32 %s31, 1
          %s190 = scalar_lea.sflag [#allocation3], %s189
          %s191 = sand.u32 %s31, 1
          %s192 = smul.addr %s191, 52
          %s193 = scalar_lea.vmem [#allocation2], %s192
          %s195 = ssub.s32 832, 832
          %196 = vsyncadd %s190, %s195
          %s197 = smul.addr %s21, 13
          %s198 = smul.addr %s197, 64
          %s199 = scalar_lea.hbm %s0, %s198
          %s200 = sshll.u32 %s193, 4
          %s201 = int_to_ptr.vmem [resolvable:$true] %s200
          %206 = dma.hbm_to_vmem [thread:$0]  %s199, 832, %s201, %s190, 64, 64, 4
        $region28: #{down_forward.4} parent=23 // pred_fallthru
          _
      $region24: #{down_forward.4} parent=5 // pred_fallthru
        _
      %p207 = scmp.le.s32.totalorder 1, %s21
      %p208 = scmp.lt.s32.totalorder %s21, 3
      %p209 = pnand %p207, %p208
      %p210 = pneg %p209
      // Predicated region
      $region29: #{down_forward.4} parent=5 // pred_check
        _
      $region30: #{down_forward.4} parent=5 // pred_check_branch
        %212 = sbr.rel (%p209) target = $region32
      $region31: #{down_forward.4} parent=5 // pred_region
        %s213 = ssub.s32 %s21, 1
        %s214 = sand.u32 %s34, 1
        %s215 = scalar_lea.sflag [#allocation3], %s214
        %s216 = sand.u32 %s34, 1
        %s217 = smul.addr %s216, 52
        %s218 = scalar_lea.vmem [#allocation2], %s217
        // Predicated region
        $region33: #{down_forward.4} parent=31 // pred_check
          %p219 = pneg %p47
        $region34: #{down_forward.4} parent=31 // pred_check_branch
          %221 = sbr.rel (%p219) target = $region36
        $region35: #{down_forward.4} parent=31 // pred_region
          %222 = dma.done %s215, 832
        $region36: #{down_forward.4} parent=31 // pred_fallthru
          _
        // Predicated region
        $region37: #{down_forward.4} parent=31 // pred_check
          %p223 = pneg %p68
        $region38: #{down_forward.4} parent=31 // pred_check_branch
          %225 = sbr.rel (%p223) target = $region40
        $region39: #{down_forward.4} parent=31 // pred_region
          %226 = dma.done [#allocation6], 288
        $region40: #{down_forward.4} parent=31 // pred_fallthru
          _
        // Predicated region
        $region41: #{down_forward.4} parent=31 // pred_check
          %p227 = pneg %p89
        $region42: #{down_forward.4} parent=31 // pred_check_branch
          %229 = sbr.rel (%p227) target = $region44
        $region43: #{down_forward.4} parent=31 // pred_region
          %230 = dma.done [#allocation6], 1280
        $region44: #{down_forward.4} parent=31 // pred_fallthru
          _
        %s231 = sand.u32 %s34, 1
        %s232 = scalar_lea.sflag [#allocation3], %s231
        %s233 = sand.u32 %s34, 1
        %s234 = smul.addr %s233, 52
        %s235 = scalar_lea.vmem [#allocation2], %s234
        %p236 = pneg %p47
        %p237 = pneg %p44
        %p238 = pneg %p68
        %p239 = pneg %p65
        %p240 = pneg %p89
        %p241 = pneg %p86
        %p242 = pneg %p115
        %p243 = pneg %p112
        %s244 = sand.u32 %s102, 1
        %s245 = scalar_lea.sflag [#allocation4], %s244
        %s246 = sand.u32 %s102, 1
        %s247 = smul.addr %s246, 80
        %s248 = scalar_lea.vmem [#allocation8], %s247
        %p249 = pneg %p141
        %p250 = pneg %p138
        %s251 = sand.u32 %s128, 1
        %s252 = scalar_lea.sflag [#allocation10], %s251
        %s253 = sand.u32 %s128, 1
        %s254 = smul.addr %s253, 2
        %s255 = scalar_lea.vmem [#allocation9], %s254
        %v257 = vld [vmem:[%s218] sm:$0xf]
        %v258 = vld [vmem:[%s218 + $0x4] sm:$0xf]
        %v259 = vld [vmem:[%s218 + $0x8] sm:$0xf]
        %v260 = vld [vmem:[%s218 + $0xc] sm:$0xf]
        %v261 = vld [vmem:[%s218 + $0x10] sm:$0xf]
        %v262 = vld [vmem:[%s218 + $0x14] sm:$0xf]
        %v263 = vld [vmem:[%s218 + $0x18] sm:$0xf]
        %v264 = vld [vmem:[%s218 + $0x1c] sm:$0xf]
        %v265 = vld [vmem:[%s218 + $0x20] sm:$0xf]
        %v266 = vld [vmem:[%s218 + $0x24] sm:$0xf]
        %v267 = vld [vmem:[#allocation5] sm:$0x3]
        %v268 = vld [vmem:[%s218 + $0x28] sm:$0x1]
        %s269 = scalar_lea.vmem [#allocation5], 2
        %v270 = vld [vmem:[%s269] sm:$0x3]
        %v282 = vunpack.c.l.b16 %v257
        %v283 = vunpack.c.l.b16 %v258
        %v284 = vunpack.c.l.b16 %v259
        %v285 = vunpack.c.l.b16 %v260
        %v286 = vunpack.c.l.b16 %v261
        %v287 = vunpack.c.l.b16 %v262
        %v288 = vunpack.c.l.b16 %v263
        %v289 = vunpack.c.l.b16 %v264
        %v290 = vunpack.c.l.b16 %v265
        %v291 = vunpack.c.l.b16 %v266
        %v292 = vunpack.c.l.b16 %v268
        %v293 = vpack.c.b16 %v283, %v282
        %v294 = vpack.c.b16 %v285, %v284
        %v295 = vpack.c.b16 %v287, %v286
        %v296 = vpack.c.b16 %v289, %v288
        %v297 = vpack.c.b16 %v291, %v290
        %v298 = vpack.c.b16 %v292, %v292
        %vm299 = vsmask.f32 7424
        %v301 = vshrl.u32 %v293, 16
        %v303 = vshll.u32 %v293, 16
        %v305 = vrot.slane %v303, 1
        %v306 = vor.u32 %v301, %v305
        %v308 = vshll.u32 %v294, 16
        %v310 = vrot.slane %v308, 1
        %v311 = vsel %vm299, %v306, %v310
        %v312 = vshrl.u32 %v294, 16
        %v314 = vor.u32 %v312, %v310
        %v316 = vshll.u32 %v295, 16
        %v318 = vrot.slane %v316, 1
        %v319 = vsel %vm299, %v314, %v318
        %v320 = vshrl.u32 %v295, 16
        %v322 = vor.u32 %v320, %v318
        %v324 = vshll.u32 %v296, 16
        %v326 = vrot.slane %v324, 1
        %v327 = vsel %vm299, %v322, %v326
        %v328 = vshrl.u32 %v296, 16
        %v330 = vor.u32 %v328, %v326
        %v332 = vshll.u32 %v297, 16
        %v334 = vrot.slane %v332, 1
        %v335 = vsel %vm299, %v330, %v334
        %v336 = vshrl.u32 %v297, 16
        %v338 = vor.u32 %v336, %v334
        %v340 = vshll.u32 %v298, 16
        %v342 = vrot.slane %v340, 1
        %v343 = vsel %vm299, %v338, %v342
        %vm344 = vcmask 31744
        %v346 = vsel %vm344, %v311, 0
        %v349 = vsel %vm344, %v319, 0
        %v352 = vsel %vm344, %v327, 0
        %v355 = vsel %vm344, %v335, 0
        %v358 = vsel %vm344, %v343, 0
        %vm360 = vcmask 1041408
        %v362 = vsel %vm360, %v270, 0
        %364 = vmatprep.subr.bf16.mxu0 0
        %365 = vmatpush1.bf16.msra.mxu0 %v362
        %366 = vmatprep.subr.bf16.mxu0 0
        %367 = vmatpush1.bf16.msra.mxu0 0
        %368 = vmatprep.subr.bf16.mxu0 0
        %369 = vmatpush1.bf16.msra.mxu0 0
        %370 = vmatprep.subr.bf16.mxu0 0
        %371 = vmatpush1.bf16.msra.mxu0 0
        %372 = vmatprep.subr.bf16.mxu0 0
        %373 = vmatpush1.bf16.msra.mxu0 0
        %374 = vmatprep.subr.bf16.mxu0 0
        %375 = vmatpush1.bf16.msra.mxu0 0
        %376 = vmatprep.subr.bf16.mxu0 0
        %377 = vmatpush1.bf16.msra.mxu0 0
        %378 = vmatprep.subr.bf16.mxu0 0
        %379 = vmatpush1.bf16.msra.mxu0 0
        %380 = vmatprep.subr.bf16.mxu0 0
        %381 = vmatpush1.bf16.msra.mxu0 0
        %382 = vmatprep.subr.bf16.mxu0 0
        %383 = vmatpush1.bf16.msra.mxu0 0
        %384 = vmatprep.subr.bf16.mxu0 0
        %385 = vmatpush1.bf16.msra.mxu0 0
        %386 = vmatprep.subr.bf16.mxu0 0
        %387 = vmatpush1.bf16.msra.mxu0 0
        %388 = vmatprep.subr.bf16.mxu0 0
        %389 = vmatpush1.bf16.msra.mxu0 0
        %390 = vmatprep.subr.bf16.mxu0 0
        %391 = vmatpush1.bf16.msra.mxu0 0
        %392 = vmatprep.subr.bf16.mxu0 0
        %393 = vmatpush1.bf16.msra.mxu0 0
        %394 = vmatprep.subr.bf16.mxu0 0
        %395 = vmatpush1.bf16.msra.mxu0 0
        %396 = vmatprep.mubr.bf16.mxu0 0
        %397 = vmatmul.mubr.bf16.gmra.mrb[0].mxu0 %v346
        %v398 = vpop.f32.mrb[0].mxu0
        %v399 = vadd.f32 0.0, %v398
        %v400 = vpop.f32.mrb[0].mxu0
        %v401 = vpop.f32.mrb[0].mxu0
        %v402 = vadd.f32 0.0, %v401
        %v403 = vpop.f32.mrb[0].mxu0
        %404 = vmatprep.mubr.bf16.mxu0 0
        %405 = vmatmul.mubr.bf16.gmra.mrb[0].mxu0 %v349
        %v406 = vpop.f32.mrb[0].mxu0
        %v407 = vadd.f32 0.0, %v406
        %v408 = vpop.f32.mrb[0].mxu0
        %v409 = vpop.f32.mrb[0].mxu0
        %v410 = vadd.f32 0.0, %v409
        %v411 = vpop.f32.mrb[0].mxu0
        %412 = vmatprep.mubr.bf16.mxu0 0
        %413 = vmatmul.mubr.bf16.gmra.mrb[0].mxu0 %v352
        %v414 = vpop.f32.mrb[0].mxu0
        %v415 = vadd.f32 0.0, %v414
        %v416 = vpop.f32.mrb[0].mxu0
        %v417 = vpop.f32.mrb[0].mxu0
        %v418 = vadd.f32 0.0, %v417
        %v419 = vpop.f32.mrb[0].mxu0
        %420 = vmatprep.mubr.bf16.mxu0 0
        %421 = vmatmul.mubr.bf16.gmra.mrb[0].mxu0 %v355
        %v422 = vpop.f32.mrb[0].mxu0
        %v423 = vadd.f32 0.0, %v422
        %v424 = vpop.f32.mrb[0].mxu0
        %v425 = vpop.f32.mrb[0].mxu0
        %v426 = vadd.f32 0.0, %v425
        %v427 = vpop.f32.mrb[0].mxu0
        %428 = vmatprep.mubr.bf16.mxu0 0
        %429 = vmatmul.mubr.bf16.gmra.mrb[0].mxu0 %v358
        %v430 = vpop.f32.mrb[0].mxu0
        %v431 = vadd.f32 0.0, %v430
        %v432 = vpop.f32.mrb[0].mxu0
        %v433 = vpop.f32.mrb[0].mxu0
        %v434 = vadd.f32 0.0, %v433
        %v435 = vpop.f32.mrb[0].mxu0
        %436 = vdwg.mxu0
        %v437 = vsel %vm344, %v293, 0
        %v439 = vsel %vm344, %v294, 0
        %v441 = vsel %vm344, %v295, 0
        %v443 = vsel %vm344, %v296, 0
        %v445 = vsel %vm344, %v297, 0
        %v448 = vsel %vm360, %v267, 0
        %450 = vmatprep.subr.bf16.mxu0 0
        %451 = vmatpush1.bf16.msra.mxu0 %v448
        %452 = vmatprep.subr.bf16.mxu0 0
        %453 = vmatpush1.bf16.msra.mxu0 0
        %454 = vmatprep.subr.bf16.mxu0 0
        %455 = vmatpush1.bf16.msra.mxu0 0
        %456 = vmatprep.subr.bf16.mxu0 0
        %457 = vmatpush1.bf16.msra.mxu0 0
        %458 = vmatprep.subr.bf16.mxu0 0
        %459 = vmatpush1.bf16.msra.mxu0 0
        %460 = vmatprep.subr.bf16.mxu0 0
        %461 = vmatpush1.bf16.msra.mxu0 0
        %462 = vmatprep.subr.bf16.mxu0 0
        %463 = vmatpush1.bf16.msra.mxu0 0
        %464 = vmatprep.subr.bf16.mxu0 0
        %465 = vmatpush1.bf16.msra.mxu0 0
        %466 = vmatprep.subr.bf16.mxu0 0
        %467 = vmatpush1.bf16.msra.mxu0 0
        %468 = vmatprep.subr.bf16.mxu0 0
        %469 = vmatpush1.bf16.msra.mxu0 0
        %470 = vmatprep.subr.bf16.mxu0 0
        %471 = vmatpush1.bf16.msra.mxu0 0
        %472 = vmatprep.subr.bf16.mxu0 0
        %473 = vmatpush1.bf16.msra.mxu0 0
        %474 = vmatprep.subr.bf16.mxu0 0
        %475 = vmatpush1.bf16.msra.mxu0 0
        %476 = vmatprep.subr.bf16.mxu0 0
        %477 = vmatpush1.bf16.msra.mxu0 0
        %478 = vmatprep.subr.bf16.mxu0 0
        %479 = vmatpush1.bf16.msra.mxu0 0
        %480 = vmatprep.subr.bf16.mxu0 0
        %481 = vmatpush1.bf16.msra.mxu0 0
        %482 = vmatprep.mubr.bf16.mxu0 0
        %483 = vmatmul.mubr.bf16.gmra.mrb[0].mxu0 %v437
        %v484 = vpop.f32.mrb[0].mxu0
        %v485 = vadd.f32 %v399, %v484
        %v486 = vpop.f32.mrb[0].mxu0
        %v487 = vpop.f32.mrb[0].mxu0
        %v488 = vadd.f32 %v402, %v487
        %v489 = vpop.f32.mrb[0].mxu0
        %490 = vmatprep.mubr.bf16.mxu0 0
        %491 = vmatmul.mubr.bf16.gmra.mrb[0].mxu0 %v439
        %v492 = vpop.f32.mrb[0].mxu0
        %v493 = vadd.f32 %v407, %v492
        %v494 = vpop.f32.mrb[0].mxu0
        %v495 = vpop.f32.mrb[0].mxu0
        %v496 = vadd.f32 %v410, %v495
        %v497 = vpop.f32.mrb[0].mxu0
        %498 = vmatprep.mubr.bf16.mxu0 0
        %499 = vmatmul.mubr.bf16.gmra.mrb[0].mxu0 %v441
        %v500 = vpop.f32.mrb[0].mxu0
        %v501 = vadd.f32 %v415, %v500
        %v502 = vpop.f32.mrb[0].mxu0
        %v503 = vpop.f32.mrb[0].mxu0
        %v504 = vadd.f32 %v418, %v503
        %v505 = vpop.f32.mrb[0].mxu0
        %506 = vmatprep.mubr.bf16.mxu0 0
        %507 = vmatmul.mubr.bf16.gmra.mrb[0].mxu0 %v443
        %v508 = vpop.f32.mrb[0].mxu0
        %v509 = vadd.f32 %v423, %v508
        %v510 = vpop.f32.mrb[0].mxu0
        %v511 = vpop.f32.mrb[0].mxu0
        %v512 = vadd.f32 %v426, %v511
        %v513 = vpop.f32.mrb[0].mxu0
        %514 = vmatprep.mubr.bf16.mxu0 0
        %515 = vmatmul.mubr.bf16.gmra.mrb[0].mxu0 %v445
        %v516 = vpop.f32.mrb[0].mxu0
        %v517 = vadd.f32 %v431, %v516
        %v518 = vpop.f32.mrb[0].mxu0
        %v519 = vpop.f32.mrb[0].mxu0
        %v520 = vadd.f32 %v434, %v519
        %v521 = vpop.f32.mrb[0].mxu0
        %522 = vdwg.mxu0
        %v523 = vld [vmem:[%s218] sm:$0xe]
        %s524 = scalar_lea.vmem [#allocation5], 4
        %v525 = vld [vmem:[%s524] sm:$0x3]
        %v527 = vunpack.c.l.b16 %v523
        %v528 = vpack.c.b16 %v283, %v527
        %vm529 = vcmask 1046528
        %v530 = vrot.slane %v528, 1
        %v531 = vrot.slane %v294, 1
        %v532 = vsel %vm529, %v530, %v531
        %v533 = vrot.slane %v295, 1
        %v534 = vsel %vm529, %v531, %v533
        %v535 = vrot.slane %v296, 1
        %v536 = vsel %vm529, %v533, %v535
        %v537 = vrot.slane %v297, 1
        %v538 = vsel %vm529, %v535, %v537
        %v539 = vrot.slane %v298, 1
        %v540 = vsel %vm529, %v537, %v539
        %v542 = vsel %vm344, %v532, 0
        %v545 = vsel %vm344, %v534, 0
        %v548 = vsel %vm344, %v536, 0
        %v551 = vsel %vm344, %v538, 0
        %v554 = vsel %vm344, %v540, 0
        %v557 = vsel %vm360, %v525, 0
        %559 = vmatprep.subr.bf16.mxu0 0
        %560 = vmatpush1.bf16.msra.mxu0 %v557
        %561 = vmatprep.subr.bf16.mxu0 0
        %562 = vmatpush1.bf16.msra.mxu0 0
        %563 = vmatprep.subr.bf16.mxu0 0
        %564 = vmatpush1.bf16.msra.mxu0 0
        %565 = vmatprep.subr.bf16.mxu0 0
        %566 = vmatpush1.bf16.msra.mxu0 0
        %567 = vmatprep.subr.bf16.mxu0 0
        %568 = vmatpush1.bf16.msra.mxu0 0
        %569 = vmatprep.subr.bf16.mxu0 0
        %570 = vmatpush1.bf16.msra.mxu0 0
        %571 = vmatprep.subr.bf16.mxu0 0
        %572 = vmatpush1.bf16.msra.mxu0 0
        %573 = vmatprep.subr.bf16.mxu0 0
        %574 = vmatpush1.bf16.msra.mxu0 0
        %575 = vmatprep.subr.bf16.mxu0 0
        %576 = vmatpush1.bf16.msra.mxu0 0
        %577 = vmatprep.subr.bf16.mxu0 0
        %578 = vmatpush1.bf16.msra.mxu0 0
        %579 = vmatprep.subr.bf16.mxu0 0
        %580 = vmatpush1.bf16.msra.mxu0 0
        %581 = vmatprep.subr.bf16.mxu0 0
        %582 = vmatpush1.bf16.msra.mxu0 0
        %583 = vmatprep.subr.bf16.mxu0 0
        %584 = vmatpush1.bf16.msra.mxu0 0
        %585 = vmatprep.subr.bf16.mxu0 0
        %586 = vmatpush1.bf16.msra.mxu0 0
        %587 = vmatprep.subr.bf16.mxu0 0
        %588 = vmatpush1.bf16.msra.mxu0 0
        %589 = vmatprep.subr.bf16.mxu0 0
        %590 = vmatpush1.bf16.msra.mxu0 0
        %591 = vmatprep.mubr.bf16.mxu0 0
        %592 = vmatmul.mubr.bf16.gmra.mrb[0].mxu0 %v542
        %v593 = vpop.f32.mrb[0].mxu0
        %v594 = vadd.f32 0.0, %v593
        %v595 = vpop.f32.mrb[0].mxu0
        %v596 = vpop.f32.mrb[0].mxu0
        %v597 = vadd.f32 0.0, %v596
        %v598 = vpop.f32.mrb[0].mxu0
        %599 = vmatprep.mubr.bf16.mxu0 0
        %600 = vmatmul.mubr.bf16.gmra.mrb[0].mxu0 %v545
        %v601 = vpop.f32.mrb[0].mxu0
        %v602 = vadd.f32 0.0, %v601
        %v603 = vpop.f32.mrb[0].mxu0
        %v604 = vpop.f32.mrb[0].mxu0
        %v605 = vadd.f32 0.0, %v604
        %v606 = vpop.f32.mrb[0].mxu0
        %607 = vmatprep.mubr.bf16.mxu0 0
        %608 = vmatmul.mubr.bf16.gmra.mrb[0].mxu0 %v548
        %v609 = vpop.f32.mrb[0].mxu0
        %v610 = vadd.f32 0.0, %v609
        %v611 = vpop.f32.mrb[0].mxu0
        %v612 = vpop.f32.mrb[0].mxu0
        %v613 = vadd.f32 0.0, %v612
        %v614 = vpop.f32.mrb[0].mxu0
        %615 = vmatprep.mubr.bf16.mxu0 0
        %616 = vmatmul.mubr.bf16.gmra.mrb[0].mxu0 %v551
        %v617 = vpop.f32.mrb[0].mxu0
        %v618 = vadd.f32 0.0, %v617
        %v619 = vpop.f32.mrb[0].mxu0
        %v620 = vpop.f32.mrb[0].mxu0
        %v621 = vadd.f32 0.0, %v620
        %v622 = vpop.f32.mrb[0].mxu0
        %623 = vmatprep.mubr.bf16.mxu0 0
        %624 = vmatmul.mubr.bf16.gmra.mrb[0].mxu0 %v554
        %v625 = vpop.f32.mrb[0].mxu0
        %v626 = vadd.f32 0.0, %v625
        %v627 = vpop.f32.mrb[0].mxu0
        %v628 = vpop.f32.mrb[0].mxu0
        %v629 = vadd.f32 0.0, %v628
        %v630 = vpop.f32.mrb[0].mxu0
        %631 = vdwg.mxu0
        %v632 = vadd.f32 %v485, %v594
        %v633 = vadd.f32 %v488, %v597
        %v634 = vadd.f32 %v493, %v602
        %v635 = vadd.f32 %v496, %v605
        %v636 = vadd.f32 %v501, %v610
        %v637 = vadd.f32 %v504, %v613
        %v638 = vadd.f32 %v509, %v618
        %v639 = vadd.f32 %v512, %v621
        %v640 = vadd.f32 %v517, %v626
        %v641 = vadd.f32 %v520, %v629
        %v642 = vld [vmem:[%s218 + $0x4] sm:$0xe]
        %v643 = vld [vmem:[%s218 + $0x8] sm:$0xf]
        %v644 = vld [vmem:[%s218 + $0xc] sm:$0xf]
        %v645 = vld [vmem:[%s218 + $0x10] sm:$0xf]
        %v646 = vld [vmem:[%s218 + $0x14] sm:$0xf]
        %v647 = vld [vmem:[%s218 + $0x18] sm:$0xf]
        %v648 = vld [vmem:[%s218 + $0x1c] sm:$0xf]
        %v649 = vld [vmem:[%s218 + $0x20] sm:$0xf]
        %v650 = vld [vmem:[%s218 + $0x24] sm:$0xf]
        %v651 = vld [vmem:[%s218 + $0x28] sm:$0xf]
        %v652 = vld [vmem:[%s218 + $0x2c] sm:$0x1]
        %s653 = scalar_lea.vmem [#allocation5], 6
        %v654 = vld [vmem:[%s653] sm:$0x3]
        %v666 = vunpack.c.l.b16 %v642
        %v667 = vunpack.c.l.b16 %v643
        %v668 = vunpack.c.l.b16 %v644
        %v669 = vunpack.c.l.b16 %v645
        %v670 = vunpack.c.l.b16 %v646
        %v671 = vunpack.c.l.b16 %v647
        %v672 = vunpack.c.l.b16 %v648
        %v673 = vunpack.c.l.b16 %v649
        %v674 = vunpack.c.l.b16 %v650
        %v675 = vunpack.c.l.b16 %v651
        %v676 = vunpack.c.l.b16 %v652
        %v677 = vpack.c.b16 %v667, %v666
        %v678 = vpack.c.b16 %v669, %v668
        %v679 = vpack.c.b16 %v671, %v670
        %v680 = vpack.c.b16 %v673, %v672
        %v681 = vpack.c.b16 %v675, %v674
        %v682 = vpack.c.b16 %v676, %v676
        %v683 = vrot.slane %v677, 1
        %v684 = vrot.slane %v678, 1
        %v685 = vsel %vm529, %v683, %v684
        %v686 = vrot.slane %v679, 1
        %v687 = vsel %vm529, %v684, %v686
        %v688 = vrot.slane %v680, 1
        %v689 = vsel %vm529, %v686, %v688
        %v690 = vrot.slane %v681, 1
        %v691 = vsel %vm529, %v688, %v690
        %v692 = vrot.slane %v682, 1
        %v693 = vsel %vm529, %v690, %v692
        %v695 = vsel %vm344, %v685, 0
        %v698 = vsel %vm344, %v687, 0
        %v701 = vsel %vm344, %v689, 0
        %v704 = vsel %vm344, %v691, 0
        %v707 = vsel %vm344, %v693, 0
        %v710 = vsel %vm360, %v654, 0
        %712 = vmatprep.subr.bf16.mxu0 0
        %713 = vmatpush1.bf16.msra.mxu0 %v710
        %714 = vmatprep.subr.bf16.mxu0 0
        %715 = vmatpush1.bf16.msra.mxu0 0
        %716 = vmatprep.subr.bf16.mxu0 0
        %717 = vmatpush1.bf16.msra.mxu0 0
        %718 = vmatprep.subr.bf16.mxu0 0
        %719 = vmatpush1.bf16.msra.mxu0 0
        %720 = vmatprep.subr.bf16.mxu0 0
        %721 = vmatpush1.bf16.msra.mxu0 0
        %722 = vmatprep.subr.bf16.mxu0 0
        %723 = vmatpush1.bf16.msra.mxu0 0
        %724 = vmatprep.subr.bf16.mxu0 0
        %725 = vmatpush1.bf16.msra.mxu0 0
        %726 = vmatprep.subr.bf16.mxu0 0
        %727 = vmatpush1.bf16.msra.mxu0 0
        %728 = vmatprep.subr.bf16.mxu0 0
        %729 = vmatpush1.bf16.msra.mxu0 0
        %730 = vmatprep.subr.bf16.mxu0 0
        %731 = vmatpush1.bf16.msra.mxu0 0
        %732 = vmatprep.subr.bf16.mxu0 0
        %733 = vmatpush1.bf16.msra.mxu0 0
        %734 = vmatprep.subr.bf16.mxu0 0
        %735 = vmatpush1.bf16.msra.mxu0 0
        %736 = vmatprep.subr.bf16.mxu0 0
        %737 = vmatpush1.bf16.msra.mxu0 0
        %738 = vmatprep.subr.bf16.mxu0 0
        %739 = vmatpush1.bf16.msra.mxu0 0
        %740 = vmatprep.subr.bf16.mxu0 0
        %741 = vmatpush1.bf16.msra.mxu0 0
        %742 = vmatprep.subr.bf16.mxu0 0
        %743 = vmatpush1.bf16.msra.mxu0 0
        %744 = vmatprep.mubr.bf16.mxu0 0
        %745 = vmatmul.mubr.bf16.gmra.mrb[0].mxu0 %v695
        %v746 = vpop.f32.mrb[0].mxu0
        %v747 = vadd.f32 0.0, %v746
        %v748 = vpop.f32.mrb[0].mxu0
        %v749 = vpop.f32.mrb[0].mxu0
        %v750 = vadd.f32 0.0, %v749
        %v751 = vpop.f32.mrb[0].mxu0
        %752 = vmatprep.mubr.bf16.mxu0 0
        %753 = vmatmul.mubr.bf16.gmra.mrb[0].mxu0 %v698
        %v754 = vpop.f32.mrb[0].mxu0
        %v755 = vadd.f32 0.0, %v754
        %v756 = vpop.f32.mrb[0].mxu0
        %v757 = vpop.f32.mrb[0].mxu0
        %v758 = vadd.f32 0.0, %v757
        %v759 = vpop.f32.mrb[0].mxu0
        %760 = vmatprep.mubr.bf16.mxu0 0
        %761 = vmatmul.mubr.bf16.gmra.mrb[0].mxu0 %v701
        %v762 = vpop.f32.mrb[0].mxu0
        %v763 = vadd.f32 0.0, %v762
        %v764 = vpop.f32.mrb[0].mxu0
        %v765 = vpop.f32.mrb[0].mxu0
        %v766 = vadd.f32 0.0, %v765
        %v767 = vpop.f32.mrb[0].mxu0
        %768 = vmatprep.mubr.bf16.mxu0 0
        %769 = vmatmul.mubr.bf16.gmra.mrb[0].mxu0 %v704
        %v770 = vpop.f32.mrb[0].mxu0
        %v771 = vadd.f32 0.0, %v770
        %v772 = vpop.f32.mrb[0].mxu0
        %v773 = vpop.f32.mrb[0].mxu0
        %v774 = vadd.f32 0.0, %v773
        %v775 = vpop.f32.mrb[0].mxu0
        %776 = vmatprep.mubr.bf16.mxu0 0
        %777 = vmatmul.mubr.bf16.gmra.mrb[0].mxu0 %v707
        %v778 = vpop.f32.mrb[0].mxu0
        %v779 = vadd.f32 0.0, %v778
        %v780 = vpop.f32.mrb[0].mxu0
        %v781 = vpop.f32.mrb[0].mxu0
        %v782 = vadd.f32 0.0, %v781
        %v783 = vpop.f32.mrb[0].mxu0
        %784 = vdwg.mxu0
        %v785 = vadd.f32 %v632, %v747
        %v786 = vadd.f32 %v633, %v750
        %v787 = vadd.f32 %v634, %v755
        %v788 = vadd.f32 %v635, %v758
        %v789 = vadd.f32 %v636, %v763
        %v790 = vadd.f32 %v637, %v766
        %v791 = vadd.f32 %v638, %v771
        %v792 = vadd.f32 %v639, %v774
        %v793 = vadd.f32 %v640, %v779
        %v794 = vadd.f32 %v641, %v782
        %v795 = vld [vmem:[%s218 + $0x2c] sm:$0x3]
        %s796 = scalar_lea.vmem [#allocation5], 8
        %v797 = vld [vmem:[%s796] sm:$0x3]
        %v799 = vunpack.c.l.b16 %v795
        %v800 = vpack.c.b16 %v799, %v799
        %vm801 = vsmask.f32 6400
        %v803 = vshrl.u32 %v677, 16
        %v805 = vrot.slane %v803, 1
        %v806 = vshll.u32 %v677, 16
        %v808 = vrot.slane %v806, 2
        %v809 = vor.u32 %v805, %v808
        %v811 = vshrl.u32 %v678, 16
        %v813 = vrot.slane %v811, 1
        %v814 = vshll.u32 %v678, 16
        %v816 = vrot.slane %v814, 2
        %v817 = vor.u32 %v813, %v816
        %v818 = vsel %vm801, %v809, %v817
        %v820 = vshrl.u32 %v679, 16
        %v822 = vrot.slane %v820, 1
        %v823 = vshll.u32 %v679, 16
        %v825 = vrot.slane %v823, 2
        %v826 = vor.u32 %v822, %v825
        %v827 = vsel %vm801, %v817, %v826
        %v829 = vshrl.u32 %v680, 16
        %v831 = vrot.slane %v829, 1
        %v832 = vshll.u32 %v680, 16
        %v834 = vrot.slane %v832, 2
        %v835 = vor.u32 %v831, %v834
        %v836 = vsel %vm801, %v826, %v835
        %v838 = vshrl.u32 %v681, 16
        %v840 = vrot.slane %v838, 1
        %v841 = vshll.u32 %v681, 16
        %v843 = vrot.slane %v841, 2
        %v844 = vor.u32 %v840, %v843
        %v845 = vsel %vm801, %v835, %v844
        %v847 = vshrl.u32 %v800, 16
        %v849 = vrot.slane %v847, 1
        %v850 = vshll.u32 %v800, 16
        %v852 = vrot.slane %v850, 2
        %v853 = vor.u32 %v849, %v852
        %v854 = vsel %vm801, %v844, %v853
        %v856 = vsel %vm344, %v818, 0
        %v859 = vsel %vm344, %v827, 0
        %v862 = vsel %vm344, %v836, 0
        %v865 = vsel %vm344, %v845, 0
        %v868 = vsel %vm344, %v854, 0
        %v871 = vsel %vm360, %v797, 0
        %873 = vmatprep.subr.bf16.mxu0 0
        %874 = vmatpush1.bf16.msra.mxu0 %v871
        %875 = vmatprep.subr.bf16.mxu0 0
        %876 = vmatpush1.bf16.msra.mxu0 0
        %877 = vmatprep.subr.bf16.mxu0 0
        %878 = vmatpush1.bf16.msra.mxu0 0
        %879 = vmatprep.subr.bf16.mxu0 0
        %880 = vmatpush1.bf16.msra.mxu0 0
        %881 = vmatprep.subr.bf16.mxu0 0
        %882 = vmatpush1.bf16.msra.mxu0 0
        %883 = vmatprep.subr.bf16.mxu0 0
        %884 = vmatpush1.bf16.msra.mxu0 0
        %885 = vmatprep.subr.bf16.mxu0 0
        %886 = vmatpush1.bf16.msra.mxu0 0
        %887 = vmatprep.subr.bf16.mxu0 0
        %888 = vmatpush1.bf16.msra.mxu0 0
        %889 = vmatprep.subr.bf16.mxu0 0
        %890 = vmatpush1.bf16.msra.mxu0 0
        %891 = vmatprep.subr.bf16.mxu0 0
        %892 = vmatpush1.bf16.msra.mxu0 0
        %893 = vmatprep.subr.bf16.mxu0 0
        %894 = vmatpush1.bf16.msra.mxu0 0
        %895 = vmatprep.subr.bf16.mxu0 0
        %896 = vmatpush1.bf16.msra.mxu0 0
        %897 = vmatprep.subr.bf16.mxu0 0
        %898 = vmatpush1.bf16.msra.mxu0 0
        %899 = vmatprep.subr.bf16.mxu0 0
        %900 = vmatpush1.bf16.msra.mxu0 0
        %901 = vmatprep.subr.bf16.mxu0 0
        %902 = vmatpush1.bf16.msra.mxu0 0
        %903 = vmatprep.subr.bf16.mxu0 0
        %904 = vmatpush1.bf16.msra.mxu0 0
        %905 = vmatprep.mubr.bf16.mxu0 0
        %906 = vmatmul.mubr.bf16.gmra.mrb[0].mxu0 %v856
        %v907 = vpop.f32.mrb[0].mxu0
        %v908 = vadd.f32 0.0, %v907
        %v909 = vpop.f32.mrb[0].mxu0
        %v910 = vpop.f32.mrb[0].mxu0
        %v911 = vadd.f32 0.0, %v910
        %v912 = vpop.f32.mrb[0].mxu0
        %913 = vmatprep.mubr.bf16.mxu0 0
        %914 = vmatmul.mubr.bf16.gmra.mrb[0].mxu0 %v859
        %v915 = vpop.f32.mrb[0].mxu0
        %v916 = vadd.f32 0.0, %v915
        %v917 = vpop.f32.mrb[0].mxu0
        %v918 = vpop.f32.mrb[0].mxu0
        %v919 = vadd.f32 0.0, %v918
        %v920 = vpop.f32.mrb[0].mxu0
        %921 = vmatprep.mubr.bf16.mxu0 0
        %922 = vmatmul.mubr.bf16.gmra.mrb[0].mxu0 %v862
        %v923 = vpop.f32.mrb[0].mxu0
        %v924 = vadd.f32 0.0, %v923
        %v925 = vpop.f32.mrb[0].mxu0
        %v926 = vpop.f32.mrb[0].mxu0
        %v927 = vadd.f32 0.0, %v926
        %v928 = vpop.f32.mrb[0].mxu0
        %929 = vmatprep.mubr.bf16.mxu0 0
        %930 = vmatmul.mubr.bf16.gmra.mrb[0].mxu0 %v865
        %v931 = vpop.f32.mrb[0].mxu0
        %v932 = vadd.f32 0.0, %v931
        %v933 = vpop.f32.mrb[0].mxu0
        %v934 = vpop.f32.mrb[0].mxu0
        %v935 = vadd.f32 0.0, %v934
        %v936 = vpop.f32.mrb[0].mxu0
        %937 = vmatprep.mubr.bf16.mxu0 0
        %938 = vmatmul.mubr.bf16.gmra.mrb[0].mxu0 %v868
        %v939 = vpop.f32.mrb[0].mxu0
        %v940 = vadd.f32 0.0, %v939
        %v941 = vpop.f32.mrb[0].mxu0
        %v942 = vpop.f32.mrb[0].mxu0
        %v943 = vadd.f32 0.0, %v942
        %v944 = vpop.f32.mrb[0].mxu0
        %945 = vdwg.mxu0
        %v946 = vadd.f32 %v785, %v908
        %v947 = vadd.f32 %v786, %v911
        %v948 = vadd.f32 %v787, %v916
        %v949 = vadd.f32 %v788, %v919
        %v950 = vadd.f32 %v789, %v924
        %v951 = vadd.f32 %v790, %v927
        %v952 = vadd.f32 %v791, %v932
        %v953 = vadd.f32 %v792, %v935
        %v954 = vadd.f32 %v793, %v940
        %v955 = vadd.f32 %v794, %v943
        %v956 = vld [vmem:[%s218 + $0x4] sm:$0xc]
        %s957 = scalar_lea.vmem [#allocation5], 10
        %v958 = vld [vmem:[%s957] sm:$0x3]
        %v960 = vunpack.c.l.b16 %v956
        %v961 = vpack.c.b16 %v667, %v960
        %vm962 = vcmask 1045504
        %v963 = vrot.slane %v961, 2
        %v964 = vrot.slane %v678, 2
        %v965 = vsel %vm962, %v963, %v964
        %v966 = vrot.slane %v679, 2
        %v967 = vsel %vm962, %v964, %v966
        %v968 = vrot.slane %v680, 2
        %v969 = vsel %vm962, %v966, %v968
        %v970 = vrot.slane %v681, 2
        %v971 = vsel %vm962, %v968, %v970
        %v972 = vrot.slane %v800, 2
        %v973 = vsel %vm962, %v970, %v972
        %v975 = vsel %vm344, %v965, 0
        %v978 = vsel %vm344, %v967, 0
        %v981 = vsel %vm344, %v969, 0
        %v984 = vsel %vm344, %v971, 0
        %v987 = vsel %vm344, %v973, 0
        %v990 = vsel %vm360, %v958, 0
        %992 = vmatprep.subr.bf16.mxu0 0
        %993 = vmatpush1.bf16.msra.mxu0 %v990
        %994 = vmatprep.subr.bf16.mxu0 0
        %995 = vmatpush1.bf16.msra.mxu0 0
        %996 = vmatprep.subr.bf16.mxu0 0
        %997 = vmatpush1.bf16.msra.mxu0 0
        %998 = vmatprep.subr.bf16.mxu0 0
        %999 = vmatpush1.bf16.msra.mxu0 0
        %1000 = vmatprep.subr.bf16.mxu0 0
        %1001 = vmatpush1.bf16.msra.mxu0 0
        %1002 = vmatprep.subr.bf16.mxu0 0
        %1003 = vmatpush1.bf16.msra.mxu0 0
        %1004 = vmatprep.subr.bf16.mxu0 0
        %1005 = vmatpush1.bf16.msra.mxu0 0
        %1006 = vmatprep.subr.bf16.mxu0 0
        %1007 = vmatpush1.bf16.msra.mxu0 0
        %1008 = vmatprep.subr.bf16.mxu0 0
        %1009 = vmatpush1.bf16.msra.mxu0 0
        %1010 = vmatprep.subr.bf16.mxu0 0
        %1011 = vmatpush1.bf16.msra.mxu0 0
        %1012 = vmatprep.subr.bf16.mxu0 0
        %1013 = vmatpush1.bf16.msra.mxu0 0
        %1014 = vmatprep.subr.bf16.mxu0 0
        %1015 = vmatpush1.bf16.msra.mxu0 0
        %1016 = vmatprep.subr.bf16.mxu0 0
        %1017 = vmatpush1.bf16.msra.mxu0 0
        %1018 = vmatprep.subr.bf16.mxu0 0
        %1019 = vmatpush1.bf16.msra.mxu0 0
        %1020 = vmatprep.subr.bf16.mxu0 0
        %1021 = vmatpush1.bf16.msra.mxu0 0
        %1022 = vmatprep.subr.bf16.mxu0 0
        %1023 = vmatpush1.bf16.msra.mxu0 0
        %1024 = vmatprep.mubr.bf16.mxu0 0
        %1025 = vmatmul.mubr.bf16.gmra.mrb[0].mxu0 %v975
        %v1026 = vpop.f32.mrb[0].mxu0
        %v1027 = vadd.f32 0.0, %v1026
        %v1028 = vpop.f32.mrb[0].mxu0
        %v1029 = vpop.f32.mrb[0].mxu0
        %v1030 = vadd.f32 0.0, %v1029
        %v1031 = vpop.f32.mrb[0].mxu0
        %1032 = vmatprep.mubr.bf16.mxu0 0
        %1033 = vmatmul.mubr.bf16.gmra.mrb[0].mxu0 %v978
        %v1034 = vpop.f32.mrb[0].mxu0
        %v1035 = vadd.f32 0.0, %v1034
        %v1036 = vpop.f32.mrb[0].mxu0
        %v1037 = vpop.f32.mrb[0].mxu0
        %v1038 = vadd.f32 0.0, %v1037
        %v1039 = vpop.f32.mrb[0].mxu0
        %1040 = vmatprep.mubr.bf16.mxu0 0
        %1041 = vmatmul.mubr.bf16.gmra.mrb[0].mxu0 %v981
        %v1042 = vpop.f32.mrb[0].mxu0
        %v1043 = vadd.f32 0.0, %v1042
        %v1044 = vpop.f32.mrb[0].mxu0
        %v1045 = vpop.f32.mrb[0].mxu0
        %v1046 = vadd.f32 0.0, %v1045
        %v1047 = vpop.f32.mrb[0].mxu0
        %1048 = vmatprep.mubr.bf16.mxu0 0
        %1049 = vmatmul.mubr.bf16.gmra.mrb[0].mxu0 %v984
        %v1050 = vpop.f32.mrb[0].mxu0
        %v1051 = vadd.f32 0.0, %v1050
        %v1052 = vpop.f32.mrb[0].mxu0
        %v1053 = vpop.f32.mrb[0].mxu0
        %v1054 = vadd.f32 0.0, %v1053
        %v1055 = vpop.f32.mrb[0].mxu0
        %1056 = vmatprep.mubr.bf16.mxu0 0
        %1057 = vmatmul.mubr.bf16.gmra.mrb[0].mxu0 %v987
        %v1058 = vpop.f32.mrb[0].mxu0
        %v1059 = vadd.f32 0.0, %v1058
        %v1060 = vpop.f32.mrb[0].mxu0
        %v1061 = vpop.f32.mrb[0].mxu0
        %v1062 = vadd.f32 0.0, %v1061
        %v1063 = vpop.f32.mrb[0].mxu0
        %1064 = vdwg.mxu0
        %v1065 = vadd.f32 %v946, %v1027
        %v1066 = vadd.f32 %v947, %v1030
        %v1067 = vadd.f32 %v948, %v1035
        %v1068 = vadd.f32 %v949, %v1038
        %v1069 = vadd.f32 %v950, %v1043
        %v1070 = vadd.f32 %v951, %v1046
        %v1071 = vadd.f32 %v952, %v1051
        %v1072 = vadd.f32 %v953, %v1054
        %v1073 = vadd.f32 %v954, %v1059
        %v1074 = vadd.f32 %v955, %v1062
        %v1075 = vld [vmem:[%s218 + $0x8] sm:$0xc]
        %v1076 = vld [vmem:[%s218 + $0xc] sm:$0xf]
        %v1077 = vld [vmem:[%s218 + $0x10] sm:$0xf]
        %v1078 = vld [vmem:[%s218 + $0x14] sm:$0xf]
        %v1079 = vld [vmem:[%s218 + $0x18] sm:$0xf]
        %v1080 = vld [vmem:[%s218 + $0x1c] sm:$0xf]
        %v1081 = vld [vmem:[%s218 + $0x20] sm:$0xf]
        %v1082 = vld [vmem:[%s218 + $0x24] sm:$0xf]
        %v1083 = vld [vmem:[%s218 + $0x28] sm:$0xf]
        %v1084 = vld [vmem:[%s218 + $0x2c] sm:$0xf]
        %v1085 = vld [vmem:[%s218 + $0x30] sm:$0x3]
        %s1086 = scalar_lea.vmem [#allocation5], 12
        %v1087 = vld [vmem:[%s1086] sm:$0x3]
        %v1099 = vunpack.c.l.b16 %v1075
        %v1100 = vunpack.c.l.b16 %v1076
        %v1101 = vunpack.c.l.b16 %v1077
        %v1102 = vunpack.c.l.b16 %v1078
        %v1103 = vunpack.c.l.b16 %v1079
        %v1104 = vunpack.c.l.b16 %v1080
        %v1105 = vunpack.c.l.b16 %v1081
        %v1106 = vunpack.c.l.b16 %v1082
        %v1107 = vunpack.c.l.b16 %v1083
        %v1108 = vunpack.c.l.b16 %v1084
        %v1109 = vunpack.c.l.b16 %v1085
        %v1110 = vpack.c.b16 %v1100, %v1099
        %v1111 = vpack.c.b16 %v1102, %v1101
        %v1112 = vpack.c.b16 %v1104, %v1103
        %v1113 = vpack.c.b16 %v1106, %v1105
        %v1114 = vpack.c.b16 %v1108, %v1107
        %v1115 = vpack.c.b16 %v1109, %v1109
        %v1116 = vrot.slane %v1110, 2
        %v1117 = vrot.slane %v1111, 2
        %v1118 = vsel %vm962, %v1116, %v1117
        %v1119 = vrot.slane %v1112, 2
        %v1120 = vsel %vm962, %v1117, %v1119
        %v1121 = vrot.slane %v1113, 2
        %v1122 = vsel %vm962, %v1119, %v1121
        %v1123 = vrot.slane %v1114, 2
        %v1124 = vsel %vm962, %v1121, %v1123
        %v1125 = vrot.slane %v1115, 2
        %v1126 = vsel %vm962, %v1123, %v1125
        %v1128 = vsel %vm344, %v1118, 0
        %v1131 = vsel %vm344, %v1120, 0
        %v1134 = vsel %vm344, %v1122, 0
        %v1137 = vsel %vm344, %v1124, 0
        %v1140 = vsel %vm344, %v1126, 0
        %v1143 = vsel %vm360, %v1087, 0
        %1145 = vmatprep.subr.bf16.mxu0 0
        %1146 = vmatpush1.bf16.msra.mxu0 %v1143
        %1147 = vmatprep.subr.bf16.mxu0 0
        %1148 = vmatpush1.bf16.msra.mxu0 0
        %1149 = vmatprep.subr.bf16.mxu0 0
        %1150 = vmatpush1.bf16.msra.mxu0 0
        %1151 = vmatprep.subr.bf16.mxu0 0
        %1152 = vmatpush1.bf16.msra.mxu0 0
        %1153 = vmatprep.subr.bf16.mxu0 0
        %1154 = vmatpush1.bf16.msra.mxu0 0
        %1155 = vmatprep.subr.bf16.mxu0 0
        %1156 = vmatpush1.bf16.msra.mxu0 0
        %1157 = vmatprep.subr.bf16.mxu0 0
        %1158 = vmatpush1.bf16.msra.mxu0 0
        %1159 = vmatprep.subr.bf16.mxu0 0
        %1160 = vmatpush1.bf16.msra.mxu0 0
        %1161 = vmatprep.subr.bf16.mxu0 0
        %1162 = vmatpush1.bf16.msra.mxu0 0
        %1163 = vmatprep.subr.bf16.mxu0 0
        %1164 = vmatpush1.bf16.msra.mxu0 0
        %1165 = vmatprep.subr.bf16.mxu0 0
        %1166 = vmatpush1.bf16.msra.mxu0 0
        %1167 = vmatprep.subr.bf16.mxu0 0
        %1168 = vmatpush1.bf16.msra.mxu0 0
        %1169 = vmatprep.subr.bf16.mxu0 0
        %1170 = vmatpush1.bf16.msra.mxu0 0
        %1171 = vmatprep.subr.bf16.mxu0 0
        %1172 = vmatpush1.bf16.msra.mxu0 0
        %1173 = vmatprep.subr.bf16.mxu0 0
        %1174 = vmatpush1.bf16.msra.mxu0 0
        %1175 = vmatprep.subr.bf16.mxu0 0
        %1176 = vmatpush1.bf16.msra.mxu0 0
        %1177 = vmatprep.mubr.bf16.mxu0 0
        %1178 = vmatmul.mubr.bf16.gmra.mrb[0].mxu0 %v1128
        %v1179 = vpop.f32.mrb[0].mxu0
        %v1180 = vadd.f32 0.0, %v1179
        %v1181 = vpop.f32.mrb[0].mxu0
        %v1182 = vpop.f32.mrb[0].mxu0
        %v1183 = vadd.f32 0.0, %v1182
        %v1184 = vpop.f32.mrb[0].mxu0
        %1185 = vmatprep.mubr.bf16.mxu0 0
        %1186 = vmatmul.mubr.bf16.gmra.mrb[0].mxu0 %v1131
        %v1187 = vpop.f32.mrb[0].mxu0
        %v1188 = vadd.f32 0.0, %v1187
        %v1189 = vpop.f32.mrb[0].mxu0
        %v1190 = vpop.f32.mrb[0].mxu0
        %v1191 = vadd.f32 0.0, %v1190
        %v1192 = vpop.f32.mrb[0].mxu0
        %1193 = vmatprep.mubr.bf16.mxu0 0
        %1194 = vmatmul.mubr.bf16.gmra.mrb[0].mxu0 %v1134
        %v1195 = vpop.f32.mrb[0].mxu0
        %v1196 = vadd.f32 0.0, %v1195
        %v1197 = vpop.f32.mrb[0].mxu0
        %v1198 = vpop.f32.mrb[0].mxu0
        %v1199 = vadd.f32 0.0, %v1198
        %v1200 = vpop.f32.mrb[0].mxu0
        %1201 = vmatprep.mubr.bf16.mxu0 0
        %1202 = vmatmul.mubr.bf16.gmra.mrb[0].mxu0 %v1137
        %v1203 = vpop.f32.mrb[0].mxu0
        %v1204 = vadd.f32 0.0, %v1203
        %v1205 = vpop.f32.mrb[0].mxu0
        %v1206 = vpop.f32.mrb[0].mxu0
        %v1207 = vadd.f32 0.0, %v1206
        %v1208 = vpop.f32.mrb[0].mxu0
        %1209 = vmatprep.mubr.bf16.mxu0 0
        %1210 = vmatmul.mubr.bf16.gmra.mrb[0].mxu0 %v1140
        %v1211 = vpop.f32.mrb[0].mxu0
        %v1212 = vadd.f32 0.0, %v1211
        %v1213 = vpop.f32.mrb[0].mxu0
        %v1214 = vpop.f32.mrb[0].mxu0
        %v1215 = vadd.f32 0.0, %v1214
        %v1216 = vpop.f32.mrb[0].mxu0
        %1217 = vdwg.mxu0
        %v1218 = vadd.f32 %v1065, %v1180
        %v1219 = vadd.f32 %v1066, %v1183
        %v1220 = vadd.f32 %v1067, %v1188
        %v1221 = vadd.f32 %v1068, %v1191
        %v1222 = vadd.f32 %v1069, %v1196
        %v1223 = vadd.f32 %v1070, %v1199
        %v1224 = vadd.f32 %v1071, %v1204
        %v1225 = vadd.f32 %v1072, %v1207
        %v1226 = vadd.f32 %v1073, %v1212
        %v1227 = vadd.f32 %v1074, %v1215
        %v1228 = vld [vmem:[%s218 + $0x30] sm:$0x7]
        %s1229 = scalar_lea.vmem [#allocation5], 14
        %v1230 = vld [vmem:[%s1229] sm:$0x3]
        %v1232 = vunpack.c.l.b16 %v1228
        %v1233 = vpack.c.b16 %v1232, %v1232
        %vm1234 = vsmask.f32 5376
        %v1236 = vshrl.u32 %v1110, 16
        %v1238 = vrot.slane %v1236, 2
        %v1239 = vshll.u32 %v1110, 16
        %v1241 = vrot.slane %v1239, 3
        %v1242 = vor.u32 %v1238, %v1241
        %v1244 = vshrl.u32 %v1111, 16
        %v1246 = vrot.slane %v1244, 2
        %v1247 = vshll.u32 %v1111, 16
        %v1249 = vrot.slane %v1247, 3
        %v1250 = vor.u32 %v1246, %v1249
        %v1251 = vsel %vm1234, %v1242, %v1250
        %v1253 = vshrl.u32 %v1112, 16
        %v1255 = vrot.slane %v1253, 2
        %v1256 = vshll.u32 %v1112, 16
        %v1258 = vrot.slane %v1256, 3
        %v1259 = vor.u32 %v1255, %v1258
        %v1260 = vsel %vm1234, %v1250, %v1259
        %v1262 = vshrl.u32 %v1113, 16
        %v1264 = vrot.slane %v1262, 2
        %v1265 = vshll.u32 %v1113, 16
        %v1267 = vrot.slane %v1265, 3
        %v1268 = vor.u32 %v1264, %v1267
        %v1269 = vsel %vm1234, %v1259, %v1268
        %v1271 = vshrl.u32 %v1114, 16
        %v1273 = vrot.slane %v1271, 2
        %v1274 = vshll.u32 %v1114, 16
        %v1276 = vrot.slane %v1274, 3
        %v1277 = vor.u32 %v1273, %v1276
        %v1278 = vsel %vm1234, %v1268, %v1277
        %v1280 = vshrl.u32 %v1233, 16
        %v1282 = vrot.slane %v1280, 2
        %v1283 = vshll.u32 %v1233, 16
        %v1285 = vrot.slane %v1283, 3
        %v1286 = vor.u32 %v1282, %v1285
        %v1287 = vsel %vm1234, %v1277, %v1286
        %v1289 = vsel %vm344, %v1251, 0
        %v1292 = vsel %vm344, %v1260, 0
        %v1295 = vsel %vm344, %v1269, 0
        %v1298 = vsel %vm344, %v1278, 0
        %v1301 = vsel %vm344, %v1287, 0
        %v1304 = vsel %vm360, %v1230, 0
        %1306 = vmatprep.subr.bf16.mxu0 0
        %1307 = vmatpush1.bf16.msra.mxu0 %v1304
        %1308 = vmatprep.subr.bf16.mxu0 0
        %1309 = vmatpush1.bf16.msra.mxu0 0
        %1310 = vmatprep.subr.bf16.mxu0 0
        %1311 = vmatpush1.bf16.msra.mxu0 0
        %1312 = vmatprep.subr.bf16.mxu0 0
        %1313 = vmatpush1.bf16.msra.mxu0 0
        %1314 = vmatprep.subr.bf16.mxu0 0
        %1315 = vmatpush1.bf16.msra.mxu0 0
        %1316 = vmatprep.subr.bf16.mxu0 0
        %1317 = vmatpush1.bf16.msra.mxu0 0
        %1318 = vmatprep.subr.bf16.mxu0 0
        %1319 = vmatpush1.bf16.msra.mxu0 0
        %1320 = vmatprep.subr.bf16.mxu0 0
        %1321 = vmatpush1.bf16.msra.mxu0 0
        %1322 = vmatprep.subr.bf16.mxu0 0
        %1323 = vmatpush1.bf16.msra.mxu0 0
        %1324 = vmatprep.subr.bf16.mxu0 0
        %1325 = vmatpush1.bf16.msra.mxu0 0
        %1326 = vmatprep.subr.bf16.mxu0 0
        %1327 = vmatpush1.bf16.msra.mxu0 0
        %1328 = vmatprep.subr.bf16.mxu0 0
        %1329 = vmatpush1.bf16.msra.mxu0 0
        %1330 = vmatprep.subr.bf16.mxu0 0
        %1331 = vmatpush1.bf16.msra.mxu0 0
        %1332 = vmatprep.subr.bf16.mxu0 0
        %1333 = vmatpush1.bf16.msra.mxu0 0
        %1334 = vmatprep.subr.bf16.mxu0 0
        %1335 = vmatpush1.bf16.msra.mxu0 0
        %1336 = vmatprep.subr.bf16.mxu0 0
        %1337 = vmatpush1.bf16.msra.mxu0 0
        %1338 = vmatprep.mubr.bf16.mxu0 0
        %1339 = vmatmul.mubr.bf16.gmra.mrb[0].mxu0 %v1289
        %v1340 = vpop.f32.mrb[0].mxu0
        %v1341 = vadd.f32 0.0, %v1340
        %v1342 = vpop.f32.mrb[0].mxu0
        %v1343 = vpop.f32.mrb[0].mxu0
        %v1344 = vadd.f32 0.0, %v1343
        %v1345 = vpop.f32.mrb[0].mxu0
        %1346 = vmatprep.mubr.bf16.mxu0 0
        %1347 = vmatmul.mubr.bf16.gmra.mrb[0].mxu0 %v1292
        %v1348 = vpop.f32.mrb[0].mxu0
        %v1349 = vadd.f32 0.0, %v1348
        %v1350 = vpop.f32.mrb[0].mxu0
        %v1351 = vpop.f32.mrb[0].mxu0
        %v1352 = vadd.f32 0.0, %v1351
        %v1353 = vpop.f32.mrb[0].mxu0
        %1354 = vmatprep.mubr.bf16.mxu0 0
        %1355 = vmatmul.mubr.bf16.gmra.mrb[0].mxu0 %v1295
        %v1356 = vpop.f32.mrb[0].mxu0
        %v1357 = vadd.f32 0.0, %v1356
        %v1358 = vpop.f32.mrb[0].mxu0
        %v1359 = vpop.f32.mrb[0].mxu0
        %v1360 = vadd.f32 0.0, %v1359
        %v1361 = vpop.f32.mrb[0].mxu0
        %1362 = vmatprep.mubr.bf16.mxu0 0
        %1363 = vmatmul.mubr.bf16.gmra.mrb[0].mxu0 %v1298
        %v1364 = vpop.f32.mrb[0].mxu0
        %v1365 = vadd.f32 0.0, %v1364
        %v1366 = vpop.f32.mrb[0].mxu0
        %v1367 = vpop.f32.mrb[0].mxu0
        %v1368 = vadd.f32 0.0, %v1367
        %v1369 = vpop.f32.mrb[0].mxu0
        %1370 = vmatprep.mubr.bf16.mxu0 0
        %1371 = vmatmul.mubr.bf16.gmra.mrb[0].mxu0 %v1301
        %v1372 = vpop.f32.mrb[0].mxu0
        %v1373 = vadd.f32 0.0, %v1372
        %v1374 = vpop.f32.mrb[0].mxu0
        %v1375 = vpop.f32.mrb[0].mxu0
        %v1376 = vadd.f32 0.0, %v1375
        %v1377 = vpop.f32.mrb[0].mxu0
        %1378 = vdwg.mxu0
        %v1379 = vadd.f32 %v1218, %v1341
        %v1380 = vadd.f32 %v1219, %v1344
        %v1381 = vadd.f32 %v1220, %v1349
        %v1382 = vadd.f32 %v1221, %v1352
        %v1383 = vadd.f32 %v1222, %v1357
        %v1384 = vadd.f32 %v1223, %v1360
        %v1385 = vadd.f32 %v1224, %v1365
        %v1386 = vadd.f32 %v1225, %v1368
        %v1387 = vadd.f32 %v1226, %v1373
        %v1388 = vadd.f32 %v1227, %v1376
        %v1389 = vld [vmem:[%s218 + $0x8] sm:$0x8]
        %s1390 = scalar_lea.vmem [#allocation5], 16
        %v1391 = vld [vmem:[%s1390] sm:$0x3]
        %v1393 = vunpack.c.l.b16 %v1389
        %v1394 = vpack.c.b16 %v1100, %v1393
        %vm1395 = vcmask 1044480
        %v1396 = vrot.slane %v1394, 3
        %v1397 = vrot.slane %v1111, 3
        %v1398 = vsel %vm1395, %v1396, %v1397
        %v1399 = vrot.slane %v1112, 3
        %v1400 = vsel %vm1395, %v1397, %v1399
        %v1401 = vrot.slane %v1113, 3
        %v1402 = vsel %vm1395, %v1399, %v1401
        %v1403 = vrot.slane %v1114, 3
        %v1404 = vsel %vm1395, %v1401, %v1403
        %v1405 = vrot.slane %v1233, 3
        %v1406 = vsel %vm1395, %v1403, %v1405
        %v1408 = vsel %vm344, %v1398, 0
        %v1411 = vsel %vm344, %v1400, 0
        %v1414 = vsel %vm344, %v1402, 0
        %v1417 = vsel %vm344, %v1404, 0
        %v1420 = vsel %vm344, %v1406, 0
        %v1423 = vsel %vm360, %v1391, 0
        %1425 = vmatprep.subr.bf16.mxu0 0
        %1426 = vmatpush1.bf16.msra.mxu0 %v1423
        %1427 = vmatprep.subr.bf16.mxu0 0
        %1428 = vmatpush1.bf16.msra.mxu0 0
        %1429 = vmatprep.subr.bf16.mxu0 0
        %1430 = vmatpush1.bf16.msra.mxu0 0
        %1431 = vmatprep.subr.bf16.mxu0 0
        %1432 = vmatpush1.bf16.msra.mxu0 0
        %1433 = vmatprep.subr.bf16.mxu0 0
        %1434 = vmatpush1.bf16.msra.mxu0 0
        %1435 = vmatprep.subr.bf16.mxu0 0
        %1436 = vmatpush1.bf16.msra.mxu0 0
        %1437 = vmatprep.subr.bf16.mxu0 0
        %1438 = vmatpush1.bf16.msra.mxu0 0
        %1439 = vmatprep.subr.bf16.mxu0 0
        %1440 = vmatpush1.bf16.msra.mxu0 0
        %1441 = vmatprep.subr.bf16.mxu0 0
        %1442 = vmatpush1.bf16.msra.mxu0 0
        %1443 = vmatprep.subr.bf16.mxu0 0
        %1444 = vmatpush1.bf16.msra.mxu0 0
        %1445 = vmatprep.subr.bf16.mxu0 0
        %1446 = vmatpush1.bf16.msra.mxu0 0
        %1447 = vmatprep.subr.bf16.mxu0 0
        %1448 = vmatpush1.bf16.msra.mxu0 0
        %1449 = vmatprep.subr.bf16.mxu0 0
        %1450 = vmatpush1.bf16.msra.mxu0 0
        %1451 = vmatprep.subr.bf16.mxu0 0
        %1452 = vmatpush1.bf16.msra.mxu0 0
        %1453 = vmatprep.subr.bf16.mxu0 0
        %1454 = vmatpush1.bf16.msra.mxu0 0
        %1455 = vmatprep.subr.bf16.mxu0 0
        %1456 = vmatpush1.bf16.msra.mxu0 0
        %1457 = vmatprep.mubr.bf16.mxu0 0
        %1458 = vmatmul.mubr.bf16.gmra.mrb[0].mxu0 %v1408
        %v1459 = vpop.f32.mrb[0].mxu0
        %v1460 = vadd.f32 0.0, %v1459
        %v1461 = vpop.f32.mrb[0].mxu0
        %v1462 = vpop.f32.mrb[0].mxu0
        %v1463 = vadd.f32 0.0, %v1462
        %v1464 = vpop.f32.mrb[0].mxu0
        %1465 = vmatprep.mubr.bf16.mxu0 0
        %1466 = vmatmul.mubr.bf16.gmra.mrb[0].mxu0 %v1411
        %v1467 = vpop.f32.mrb[0].mxu0
        %v1468 = vadd.f32 0.0, %v1467
        %v1469 = vpop.f32.mrb[0].mxu0
        %v1470 = vpop.f32.mrb[0].mxu0
        %v1471 = vadd.f32 0.0, %v1470
        %v1472 = vpop.f32.mrb[0].mxu0
        %1473 = vmatprep.mubr.bf16.mxu0 0
        %1474 = vmatmul.mubr.bf16.gmra.mrb[0].mxu0 %v1414
        %v1475 = vpop.f32.mrb[0].mxu0
        %v1476 = vadd.f32 0.0, %v1475
        %v1477 = vpop.f32.mrb[0].mxu0
        %v1478 = vpop.f32.mrb[0].mxu0
        %v1479 = vadd.f32 0.0, %v1478
        %v1480 = vpop.f32.mrb[0].mxu0
        %1481 = vmatprep.mubr.bf16.mxu0 0
        %1482 = vmatmul.mubr.bf16.gmra.mrb[0].mxu0 %v1417
        %v1483 = vpop.f32.mrb[0].mxu0
        %v1484 = vadd.f32 0.0, %v1483
        %v1485 = vpop.f32.mrb[0].mxu0
        %v1486 = vpop.f32.mrb[0].mxu0
        %v1487 = vadd.f32 0.0, %v1486
        %v1488 = vpop.f32.mrb[0].mxu0
        %1489 = vmatprep.mubr.bf16.mxu0 0
        %1490 = vmatmul.mubr.bf16.gmra.mrb[0].mxu0 %v1420
        %v1491 = vpop.f32.mrb[0].mxu0
        %v1492 = vadd.f32 0.0, %v1491
        %v1493 = vpop.f32.mrb[0].mxu0
        %v1494 = vpop.f32.mrb[0].mxu0
        %v1495 = vadd.f32 0.0, %v1494
        %v1496 = vpop.f32.mrb[0].mxu0
        %1497 = vdwg.mxu0
        %v1498 = vadd.f32 %v1379, %v1460
        %v1499 = vadd.f32 %v1380, %v1463
        %v1500 = vadd.f32 %v1381, %v1468
        %v1501 = vadd.f32 %v1382, %v1471
        %v1502 = vadd.f32 %v1383, %v1476
        %v1503 = vadd.f32 %v1384, %v1479
        %v1504 = vadd.f32 %v1385, %v1484
        %v1505 = vadd.f32 %v1386, %v1487
        %v1506 = vadd.f32 %v1387, %v1492
        %v1507 = vadd.f32 %v1388, %v1495
        %1508 = vst [vmem:[%s248] sm:$0xff] %v1498
        %1509 = vst [vmem:[%s248 + $0x8] sm:$0xff] %v1499
        %1510 = vst [vmem:[%s248 + $0x10] sm:$0xff] %v1500
        %1511 = vst [vmem:[%s248 + $0x18] sm:$0xff] %v1501
        %1512 = vst [vmem:[%s248 + $0x20] sm:$0xff] %v1502
        %1513 = vst [vmem:[%s248 + $0x28] sm:$0xff] %v1503
        %1514 = vst [vmem:[%s248 + $0x30] sm:$0xff] %v1504
        %1515 = vst [vmem:[%s248 + $0x38] sm:$0xff] %v1505
        %1516 = vst [vmem:[%s248 + $0x40] sm:$0xff] %v1506
        %1517 = vst [vmem:[%s248 + $0x48] sm:$0xff] %v1507
        %v1518 = vld [vmem:[#allocation7] sm:$0xff]
        %v1519 = vld [vmem:[#allocation7 + $0x8] sm:$0xff]
        %v1520 = vld [vmem:[#allocation7 + $0x10] sm:$0xff]
        %v1521 = vld [vmem:[#allocation7 + $0x18] sm:$0xff]
        %v1522 = vld [vmem:[#allocation7 + $0x20] sm:$0xff]
        %v1523 = vld [vmem:[#allocation7 + $0x28] sm:$0xff]
        %v1524 = vld [vmem:[#allocation7 + $0x30] sm:$0xff]
        %v1525 = vld [vmem:[#allocation7 + $0x38] sm:$0xff]
        %v1526 = vld [vmem:[#allocation7 + $0x40] sm:$0xff]
        %v1527 = vld [vmem:[#allocation7 + $0x48] sm:$0xff]
        %1529 = vset.pattern.permute.xlu0 0
        %1530 = vperm.xlu0 %1529, %v1518
        %v1531 = vpop.permute.xlu0 %1530
        %1534 = vset.pattern.permute.xlu0 0
        %1535 = vperm.xlu0 %1534, %v1519
        %v1536 = vpop.permute.xlu0 %1535
        %1539 = vset.pattern.permute.xlu0 0
        %1540 = vperm.xlu0 %1539, %v1520
        %v1541 = vpop.permute.xlu0 %1540
        %1544 = vset.pattern.permute.xlu0 0
        %1545 = vperm.xlu0 %1544, %v1521
        %v1546 = vpop.permute.xlu0 %1545
        %1549 = vset.pattern.permute.xlu0 0
        %1550 = vperm.xlu0 %1549, %v1522
        %v1551 = vpop.permute.xlu0 %1550
        %1554 = vset.pattern.permute.xlu0 0
        %1555 = vperm.xlu0 %1554, %v1523
        %v1556 = vpop.permute.xlu0 %1555
        %1559 = vset.pattern.permute.xlu0 0
        %1560 = vperm.xlu0 %1559, %v1524
        %v1561 = vpop.permute.xlu0 %1560
        %1564 = vset.pattern.permute.xlu0 0
        %1565 = vperm.xlu0 %1564, %v1525
        %v1566 = vpop.permute.xlu0 %1565
        %1569 = vset.pattern.permute.xlu0 0
        %1570 = vperm.xlu0 %1569, %v1526
        %v1571 = vpop.permute.xlu0 %1570
        %1574 = vset.pattern.permute.xlu0 0
        %1575 = vperm.xlu0 %1574, %v1527
        %v1576 = vpop.permute.xlu0 %1575
        %v1578 = vmul.f32 %v1498, %v1531
        %v1579 = vmul.f32 %v1499, %v1536
        %v1580 = vmul.f32 %v1500, %v1541
        %v1581 = vmul.f32 %v1501, %v1546
        %v1582 = vmul.f32 %v1502, %v1551
        %v1583 = vmul.f32 %v1503, %v1556
        %v1584 = vmul.f32 %v1504, %v1561
        %v1585 = vmul.f32 %v1505, %v1566
        %v1586 = vmul.f32 %v1506, %v1571
        %v1587 = vmul.f32 %v1507, %v1576
        %v1588 = vadd.f32 %v1578, %v1579
        %v1589 = vadd.f32 %v1588, %v1580
        %v1590 = vadd.f32 %v1589, %v1581
        %v1591 = vadd.f32 %v1590, %v1582
        %v1592 = vadd.f32 %v1591, %v1583
        %v1593 = vadd.f32 %v1592, %v1584
        %v1594 = vadd.f32 %v1593, %v1585
        %v1595 = vadd.f32 %v1594, %v1586
        %v1596 = vadd.f32 %v1595, %v1587
        %v1597 = vrot.slane %v1596, 4
        %v1598 = vadd.f32 %v1596, %v1597
        %v1599 = vrot.slane %v1598, 2
        %v1600 = vadd.f32 %v1598, %v1599
        %v1601 = vrot.slane %v1600, 1
        %v1602 = vadd.f32 %v1600, %v1601
        %v1603 = vmul.f32 %v1498, %v1498
        %v1604 = vmul.f32 %v1499, %v1499
        %v1605 = vmul.f32 %v1500, %v1500
        %v1606 = vmul.f32 %v1501, %v1501
        %v1607 = vmul.f32 %v1502, %v1502
        %v1608 = vmul.f32 %v1503, %v1503
        %v1609 = vmul.f32 %v1504, %v1504
        %v1610 = vmul.f32 %v1505, %v1505
        %v1611 = vmul.f32 %v1506, %v1506
        %v1612 = vmul.f32 %v1507, %v1507
        %v1613 = vmul.f32 %v1603, %v1531
        %v1614 = vmul.f32 %v1604, %v1536
        %v1615 = vmul.f32 %v1605, %v1541
        %v1616 = vmul.f32 %v1606, %v1546
        %v1617 = vmul.f32 %v1607, %v1551
        %v1618 = vmul.f32 %v1608, %v1556
        %v1619 = vmul.f32 %v1609, %v1561
        %v1620 = vmul.f32 %v1610, %v1566
        %v1621 = vmul.f32 %v1611, %v1571
        %v1622 = vmul.f32 %v1612, %v1576
        %v1623 = vadd.f32 %v1613, %v1614
        %v1624 = vadd.f32 %v1623, %v1615
        %v1625 = vadd.f32 %v1624, %v1616
        %v1626 = vadd.f32 %v1625, %v1617
        %v1627 = vadd.f32 %v1626, %v1618
        %v1628 = vadd.f32 %v1627, %v1619
        %v1629 = vadd.f32 %v1628, %v1620
        %v1630 = vadd.f32 %v1629, %v1621
        %v1631 = vadd.f32 %v1630, %v1622
        %v1632 = vrot.slane %v1631, 4
        %v1633 = vadd.f32 %v1631, %v1632
        %v1634 = vrot.slane %v1633, 2
        %v1635 = vadd.f32 %v1633, %v1634
        %v1636 = vrot.slane %v1635, 1
        %v1637 = vadd.f32 %v1635, %v1636
        %vm1638 = vcmask 1040384
        %v1639 = vsel %vm1638, %v1602, %v1637
        %1640 = vst [vmem:[%s255] sm:$0x3] %v1639
        %s1641 = sand.u32 %s102, 1
        %s1642 = scalar_lea.sflag [#allocation4], %s1641
        %s1643 = sand.u32 %s102, 1
        %s1644 = smul.addr %s1643, 80
        %s1645 = scalar_lea.vmem [#allocation8], %s1644
        %s1646 = sand.u32 %s128, 1
        %s1647 = scalar_lea.sflag [#allocation10], %s1646
        %s1648 = sand.u32 %s128, 1
        %s1649 = smul.addr %s1648, 2
        %s1650 = scalar_lea.vmem [#allocation9], %s1649
        // Predicated region
        $region45: #{down_forward.4} parent=31 // pred_check
          %p1651 = pneg %p112
        $region46: #{down_forward.4} parent=31 // pred_check_branch
          %1653 = sbr.rel (%p1651) target = $region48
        $region47: #{down_forward.4} parent=31 // pred_region
          %s1655 = ssub.s32 1280, 1280
          %1656 = vsyncadd %s1642, %s1655
          %s1657 = smul.addr %s26, 10
          %s1658 = smul.addr %s1657, 128
          %s1659 = scalar_lea.hbm %s3, %s1658
          %s1660 = sshll.u32 %s1645, 4
          %s1661 = int_to_ptr.vmem [resolvable:$true] %s1660
          %1666 = dma.vmem_to_hbm [thread:$0]  %s1661, 1280, %s1659, %s1642, 128, 128, 8
        $region48: #{down_forward.4} parent=31 // pred_fallthru
          _
        // Predicated region
        $region49: #{down_forward.4} parent=31 // pred_check
          %p1667 = pneg %p138
        $region50: #{down_forward.4} parent=31 // pred_check_branch
          %1669 = sbr.rel (%p1667) target = $region52
        $region51: #{down_forward.4} parent=31 // pred_region
          %s1671 = ssub.s32 32, 32
          %1672 = vsyncadd %s1647, %s1671
          %s1673 = smul.addr %s26, 32
          %s1674 = scalar_lea.hbm %s4, %s1673
          %s1676 = sshll.u32 %s1650, 4
          %s1677 = int_to_ptr.vmem [resolvable:$true] %s1676
          %1679 = dma.vmem_to_hbm [thread:$0]  %s1677, 32, %s1674, %s1647
        $region52: #{down_forward.4} parent=31 // pred_fallthru
          _
      $region32: #{down_forward.4} parent=5 // pred_fallthru
        _
      %p1680 = scmp.le.s32.totalorder 2, %s21
      // Predicated region
      $region53: #{down_forward.4} parent=5 // pred_check
        %p1681 = pneg %p1680
      $region54: #{down_forward.4} parent=5 // pred_check_branch
        %1683 = sbr.rel (%p1681) target = $region56
      $region55: #{down_forward.4} parent=5 // pred_region
        %s1684 = ssub.s32 %s21, 2
        // Predicated region
        $region57: #{down_forward.4} parent=55 // pred_check
          %p1685 = pneg %p118
        $region58: #{down_forward.4} parent=55 // pred_check_branch
          %1687 = sbr.rel (%p1685) target = $region60
        $region59: #{down_forward.4} parent=55 // pred_region
          %s1688 = sand.u32 %s103, 1
          %s1689 = scalar_lea.sflag [#allocation4], %s1688
          %s1690 = sand.u32 %s103, 1
          %s1691 = smul.addr %s1690, 80
          %s1692 = scalar_lea.vmem [#allocation8], %s1691
          %1693 = dma.done %s1689, 1280
        $region60: #{down_forward.4} parent=55 // pred_fallthru
          _
        // Predicated region
        $region61: #{down_forward.4} parent=55 // pred_check
          %p1694 = pneg %p144
        $region62: #{down_forward.4} parent=55 // pred_check_branch
          %1696 = sbr.rel (%p1694) target = $region64
        $region63: #{down_forward.4} parent=55 // pred_region
          %s1697 = sand.u32 %s129, 1
          %s1698 = scalar_lea.sflag [#allocation10], %s1697
          %s1699 = sand.u32 %s129, 1
          %s1700 = smul.addr %s1699, 2
          %s1701 = scalar_lea.vmem [#allocation9], %s1700
          %1702 = dma.done %s1698, 32
        $region64: #{down_forward.4} parent=55 // pred_fallthru
          _
      $region56: #{down_forward.4} parent=5 // pred_fallthru
        _
    $region6: #{down_forward.4} parent=1 // loop_footer
      %s25 = sadd.s32 1, %s21
    $region7: #{down_forward.4} parent=1 // loop_footer_branch
      %20 = sbr.rel target = $region3
    $region8: #{down_forward.4} parent=1 // loop_exit
      _
    %1703 = vsyncpa [#allocation3], 1
    %s1704 = scalar_lea.sflag [#allocation3], 1
    %1705 = vsyncpa %s1704, 1
    %1706 = vsyncpa [#allocation6], 1
    %1707 = vsyncpa [#allocation4], 1
    %s1708 = scalar_lea.sflag [#allocation4], 1
    %1709 = vsyncpa %s1708, 1
    %1710 = vsyncpa [#allocation10], 1
    %s1711 = scalar_lea.sflag [#allocation10], 1
    %1712 = vsyncpa %s1711, 1

// kernel: down_forward.7
$region0: #{down_forward.7}
  #allocation0 [shape = 'u32[]', space=smem, size = 0x4, offset = 0x4, fixed_abs, tag = 'smem constant byte address 0x4 - core index']
  #allocation1 [shape = 'u32[144,128]{1,0:T(1,128)}', space=vmem, size = 0x12000, scoped, tag = 'internal scratch']
  %s0 = inlined_call_operand.hbm [shape: f32[2,80,128], index: 0, kind: input, shape index: {}]
  %s1 = inlined_call_operand.hbm [shape: f32[1,128], index: 1, kind: input, shape index: {}]
  %s2 = inlined_call_operand.hbm [shape: f32[1,128], index: 2, kind: input, shape index: {}]
  %s3 = inlined_call_operand.hbm [shape: f32[2,80,128], index: 3, kind: output, shape index: {}]
  %s4 = sld [smem:[#allocation0]]
  $region57: #{down_forward.7} parent=0
    _
  %s6 = ssub.s32 1, %s4
  %s7 = scalar_select 0, %s6, %s4
  $region1: #{down_forward.7} parent=0
    #allocation2 [shape = 'u8[81920]{0}', space=vmem, size = 0x14000, scoped, tag = 'input window, operand 0']
    #allocation3 [shape = 's32[2]{0}', space=sflag, size = 0x8, scoped, tag = 'scoped memory for down_forward.7']
    #allocation4 [shape = 's32[2]{0}', space=sflag, size = 0x8, scoped, tag = 'scoped memory for down_forward.7']
    #allocation5 [shape = 'u8[512]{0}', space=vmem, size = 0x400, scoped, tag = 'input window, operand 1, single buffered']
    #allocation6 [shape = 's32[1]{0}', space=sflag, size = 0x4, scoped, tag = 'scoped memory for down_forward.7']
    #allocation7 [shape = 'u8[512]{0}', space=vmem, size = 0x400, scoped, tag = 'input window, operand 2, single buffered']
    #allocation8 [shape = 'u8[81920]{0}', space=vmem, size = 0x14000, scoped, tag = 'output window, operand 0']
    %8 = vsyncpa [#allocation3], 0
    %s9 = scalar_lea.sflag [#allocation3], 1
    %10 = vsyncpa %s9, 0
    %11 = vsyncpa [#allocation6], 0
    %12 = vsyncpa [#allocation4], 0
    %s13 = scalar_lea.sflag [#allocation4], 1
    %14 = vsyncpa %s13, 0
    loop: start=0, step=1, limit=4
    $region2: #{down_forward.7} parent=1 // loop_pre_header
      _
    $region3: #{down_forward.7} parent=1 // loop_header
      %s16 = sphi 0, %s20
      %p17 = scmp.ge.s32.totalorder %s16, 4
      %s26 = sphi 0, %s28
      %s29 = sphi 0, %s26
      %s30 = sphi 0, %s29
      %s46 = sphi 0, %s30
      %s50 = sphi 0, %s50
      %s52 = sphi 0, %s50
      %s53 = sphi 0, %s52
      %s67 = sphi 0, %s53
      %s71 = sphi 0, %s71
      %s73 = sphi 0, %s71
      %s74 = sphi 0, %s73
      %s88 = sphi 0, %s74
      %s94 = sphi 0, %s96
      %s97 = sphi 0, %s94
      %s98 = sphi 0, %s97
      %s114 = sphi 0, %s98
    $region4: #{down_forward.7} parent=1 // loop_header_branch
      %19 = sbr.rel (%p17) target = $region8
    $region5: #{down_forward.7} parent=1 // loop_body
      %s21 = ssub.s32 %s16, 1
      %s22 = ssub.s32 %s16, 2
      %s23 = sadd.s32 %s16, 1
      %s24 = ssub.s32 %s16, %s23
      %p25 = scmp.eq.s32.totalorder %s24, 0
      %s27 = sadd.s32 %s26, 1
      %s28 = scalar_select %p25, %s26, %s27
      %p31 = pneg %p25
      %p32 = scmp.eq.s32.totalorder %s16, 1
      %p33 = por %p31, %p32
      %p34 = scmp.ne.s32.totalorder %s26, %s29
      %p35 = scmp.eq.s32.totalorder %s16, 0
      %p36 = por %p34, %p35
      %p37 = scmp.ne.s32.totalorder %s26, %s29
      %p38 = scmp.eq.s32.totalorder %s21, 1
      %p39 = por %p37, %p38
      %p40 = scmp.ne.s32.totalorder %s29, %s30
      %p41 = scmp.eq.s32.totalorder %s21, 0
      %p42 = por %p40, %p41
      %p43 = scmp.ne.s32.totalorder %s29, %s30
      %p44 = scmp.eq.s32.totalorder %s22, 1
      %p45 = por %p43, %p44
      %p47 = scmp.ne.s32.totalorder %s30, %s46
      %p48 = scmp.eq.s32.totalorder %s22, 0
      %p49 = por %p47, %p48
      %s51 = sadd.s32 %s50, 1
      %p54 = scmp.eq.s32.totalorder %s16, 1
      %p55 = scmp.ne.s32.totalorder %s50, %s52
      %p56 = scmp.eq.s32.totalorder %s16, 0
      %p57 = por %p55, %p56
      %p58 = scmp.ne.s32.totalorder %s50, %s52
      %p59 = scmp.eq.s32.totalorder %s21, 1
      %p60 = por %p58, %p59
      %p61 = scmp.ne.s32.totalorder %s52, %s53
      %p62 = scmp.eq.s32.totalorder %s21, 0
      %p63 = por %p61, %p62
      %p64 = scmp.ne.s32.totalorder %s52, %s53
      %p65 = scmp.eq.s32.totalorder %s22, 1
      %p66 = por %p64, %p65
      %p68 = scmp.ne.s32.totalorder %s53, %s67
      %p69 = scmp.eq.s32.totalorder %s22, 0
      %p70 = por %p68, %p69
      %s72 = sadd.s32 %s71, 1
      %p75 = scmp.eq.s32.totalorder %s16, 1
      %p76 = scmp.ne.s32.totalorder %s71, %s73
      %p77 = scmp.eq.s32.totalorder %s16, 0
      %p78 = por %p76, %p77
      %p79 = scmp.ne.s32.totalorder %s71, %s73
      %p80 = scmp.eq.s32.totalorder %s21, 1
      %p81 = por %p79, %p80
      %p82 = scmp.ne.s32.totalorder %s73, %s74
      %p83 = scmp.eq.s32.totalorder %s21, 0
      %p84 = por %p82, %p83
      %p85 = scmp.ne.s32.totalorder %s73, %s74
      %p86 = scmp.eq.s32.totalorder %s22, 1
      %p87 = por %p85, %p86
      %p89 = scmp.ne.s32.totalorder %s74, %s88
      %p90 = scmp.eq.s32.totalorder %s22, 0
      %p91 = por %p89, %p90
      %s92 = ssub.s32 %s16, %s23
      %p93 = scmp.eq.s32.totalorder %s92, 0
      %s95 = sadd.s32 %s94, 1
      %s96 = scalar_select %p93, %s94, %s95
      %p99 = pneg %p93
      %p100 = scmp.eq.s32.totalorder %s16, 1
      %p101 = por %p99, %p100
      %p102 = scmp.ne.s32.totalorder %s94, %s97
      %p103 = scmp.eq.s32.totalorder %s16, 0
      %p104 = por %p102, %p103
      %p105 = scmp.ne.s32.totalorder %s94, %s97
      %p106 = scmp.eq.s32.totalorder %s21, 1
      %p107 = por %p105, %p106
      %p108 = scmp.ne.s32.totalorder %s97, %s98
      %p109 = scmp.eq.s32.totalorder %s21, 0
      %p110 = por %p108, %p109
      %p111 = scmp.ne.s32.totalorder %s97, %s98
      %p112 = scmp.eq.s32.totalorder %s22, 1
      %p113 = por %p111, %p112
      %p115 = scmp.ne.s32.totalorder %s98, %s114
      %p116 = scmp.eq.s32.totalorder %s22, 0
      %p117 = por %p115, %p116
      %p118 = scmp.le.s32.totalorder 1, %s16
      %p119 = scmp.lt.s32.totalorder %s16, 3
      %p120 = pnand %p118, %p119
      %p121 = pneg %p120
      // Predicated region
      $region9: #{down_forward.7} parent=5 // pred_check
        _
      $region10: #{down_forward.7} parent=5 // pred_check_branch
        %123 = sbr.rel (%p120) target = $region12
      $region11: #{down_forward.7} parent=5 // pred_region
        %s124 = ssub.s32 %s16, 1
        // Predicated region
        $region13: #{down_forward.7} parent=11 // pred_check
          %p125 = pneg %p63
        $region14: #{down_forward.7} parent=11 // pred_check_branch
          %127 = sbr.rel (%p125) target = $region16
        $region15: #{down_forward.7} parent=11 // pred_region
          %s129 = ssub.s32 16, 16
          %130 = vsyncadd [#allocation6], %s129
          %s132 = sshll.u32 [#allocation5], 4
          %s133 = int_to_ptr.vmem [resolvable:$true] %s132
          %135 = dma.hbm_to_vmem [thread:$0]  %s1, 16, %s133, [#allocation6]
        $region16: #{down_forward.7} parent=11 // pred_fallthru
          _
        // Predicated region
        $region17: #{down_forward.7} parent=11 // pred_check
          %p136 = pneg %p84
        $region18: #{down_forward.7} parent=11 // pred_check_branch
          %138 = sbr.rel (%p136) target = $region20
        $region19: #{down_forward.7} parent=11 // pred_region
          %s140 = ssub.s32 16, 16
          %141 = vsyncadd [#allocation6], %s140
          %s143 = sshll.u32 [#allocation7], 4
          %s144 = int_to_ptr.vmem [resolvable:$true] %s143
          %146 = dma.hbm_to_vmem [thread:$0]  %s2, 16, %s144, [#allocation6]
        $region20: #{down_forward.7} parent=11 // pred_fallthru
          _
      $region12: #{down_forward.7} parent=5 // pred_fallthru
        _
      %p147 = scmp.lt.s32.totalorder %s16, 2
      // Predicated region
      $region21: #{down_forward.7} parent=5 // pred_check
        %p148 = pneg %p147
      $region22: #{down_forward.7} parent=5 // pred_check_branch
        %150 = sbr.rel (%p148) target = $region24
      $region23: #{down_forward.7} parent=5 // pred_region
        // Predicated region
        $region25: #{down_forward.7} parent=23 // pred_check
          %p151 = pneg %p36
        $region26: #{down_forward.7} parent=23 // pred_check_branch
          %153 = sbr.rel (%p151) target = $region28
        $region27: #{down_forward.7} parent=23 // pred_region
          %s154 = sand.u32 %s26, 1
          %s155 = scalar_lea.sflag [#allocation3], %s154
          %s156 = sand.u32 %s26, 1
          %s157 = smul.addr %s156, 80
          %s158 = scalar_lea.vmem [#allocation2], %s157
          %s160 = ssub.s32 1280, 1280
          %161 = vsyncadd %s155, %s160
          %s162 = smul.addr %s16, 10
          %s163 = smul.addr %s162, 128
          %s164 = scalar_lea.hbm %s0, %s163
          %s165 = sshll.u32 %s158, 4
          %s166 = int_to_ptr.vmem [resolvable:$true] %s165
          %171 = dma.hbm_to_vmem [thread:$0]  %s164, 1280, %s166, %s155, 128, 128, 8
        $region28: #{down_forward.7} parent=23 // pred_fallthru
          _
      $region24: #{down_forward.7} parent=5 // pred_fallthru
        _
      %p172 = scmp.le.s32.totalorder 1, %s16
      %p173 = scmp.lt.s32.totalorder %s16, 3
      %p174 = pnand %p172, %p173
      %p175 = pneg %p174
      // Predicated region
      $region29: #{down_forward.7} parent=5 // pred_check
        _
      $region30: #{down_forward.7} parent=5 // pred_check_branch
        %177 = sbr.rel (%p174) target = $region32
      $region31: #{down_forward.7} parent=5 // pred_region
        %s178 = ssub.s32 %s16, 1
        %s179 = sand.u32 %s29, 1
        %s180 = scalar_lea.sflag [#allocation3], %s179
        %s181 = sand.u32 %s29, 1
        %s182 = smul.addr %s181, 80
        %s183 = scalar_lea.vmem [#allocation2], %s182
        // Predicated region
        $region33: #{down_forward.7} parent=31 // pred_check
          %p184 = pneg %p42
        $region34: #{down_forward.7} parent=31 // pred_check_branch
          %186 = sbr.rel (%p184) target = $region36
        $region35: #{down_forward.7} parent=31 // pred_region
          %187 = dma.done %s180, 1280
        $region36: #{down_forward.7} parent=31 // pred_fallthru
          _
        // Predicated region
        $region37: #{down_forward.7} parent=31 // pred_check
          %p188 = pneg %p63
        $region38: #{down_forward.7} parent=31 // pred_check_branch
          %190 = sbr.rel (%p188) target = $region40
        $region39: #{down_forward.7} parent=31 // pred_region
          %191 = dma.done [#allocation6], 16
        $region40: #{down_forward.7} parent=31 // pred_fallthru
          _
        // Predicated region
        $region41: #{down_forward.7} parent=31 // pred_check
          %p192 = pneg %p84
        $region42: #{down_forward.7} parent=31 // pred_check_branch
          %194 = sbr.rel (%p192) target = $region44
        $region43: #{down_forward.7} parent=31 // pred_region
          %195 = dma.done [#allocation6], 16
        $region44: #{down_forward.7} parent=31 // pred_fallthru
          _
        %s196 = sand.u32 %s29, 1
        %s197 = scalar_lea.sflag [#allocation3], %s196
        %s198 = sand.u32 %s29, 1
        %s199 = smul.addr %s198, 80
        %s200 = scalar_lea.vmem [#allocation2], %s199
        %p201 = pneg %p42
        %p202 = pneg %p39
        %p203 = pneg %p63
        %p204 = pneg %p60
        %p205 = pneg %p84
        %p206 = pneg %p81
        %p207 = pneg %p110
        %p208 = pneg %p107
        %s209 = sand.u32 %s97, 1
        %s210 = scalar_lea.sflag [#allocation4], %s209
        %s211 = sand.u32 %s97, 1
        %s212 = smul.addr %s211, 80
        %s213 = scalar_lea.vmem [#allocation8], %s212
        %v214 = vld [vmem:[%s183] sm:$0xff]
        %v215 = vld [vmem:[%s183 + $0x8] sm:$0xff]
        %v216 = vld [vmem:[%s183 + $0x10] sm:$0xff]
        %v217 = vld [vmem:[%s183 + $0x18] sm:$0xff]
        %v218 = vld [vmem:[%s183 + $0x20] sm:$0xff]
        %v219 = vld [vmem:[%s183 + $0x28] sm:$0xff]
        %v220 = vld [vmem:[%s183 + $0x30] sm:$0xff]
        %v221 = vld [vmem:[%s183 + $0x38] sm:$0xff]
        %v222 = vld [vmem:[%s183 + $0x40] sm:$0xff]
        %v223 = vld [vmem:[%s183 + $0x48] sm:$0xff]
        %v224 = vld [vmem:[#allocation5] sm:$0x1]
        %v225 = vld [vmem:[#allocation7] sm:$0x1]
        %v227 = vlaneseq
        %v228 = vshrl.u32 %v227, 7
        %v229 = vsub.s32 0, %v228
        %v230 = vrot.slane %v224, %v229
        %v232 = vmul.f32 %v214, %v230
        %v233 = vmul.f32 %v215, %v230
        %v234 = vmul.f32 %v216, %v230
        %v235 = vmul.f32 %v217, %v230
        %v236 = vmul.f32 %v218, %v230
        %v237 = vmul.f32 %v219, %v230
        %v238 = vmul.f32 %v220, %v230
        %v239 = vmul.f32 %v221, %v230
        %v240 = vmul.f32 %v222, %v230
        %v241 = vmul.f32 %v223, %v230
        %v243 = vlaneseq
        %v244 = vshrl.u32 %v243, 7
        %v245 = vsub.s32 0, %v244
        %v246 = vrot.slane %v225, %v245
        %v248 = vadd.f32 %v232, %v246
        %v249 = vadd.f32 %v233, %v246
        %v250 = vadd.f32 %v234, %v246
        %v251 = vadd.f32 %v235, %v246
        %v252 = vadd.f32 %v236, %v246
        %v253 = vadd.f32 %v237, %v246
        %v254 = vadd.f32 %v238, %v246
        %v255 = vadd.f32 %v239, %v246
        %v256 = vadd.f32 %v240, %v246
        %v257 = vadd.f32 %v241, %v246
        %vm258 = vcmp.ge.f32.partialorder %v248, 0.0
        %vm259 = vcmp.ge.f32.partialorder %v249, 0.0
        %vm260 = vcmp.ge.f32.partialorder %v250, 0.0
        %vm261 = vcmp.ge.f32.partialorder %v251, 0.0
        %vm262 = vcmp.ge.f32.partialorder %v252, 0.0
        %vm263 = vcmp.ge.f32.partialorder %v253, 0.0
        %vm264 = vcmp.ge.f32.partialorder %v254, 0.0
        %vm265 = vcmp.ge.f32.partialorder %v255, 0.0
        %vm266 = vcmp.ge.f32.partialorder %v256, 0.0
        %vm267 = vcmp.ge.f32.partialorder %v257, 0.0
        %v268 = vmul.f32 %v248, 0.2
        %v269 = vmul.f32 %v249, 0.2
        %v270 = vmul.f32 %v250, 0.2
        %v271 = vmul.f32 %v251, 0.2
        %v272 = vmul.f32 %v252, 0.2
        %v273 = vmul.f32 %v253, 0.2
        %v274 = vmul.f32 %v254, 0.2
        %v275 = vmul.f32 %v255, 0.2
        %v276 = vmul.f32 %v256, 0.2
        %v277 = vmul.f32 %v257, 0.2
        %v278 = vsel %vm258, %v248, %v268
        %v279 = vsel %vm259, %v249, %v269
        %v280 = vsel %vm260, %v250, %v270
        %v281 = vsel %vm261, %v251, %v271
        %v282 = vsel %vm262, %v252, %v272
        %v283 = vsel %vm263, %v253, %v273
        %v284 = vsel %vm264, %v254, %v274
        %v285 = vsel %vm265, %v255, %v275
        %v286 = vsel %vm266, %v256, %v276
        %v287 = vsel %vm267, %v257, %v277
        %288 = vst [vmem:[%s213] sm:$0xff] %v278
        %289 = vst [vmem:[%s213 + $0x8] sm:$0xff] %v279
        %290 = vst [vmem:[%s213 + $0x10] sm:$0xff] %v280
        %291 = vst [vmem:[%s213 + $0x18] sm:$0xff] %v281
        %292 = vst [vmem:[%s213 + $0x20] sm:$0xff] %v282
        %293 = vst [vmem:[%s213 + $0x28] sm:$0xff] %v283
        %294 = vst [vmem:[%s213 + $0x30] sm:$0xff] %v284
        %295 = vst [vmem:[%s213 + $0x38] sm:$0xff] %v285
        %296 = vst [vmem:[%s213 + $0x40] sm:$0xff] %v286
        %297 = vst [vmem:[%s213 + $0x48] sm:$0xff] %v287
        %s298 = sand.u32 %s97, 1
        %s299 = scalar_lea.sflag [#allocation4], %s298
        %s300 = sand.u32 %s97, 1
        %s301 = smul.addr %s300, 80
        %s302 = scalar_lea.vmem [#allocation8], %s301
        // Predicated region
        $region45: #{down_forward.7} parent=31 // pred_check
          %p303 = pneg %p107
        $region46: #{down_forward.7} parent=31 // pred_check_branch
          %305 = sbr.rel (%p303) target = $region48
        $region47: #{down_forward.7} parent=31 // pred_region
          %s307 = ssub.s32 1280, 1280
          %308 = vsyncadd %s299, %s307
          %s309 = smul.addr %s21, 10
          %s310 = smul.addr %s309, 128
          %s311 = scalar_lea.hbm %s3, %s310
          %s312 = sshll.u32 %s302, 4
          %s313 = int_to_ptr.vmem [resolvable:$true] %s312
          %318 = dma.vmem_to_hbm [thread:$0]  %s313, 1280, %s311, %s299, 128, 128, 8
        $region48: #{down_forward.7} parent=31 // pred_fallthru
          _
      $region32: #{down_forward.7} parent=5 // pred_fallthru
        _
      %p319 = scmp.le.s32.totalorder 2, %s16
      // Predicated region
      $region49: #{down_forward.7} parent=5 // pred_check
        %p320 = pneg %p319
      $region50: #{down_forward.7} parent=5 // pred_check_branch
        %322 = sbr.rel (%p320) target = $region52
      $region51: #{down_forward.7} parent=5 // pred_region
        %s323 = ssub.s32 %s16, 2
        // Predicated region
        $region53: #{down_forward.7} parent=51 // pred_check
          %p324 = pneg %p113
        $region54: #{down_forward.7} parent=51 // pred_check_branch
          %326 = sbr.rel (%p324) target = $region56
        $region55: #{down_forward.7} parent=51 // pred_region
          %s327 = sand.u32 %s98, 1
          %s328 = scalar_lea.sflag [#allocation4], %s327
          %s329 = sand.u32 %s98, 1
          %s330 = smul.addr %s329, 80
          %s331 = scalar_lea.vmem [#allocation8], %s330
          %332 = dma.done %s328, 1280
        $region56: #{down_forward.7} parent=51 // pred_fallthru
          _
      $region52: #{down_forward.7} parent=5 // pred_fallthru
        _
    $region6: #{down_forward.7} parent=1 // loop_footer
      %s20 = sadd.s32 1, %s16
    $region7: #{down_forward.7} parent=1 // loop_footer_branch
      %15 = sbr.rel target = $region3
    $region8: #{down_forward.7} parent=1 // loop_exit
      _
    %333 = vsyncpa [#allocation3], 1
    %s334 = scalar_lea.sflag [#allocation3], 1
    %335 = vsyncpa %s334, 1
    %336 = vsyncpa [#allocation6], 1
    %337 = vsyncpa [#allocation4], 1
    %s338 = scalar_lea.sflag [#allocation4], 1
    %339 = vsyncpa %s338, 1

// kernel: down_forward.6
$region0: #{down_forward.6}
  #allocation0 [shape = 'u32[]', space=smem, size = 0x4, offset = 0x4, fixed_abs, tag = 'smem constant byte address 0x4 - core index']
  #allocation1 [shape = 'u32[144,128]{1,0:T(1,128)}', space=vmem, size = 0x12000, scoped, tag = 'internal scratch']
  %s0 = inlined_call_operand.hbm [shape: bf16[2,104,128], index: 0, kind: input, shape index: {}]
  %s1 = inlined_call_operand.hbm [shape: bf16[3,3,128,128], index: 1, kind: input, shape index: {}]
  %s2 = inlined_call_operand.hbm [shape: f32[80,1], index: 2, kind: input, shape index: {}]
  %s3 = inlined_call_operand.hbm [shape: f32[2,80,128], index: 3, kind: output, shape index: {0}]
  %s4 = inlined_call_operand.hbm [shape: f32[2,2,128], index: 4, kind: output, shape index: {1}]
  %5 = xla_tuple %s3, %s4
  %s6 = sld [smem:[#allocation0]]
  $region65: #{down_forward.6} parent=0
    _
  %s8 = ssub.s32 1, %s6
  %s9 = scalar_select 0, %s8, %s6
  $region1: #{down_forward.6} parent=0
    #allocation2 [shape = 'u8[53248]{0}', space=vmem, size = 0xd000, scoped, tag = 'input window, operand 0']
    #allocation3 [shape = 's32[2]{0}', space=sflag, size = 0x8, scoped, tag = 'scoped memory for down_forward.6']
    #allocation4 [shape = 's32[2]{0}', space=sflag, size = 0x8, scoped, tag = 'scoped memory for down_forward.6']
    #allocation5 [shape = 'u8[294912]{0}', space=vmem, size = 0x48000, scoped, tag = 'input window, operand 1, single buffered']
    #allocation6 [shape = 's32[1]{0}', space=sflag, size = 0x4, scoped, tag = 'scoped memory for down_forward.6']
    #allocation7 [shape = 'u8[40960]{0}', space=vmem, size = 0xa000, scoped, tag = 'input window, operand 2, single buffered']
    #allocation8 [shape = 'u8[81920]{0}', space=vmem, size = 0x14000, scoped, tag = 'output window, operand 0']
    #allocation9 [shape = 'u8[2048]{0}', space=vmem, size = 0x800, scoped, tag = 'output window, operand 1']
    #allocation10 [shape = 's32[2]{0}', space=sflag, size = 0x8, scoped, tag = 'scoped memory for down_forward.6']
    %10 = vsyncpa [#allocation3], 0
    %s11 = scalar_lea.sflag [#allocation3], 1
    %12 = vsyncpa %s11, 0
    %13 = vsyncpa [#allocation6], 0
    %14 = vsyncpa [#allocation4], 0
    %s15 = scalar_lea.sflag [#allocation4], 1
    %16 = vsyncpa %s15, 0
    %17 = vsyncpa [#allocation10], 0
    %s18 = scalar_lea.sflag [#allocation10], 1
    %19 = vsyncpa %s18, 0
    loop: start=0, step=1, limit=4
    $region2: #{down_forward.6} parent=1 // loop_pre_header
      _
    $region3: #{down_forward.6} parent=1 // loop_header
      %s21 = sphi 0, %s25
      %p22 = scmp.ge.s32.totalorder %s21, 4
      %s31 = sphi 0, %s33
      %s34 = sphi 0, %s31
      %s35 = sphi 0, %s34
      %s51 = sphi 0, %s35
      %s55 = sphi 0, %s55
      %s57 = sphi 0, %s55
      %s58 = sphi 0, %s57
      %s72 = sphi 0, %s58
      %s76 = sphi 0, %s76
      %s78 = sphi 0, %s76
      %s79 = sphi 0, %s78
      %s93 = sphi 0, %s79
      %s99 = sphi 0, %s101
      %s102 = sphi 0, %s99
      %s103 = sphi 0, %s102
      %s119 = sphi 0, %s103
      %s125 = sphi 0, %s127
      %s128 = sphi 0, %s125
      %s129 = sphi 0, %s128
      %s145 = sphi 0, %s129
    $region4: #{down_forward.6} parent=1 // loop_header_branch
      %24 = sbr.rel (%p22) target = $region8
    $region5: #{down_forward.6} parent=1 // loop_body
      %s26 = ssub.s32 %s21, 1
      %s27 = ssub.s32 %s21, 2
      %s28 = sadd.s32 %s21, 1
      %s29 = ssub.s32 %s21, %s28
      %p30 = scmp.eq.s32.totalorder %s29, 0
      %s32 = sadd.s32 %s31, 1
      %s33 = scalar_select %p30, %s31, %s32
      %p36 = pneg %p30
      %p37 = scmp.eq.s32.totalorder %s21, 1
      %p38 = por %p36, %p37
      %p39 = scmp.ne.s32.totalorder %s31, %s34
      %p40 = scmp.eq.s32.totalorder %s21, 0
      %p41 = por %p39, %p40
      %p42 = scmp.ne.s32.totalorder %s31, %s34
      %p43 = scmp.eq.s32.totalorder %s26, 1
      %p44 = por %p42, %p43
      %p45 = scmp.ne.s32.totalorder %s34, %s35
      %p46 = scmp.eq.s32.totalorder %s26, 0
      %p47 = por %p45, %p46
      %p48 = scmp.ne.s32.totalorder %s34, %s35
      %p49 = scmp.eq.s32.totalorder %s27, 1
      %p50 = por %p48, %p49
      %p52 = scmp.ne.s32.totalorder %s35, %s51
      %p53 = scmp.eq.s32.totalorder %s27, 0
      %p54 = por %p52, %p53
      %s56 = sadd.s32 %s55, 1
      %p59 = scmp.eq.s32.totalorder %s21, 1
      %p60 = scmp.ne.s32.totalorder %s55, %s57
      %p61 = scmp.eq.s32.totalorder %s21, 0
      %p62 = por %p60, %p61
      %p63 = scmp.ne.s32.totalorder %s55, %s57
      %p64 = scmp.eq.s32.totalorder %s26, 1
      %p65 = por %p63, %p64
      %p66 = scmp.ne.s32.totalorder %s57, %s58
      %p67 = scmp.eq.s32.totalorder %s26, 0
      %p68 = por %p66, %p67
      %p69 = scmp.ne.s32.totalorder %s57, %s58
      %p70 = scmp.eq.s32.totalorder %s27, 1
      %p71 = por %p69, %p70
      %p73 = scmp.ne.s32.totalorder %s58, %s72
      %p74 = scmp.eq.s32.totalorder %s27, 0
      %p75 = por %p73, %p74
      %s77 = sadd.s32 %s76, 1
      %p80 = scmp.eq.s32.totalorder %s21, 1
      %p81 = scmp.ne.s32.totalorder %s76, %s78
      %p82 = scmp.eq.s32.totalorder %s21, 0
      %p83 = por %p81, %p82
      %p84 = scmp.ne.s32.totalorder %s76, %s78
      %p85 = scmp.eq.s32.totalorder %s26, 1
      %p86 = por %p84, %p85
      %p87 = scmp.ne.s32.totalorder %s78, %s79
      %p88 = scmp.eq.s32.totalorder %s26, 0
      %p89 = por %p87, %p88
      %p90 = scmp.ne.s32.totalorder %s78, %s79
      %p91 = scmp.eq.s32.totalorder %s27, 1
      %p92 = por %p90, %p91
      %p94 = scmp.ne.s32.totalorder %s79, %s93
      %p95 = scmp.eq.s32.totalorder %s27, 0
      %p96 = por %p94, %p95
      %s97 = ssub.s32 %s21, %s28
      %p98 = scmp.eq.s32.totalorder %s97, 0
      %s100 = sadd.s32 %s99, 1
      %s101 = scalar_select %p98, %s99, %s100
      %p104 = pneg %p98
      %p105 = scmp.eq.s32.totalorder %s21, 1
      %p106 = por %p104, %p105
      %p107 = scmp.ne.s32.totalorder %s99, %s102
      %p108 = scmp.eq.s32.totalorder %s21, 0
      %p109 = por %p107, %p108
      %p110 = scmp.ne.s32.totalorder %s99, %s102
      %p111 = scmp.eq.s32.totalorder %s26, 1
      %p112 = por %p110, %p111
      %p113 = scmp.ne.s32.totalorder %s102, %s103
      %p114 = scmp.eq.s32.totalorder %s26, 0
      %p115 = por %p113, %p114
      %p116 = scmp.ne.s32.totalorder %s102, %s103
      %p117 = scmp.eq.s32.totalorder %s27, 1
      %p118 = por %p116, %p117
      %p120 = scmp.ne.s32.totalorder %s103, %s119
      %p121 = scmp.eq.s32.totalorder %s27, 0
      %p122 = por %p120, %p121
      %s123 = ssub.s32 %s21, %s28
      %p124 = scmp.eq.s32.totalorder %s123, 0
      %s126 = sadd.s32 %s125, 1
      %s127 = scalar_select %p124, %s125, %s126
      %p130 = pneg %p124
      %p131 = scmp.eq.s32.totalorder %s21, 1
      %p132 = por %p130, %p131
      %p133 = scmp.ne.s32.totalorder %s125, %s128
      %p134 = scmp.eq.s32.totalorder %s21, 0
      %p135 = por %p133, %p134
      %p136 = scmp.ne.s32.totalorder %s125, %s128
      %p137 = scmp.eq.s32.totalorder %s26, 1
      %p138 = por %p136, %p137
      %p139 = scmp.ne.s32.totalorder %s128, %s129
      %p140 = scmp.eq.s32.totalorder %s26, 0
      %p141 = por %p139, %p140
      %p142 = scmp.ne.s32.totalorder %s128, %s129
      %p143 = scmp.eq.s32.totalorder %s27, 1
      %p144 = por %p142, %p143
      %p146 = scmp.ne.s32.totalorder %s129, %s145
      %p147 = scmp.eq.s32.totalorder %s27, 0
      %p148 = por %p146, %p147
      %p149 = scmp.le.s32.totalorder 1, %s21
      %p150 = scmp.lt.s32.totalorder %s21, 3
      %p151 = pnand %p149, %p150
      %p152 = pneg %p151
      // Predicated region
      $region9: #{down_forward.6} parent=5 // pred_check
        _
      $region10: #{down_forward.6} parent=5 // pred_check_branch
        %154 = sbr.rel (%p151) target = $region12
      $region11: #{down_forward.6} parent=5 // pred_region
        %s155 = ssub.s32 %s21, 1
        // Predicated region
        $region13: #{down_forward.6} parent=11 // pred_check
          %p156 = pneg %p68
        $region14: #{down_forward.6} parent=11 // pred_check_branch
          %158 = sbr.rel (%p156) target = $region16
        $region15: #{down_forward.6} parent=11 // pred_region
          %s160 = ssub.s32 9216, 9216
          %161 = vsyncadd [#allocation6], %s160
          %s162 = sshll.u32 [#allocation5], 4
          %s163 = int_to_ptr.vmem [resolvable:$true] %s162
          %168 = dma.hbm_to_vmem [thread:$0]  %s1, 9216, %s163, [#allocation6], 64, 64, 4
        $region16: #{down_forward.6} parent=11 // pred_fallthru
          _
        // Predicated region
        $region17: #{down_forward.6} parent=11 // pred_check
          %p169 = pneg %p89
        $region18: #{down_forward.6} parent=11 // pred_check_branch
          %171 = sbr.rel (%p169) target = $region20
        $region19: #{down_forward.6} parent=11 // pred_region
          %s173 = ssub.s32 1280, 1280
          %174 = vsyncadd [#allocation6], %s173
          %s175 = sshll.u32 [#allocation7], 4
          %s176 = int_to_ptr.vmem [resolvable:$true] %s175
          %181 = dma.hbm_to_vmem [thread:$0]  %s2, 1280, %s176, [#allocation6], 128, 128, 8
        $region20: #{down_forward.6} parent=11 // pred_fallthru
          _
      $region12: #{down_forward.6} parent=5 // pred_fallthru
        _
      %p182 = scmp.lt.s32.totalorder %s21, 2
      // Predicated region
      $region21: #{down_forward.6} parent=5 // pred_check
        %p183 = pneg %p182
      $region22: #{down_forward.6} parent=5 // pred_check_branch
        %185 = sbr.rel (%p183) target = $region24
      $region23: #{down_forward.6} parent=5 // pred_region
        // Predicated region
        $region25: #{down_forward.6} parent=23 // pred_check
          %p186 = pneg %p41
        $region26: #{down_forward.6} parent=23 // pred_check_branch
          %188 = sbr.rel (%p186) target = $region28
        $region27: #{down_forward.6} parent=23 // pred_region
          %s189 = sand.u32 %s31, 1
          %s190 = scalar_lea.sflag [#allocation3], %s189
          %s191 = sand.u32 %s31, 1
          %s192 = smul.addr %s191, 52
          %s193 = scalar_lea.vmem [#allocation2], %s192
          %s195 = ssub.s32 832, 832
          %196 = vsyncadd %s190, %s195
          %s197 = smul.addr %s21, 13
          %s198 = smul.addr %s197, 64
          %s199 = scalar_lea.hbm %s0, %s198
          %s200 = sshll.u32 %s193, 4
          %s201 = int_to_ptr.vmem [resolvable:$true] %s200
          %206 = dma.hbm_to_vmem [thread:$0]  %s199, 832, %s201, %s190, 64, 64, 4
        $region28: #{down_forward.6} parent=23 // pred_fallthru
          _
      $region24: #{down_forward.6} parent=5 // pred_fallthru
        _
      %p207 = scmp.le.s32.totalorder 1, %s21
      %p208 = scmp.lt.s32.totalorder %s21, 3
      %p209 = pnand %p207, %p208
      %p210 = pneg %p209
      // Predicated region
      $region29: #{down_forward.6} parent=5 // pred_check
        _
      $region30: #{down_forward.6} parent=5 // pred_check_branch
        %212 = sbr.rel (%p209) target = $region32
      $region31: #{down_forward.6} parent=5 // pred_region
        %s213 = ssub.s32 %s21, 1
        %s214 = sand.u32 %s34, 1
        %s215 = scalar_lea.sflag [#allocation3], %s214
        %s216 = sand.u32 %s34, 1
        %s217 = smul.addr %s216, 52
        %s218 = scalar_lea.vmem [#allocation2], %s217
        // Predicated region
        $region33: #{down_forward.6} parent=31 // pred_check
          %p219 = pneg %p47
        $region34: #{down_forward.6} parent=31 // pred_check_branch
          %221 = sbr.rel (%p219) target = $region36
        $region35: #{down_forward.6} parent=31 // pred_region
          %222 = dma.done %s215, 832
        $region36: #{down_forward.6} parent=31 // pred_fallthru
          _
        // Predicated region
        $region37: #{down_forward.6} parent=31 // pred_check
          %p223 = pneg %p68
        $region38: #{down_forward.6} parent=31 // pred_check_branch
          %225 = sbr.rel (%p223) target = $region40
        $region39: #{down_forward.6} parent=31 // pred_region
          %226 = dma.done [#allocation6], 9216
        $region40: #{down_forward.6} parent=31 // pred_fallthru
          _
        // Predicated region
        $region41: #{down_forward.6} parent=31 // pred_check
          %p227 = pneg %p89
        $region42: #{down_forward.6} parent=31 // pred_check_branch
          %229 = sbr.rel (%p227) target = $region44
        $region43: #{down_forward.6} parent=31 // pred_region
          %230 = dma.done [#allocation6], 1280
        $region44: #{down_forward.6} parent=31 // pred_fallthru
          _
        %s231 = sand.u32 %s34, 1
        %s232 = scalar_lea.sflag [#allocation3], %s231
        %s233 = sand.u32 %s34, 1
        %s234 = smul.addr %s233, 52
        %s235 = scalar_lea.vmem [#allocation2], %s234
        %p236 = pneg %p47
        %p237 = pneg %p44
        %p238 = pneg %p68
        %p239 = pneg %p65
        %p240 = pneg %p89
        %p241 = pneg %p86
        %p242 = pneg %p115
        %p243 = pneg %p112
        %s244 = sand.u32 %s102, 1
        %s245 = scalar_lea.sflag [#allocation4], %s244
        %s246 = sand.u32 %s102, 1
        %s247 = smul.addr %s246, 80
        %s248 = scalar_lea.vmem [#allocation8], %s247
        %p249 = pneg %p141
        %p250 = pneg %p138
        %s251 = sand.u32 %s128, 1
        %s252 = scalar_lea.sflag [#allocation10], %s251
        %s253 = sand.u32 %s128, 1
        %s254 = smul.addr %s253, 2
        %s255 = scalar_lea.vmem [#allocation9], %s254
        %v257 = vld [vmem:[%s218] sm:$0xf]
        %v258 = vld [vmem:[%s218 + $0x4] sm:$0xf]
        %v259 = vld [vmem:[%s218 + $0x8] sm:$0xf]
        %v260 = vld [vmem:[%s218 + $0xc] sm:$0xf]
        %v261 = vld [vmem:[%s218 + $0x10] sm:$0xf]
        %v262 = vld [vmem:[%s218 + $0x14] sm:$0xf]
        %v263 = vld [vmem:[%s218 + $0x18] sm:$0xf]
        %v264 = vld [vmem:[%s218 + $0x1c] sm:$0xf]
        %v265 = vld [vmem:[%s218 + $0x20] sm:$0xf]
        %v266 = vld [vmem:[%s218 + $0x24] sm:$0xf]
        %v267 = vld [vmem:[#allocation5] sm:$0xf]
        %v268 = vld [vmem:[#allocation5 + $0x4] sm:$0xf]
        %v269 = vld [vmem:[#allocation5 + $0x8] sm:$0xf]
        %v270 = vld [vmem:[#allocation5 + $0xc] sm:$0xf]
        %v271 = vld [vmem:[#allocation5 + $0x10] sm:$0xf]
        %v272 = vld [vmem:[#allocation5 + $0x14] sm:$0xf]
        %v273 = vld [vmem:[#allocation5 + $0x18] sm:$0xf]
        %v274 = vld [vmem:[#allocation5 + $0x1c] sm:$0xf]
        %v275 = vld [vmem:[#allocation5 + $0x20] sm:$0xf]
        %v276 = vld [vmem:[#allocation5 + $0x24] sm:$0xf]
        %v277 = vld [vmem:[#allocation5 + $0x28] sm:$0xf]
        %v278 = vld [vmem:[#allocation5 + $0x2c] sm:$0xf]
        %v279 = vld [vmem:[#allocation5 + $0x30] sm:$0xf]
        %v280 = vld [vmem:[#allocation5 + $0x34] sm:$0xf]
        %v281 = vld [vmem:[#allocation5 + $0x38] sm:$0xf]
        %v282 = vld [vmem:[#allocation5 + $0x3c] sm:$0xf]
        %v283 = vld [vmem:[%s218 + $0x28] sm:$0x1]
        %s284 = scalar_lea.vmem [#allocation5], 64
        %v285 = vld [vmem:[%s284] sm:$0xf]
        %v286 = vld [vmem:[%s284 + $0x4] sm:$0xf]
        %v287 = vld [vmem:[%s284 + $0x8] sm:$0xf]
        %v288 = vld [vmem:[%s284 + $0xc] sm:$0xf]
        %v289 = vld [vmem:[%s284 + $0x10] sm:$0xf]
        %v290 = vld [vmem:[%s284 + $0x14] sm:$0xf]
        %v291 = vld [vmem:[%s284 + $0x18] sm:$0xf]
        %v292 = vld [vmem:[%s284 + $0x1c] sm:$0xf]
        %v293 = vld [vmem:[%s284 + $0x20] sm:$0xf]
        %v294 = vld [vmem:[%s284 + $0x24] sm:$0xf]
        %v295 = vld [vmem:[%s284 + $0x28] sm:$0xf]
        %v296 = vld [vmem:[%s284 + $0x2c] sm:$0xf]
        %v297 = vld [vmem:[%s284 + $0x30] sm:$0xf]
        %v298 = vld [vmem:[%s284 + $0x34] sm:$0xf]
        %v299 = vld [vmem:[%s284 + $0x38] sm:$0xf]
        %v300 = vld [vmem:[%s284 + $0x3c] sm:$0xf]
        %v312 = vunpack.c.l.b16 %v257
        %v313 = vunpack.c.l.b16 %v258
        %v314 = vunpack.c.l.b16 %v259
        %v315 = vunpack.c.l.b16 %v260
        %v316 = vunpack.c.l.b16 %v261
        %v317 = vunpack.c.l.b16 %v262
        %v318 = vunpack.c.l.b16 %v263
        %v319 = vunpack.c.l.b16 %v264
        %v320 = vunpack.c.l.b16 %v265
        %v321 = vunpack.c.l.b16 %v266
        %v322 = vunpack.c.l.b16 %v283
        %v323 = vpack.c.b16 %v313, %v312
        %v324 = vpack.c.b16 %v315, %v314
        %v325 = vpack.c.b16 %v317, %v316
        %v326 = vpack.c.b16 %v319, %v318
        %v327 = vpack.c.b16 %v321, %v320
        %v328 = vpack.c.b16 %v322, %v322
        %vm329 = vsmask.f32 7424
        %v331 = vshrl.u32 %v323, 16
        %v333 = vshll.u32 %v323, 16
        %v335 = vrot.slane %v333, 1
        %v336 = vor.u32 %v331, %v335
        %v338 = vshll.u32 %v324, 16
        %v340 = vrot.slane %v338, 1
        %v341 = vsel %vm329, %v336, %v340
        %v342 = vshrl.u32 %v324, 16
        %v344 = vor.u32 %v342, %v340
        %v346 = vshll.u32 %v325, 16
        %v348 = vrot.slane %v346, 1
        %v349 = vsel %vm329, %v344, %v348
        %v350 = vshrl.u32 %v325, 16
        %v352 = vor.u32 %v350, %v348
        %v354 = vshll.u32 %v326, 16
        %v356 = vrot.slane %v354, 1
        %v357 = vsel %vm329, %v352, %v356
        %v358 = vshrl.u32 %v326, 16
        %v360 = vor.u32 %v358, %v356
        %v362 = vshll.u32 %v327, 16
        %v364 = vrot.slane %v362, 1
        %v365 = vsel %vm329, %v360, %v364
        %v366 = vshrl.u32 %v327, 16
        %v368 = vor.u32 %v366, %v364
        %v370 = vshll.u32 %v328, 16
        %v372 = vrot.slane %v370, 1
        %v373 = vsel %vm329, %v368, %v372
        %v395 = vunpack.c.l.b16 %v285
        %v396 = vunpack.c.l.b16 %v286
        %v397 = vunpack.c.l.b16 %v287
        %v398 = vunpack.c.l.b16 %v288
        %v399 = vunpack.c.l.b16 %v289
        %v400 = vunpack.c.l.b16 %v290
        %v401 = vunpack.c.l.b16 %v291
        %v402 = vunpack.c.l.b16 %v292
        %v403 = vunpack.c.l.b16 %v293
        %v404 = vunpack.c.l.b16 %v294
        %v405 = vunpack.c.l.b16 %v295
        %v406 = vunpack.c.l.b16 %v296
        %v407 = vunpack.c.l.b16 %v297
        %v408 = vunpack.c.l.b16 %v298
        %v409 = vunpack.c.l.b16 %v299
        %v410 = vunpack.c.l.b16 %v300
        %v411 = vpack.c.b16 %v396, %v395
        %v412 = vpack.c.b16 %v398, %v397
        %v413 = vpack.c.b16 %v400, %v399
        %v414 = vpack.c.b16 %v402, %v401
        %v415 = vpack.c.b16 %v404, %v403
        %v416 = vpack.c.b16 %v406, %v405
        %v417 = vpack.c.b16 %v408, %v407
        %v418 = vpack.c.b16 %v410, %v409
        %427 = vmatprep.subr.bf16.mxu0 0
        %428 = vmatpush1.bf16.msra.mxu0 %v411
        %429 = vmatprep.subr.bf16.mxu0 0
        %430 = vmatpush1.bf16.msra.mxu0 %v412
        %431 = vmatprep.subr.bf16.mxu0 0
        %432 = vmatpush1.bf16.msra.mxu0 %v413
        %433 = vmatprep.subr.bf16.mxu0 0
        %434 = vmatpush1.bf16.msra.mxu0 %v414
        %435 = vmatprep.subr.bf16.mxu0 0
        %436 = vmatpush1.bf16.msra.mxu0 %v415
        %437 = vmatprep.subr.bf16.mxu0 0
        %438 = vmatpush1.bf16.msra.mxu0 %v416
        %439 = vmatprep.subr.bf16.mxu0 0
        %440 = vmatpush1.bf16.msra.mxu0 %v417
        %441 = vmatprep.subr.bf16.mxu0 0
        %442 = vmatpush1.bf16.msra.mxu0 %v418
        %443 = vmatprep.subr.bf16.mxu0 0
        %444 = vmatpush1.bf16.msra.mxu0 0
        %445 = vmatprep.subr.bf16.mxu0 0
        %446 = vmatpush1.bf16.msra.mxu0 0
        %447 = vmatprep.subr.bf16.mxu0 0
        %448 = vmatpush1.bf16.msra.mxu0 0
        %449 = vmatprep.subr.bf16.mxu0 0
        %450 = vmatpush1.bf16.msra.mxu0 0
        %451 = vmatprep.subr.bf16.mxu0 0
        %452 = vmatpush1.bf16.msra.mxu0 0
        %453 = vmatprep.subr.bf16.mxu0 0
        %454 = vmatpush1.bf16.msra.mxu0 0
        %455 = vmatprep.subr.bf16.mxu0 0
        %456 = vmatpush1.bf16.msra.mxu0 0
        %457 = vmatprep.subr.bf16.mxu0 0
        %458 = vmatpush1.bf16.msra.mxu0 0
        %459 = vmatprep.mubr.bf16.mxu0 0
        %460 = vmatmul.mubr.bf16.gmra.mrb[0].mxu0 %v341
        %v461 = vpop.f32.mrb[0].mxu0
        %v462 = vadd.f32 0.0, %v461
        %v463 = vpop.f32.mrb[0].mxu0
        %v464 = vpop.f32.mrb[0].mxu0
        %v465 = vadd.f32 0.0, %v464
        %v466 = vpop.f32.mrb[0].mxu0
        %467 = vmatprep.mubr.bf16.mxu0 0
        %468 = vmatmul.mubr.bf16.gmra.mrb[0].mxu0 %v349
        %v469 = vpop.f32.mrb[0].mxu0
        %v470 = vadd.f32 0.0, %v469
        %v471 = vpop.f32.mrb[0].mxu0
        %v472 = vpop.f32.mrb[0].mxu0
        %v473 = vadd.f32 0.0, %v472
        %v474 = vpop.f32.mrb[0].mxu0
        %475 = vmatprep.mubr.bf16.mxu0 0
        %476 = vmatmul.mubr.bf16.gmra.mrb[0].mxu0 %v357
        %v477 = vpop.f32.mrb[0].mxu0
        %v478 = vadd.f32 0.0, %v477
        %v479 = vpop.f32.mrb[0].mxu0
        %v480 = vpop.f32.mrb[0].mxu0
        %v481 = vadd.f32 0.0, %v480
        %v482 = vpop.f32.mrb[0].mxu0
        %483 = vmatprep.mubr.bf16.mxu0 0
        %484 = vmatmul.mubr.bf16.gmra.mrb[0].mxu0 %v365
        %v485 = vpop.f32.mrb[0].mxu0
        %v486 = vadd.f32 0.0, %v485
        %v487 = vpop.f32.mrb[0].mxu0
        %v488 = vpop.f32.mrb[0].mxu0
        %v489 = vadd.f32 0.0, %v488
        %v490 = vpop.f32.mrb[0].mxu0
        %491 = vmatprep.mubr.bf16.mxu0 0
        %492 = vmatmul.mubr.bf16.gmra.mrb[0].mxu0 %v373
        %v493 = vpop.f32.mrb[0].mxu0
        %v494 = vadd.f32 0.0, %v493
        %v495 = vpop.f32.mrb[0].mxu0
        %v496 = vpop.f32.mrb[0].mxu0
        %v497 = vadd.f32 0.0, %v496
        %v498 = vpop.f32.mrb[0].mxu0
        %499 = vdwg.mxu0
        %v521 = vunpack.c.l.b16 %v267
        %v522 = vunpack.c.l.b16 %v268
        %v523 = vunpack.c.l.b16 %v269
        %v524 = vunpack.c.l.b16 %v270
        %v525 = vunpack.c.l.b16 %v271
        %v526 = vunpack.c.l.b16 %v272
        %v527 = vunpack.c.l.b16 %v273
        %v528 = vunpack.c.l.b16 %v274
        %v529 = vunpack.c.l.b16 %v275
        %v530 = vunpack.c.l.b16 %v276
        %v531 = vunpack.c.l.b16 %v277
        %v532 = vunpack.c.l.b16 %v278
        %v533 = vunpack.c.l.b16 %v279
        %v534 = vunpack.c.l.b16 %v280
        %v535 = vunpack.c.l.b16 %v281
        %v536 = vunpack.c.l.b16 %v282
        %v537 = vpack.c.b16 %v522, %v521
        %v538 = vpack.c.b16 %v524, %v523
        %v539 = vpack.c.b16 %v526, %v525
        %v540 = vpack.c.b16 %v528, %v527
        %v541 = vpack.c.b16 %v530, %v529
        %v542 = vpack.c.b16 %v532, %v531
        %v543 = vpack.c.b16 %v534, %v533
        %v544 = vpack.c.b16 %v536, %v535
        %553 = vmatprep.subr.bf16.mxu0 0
        %554 = vmatpush1.bf16.msra.mxu0 %v537
        %555 = vmatprep.subr.bf16.mxu0 0
        %556 = vmatpush1.bf16.msra.mxu0 %v538
        %557 = vmatprep.subr.bf16.mxu0 0
        %558 = vmatpush1.bf16.msra.mxu0 %v539
        %559 = vmatprep.subr.bf16.mxu0 0
        %560 = vmatpush1.bf16.msra.mxu0 %v540
        %561 = vmatprep.subr.bf16.mxu0 0
        %562 = vmatpush1.bf16.msra.mxu0 %v541
        %563 = vmatprep.subr.bf16.mxu0 0
        %564 = vmatpush1.bf16.msra.mxu0 %v542
        %565 = vmatprep.subr.bf16.mxu0 0
        %566 = vmatpush1.bf16.msra.mxu0 %v543
        %567 = vmatprep.subr.bf16.mxu0 0
        %568 = vmatpush1.bf16.msra.mxu0 %v544
        %569 = vmatprep.subr.bf16.mxu0 0
        %570 = vmatpush1.bf16.msra.mxu0 0
        %571 = vmatprep.subr.bf16.mxu0 0
        %572 = vmatpush1.bf16.msra.mxu0 0
        %573 = vmatprep.subr.bf16.mxu0 0
        %574 = vmatpush1.bf16.msra.mxu0 0
        %575 = vmatprep.subr.bf16.mxu0 0
        %576 = vmatpush1.bf16.msra.mxu0 0
        %577 = vmatprep.subr.bf16.mxu0 0
        %578 = vmatpush1.bf16.msra.mxu0 0
        %579 = vmatprep.subr.bf16.mxu0 0
        %580 = vmatpush1.bf16.msra.mxu0 0
        %581 = vmatprep.subr.bf16.mxu0 0
        %582 = vmatpush1.bf16.msra.mxu0 0
        %583 = vmatprep.subr.bf16.mxu0 0
        %584 = vmatpush1.bf16.msra.mxu0 0
        %585 = vmatprep.mubr.bf16.mxu0 0
        %586 = vmatmul.mubr.bf16.gmra.mrb[0].mxu0 %v323
        %v587 = vpop.f32.mrb[0].mxu0
        %v588 = vadd.f32 %v462, %v587
        %v589 = vpop.f32.mrb[0].mxu0
        %v590 = vpop.f32.mrb[0].mxu0
        %v591 = vadd.f32 %v465, %v590
        %v592 = vpop.f32.mrb[0].mxu0
        %593 = vmatprep.mubr.bf16.mxu0 0
        %594 = vmatmul.mubr.bf16.gmra.mrb[0].mxu0 %v324
        %v595 = vpop.f32.mrb[0].mxu0
        %v596 = vadd.f32 %v470, %v595
        %v597 = vpop.f32.mrb[0].mxu0
        %v598 = vpop.f32.mrb[0].mxu0
        %v599 = vadd.f32 %v473, %v598
        %v600 = vpop.f32.mrb[0].mxu0
        %601 = vmatprep.mubr.bf16.mxu0 0
        %602 = vmatmul.mubr.bf16.gmra.mrb[0].mxu0 %v325
        %v603 = vpop.f32.mrb[0].mxu0
        %v604 = vadd.f32 %v478, %v603
        %v605 = vpop.f32.mrb[0].mxu0
        %v606 = vpop.f32.mrb[0].mxu0
        %v607 = vadd.f32 %v481, %v606
        %v608 = vpop.f32.mrb[0].mxu0
        %609 = vmatprep.mubr.bf16.mxu0 0
        %610 = vmatmul.mubr.bf16.gmra.mrb[0].mxu0 %v326
        %v611 = vpop.f32.mrb[0].mxu0
        %v612 = vadd.f32 %v486, %v611
        %v613 = vpop.f32.mrb[0].mxu0
        %v614 = vpop.f32.mrb[0].mxu0
        %v615 = vadd.f32 %v489, %v614
        %v616 = vpop.f32.mrb[0].mxu0
        %617 = vmatprep.mubr.bf16.mxu0 0
        %618 = vmatmul.mubr.bf16.gmra.mrb[0].mxu0 %v327
        %v619 = vpop.f32.mrb[0].mxu0
        %v620 = vadd.f32 %v494, %v619
        %v621 = vpop.f32.mrb[0].mxu0
        %v622 = vpop.f32.mrb[0].mxu0
        %v623 = vadd.f32 %v497, %v622
        %v624 = vpop.f32.mrb[0].mxu0
        %625 = vdwg.mxu0
        %v626 = vld [vmem:[%s218] sm:$0xe]
        %s627 = scalar_lea.vmem [#allocation5], 128
        %v628 = vld [vmem:[%s627] sm:$0xf]
        %v629 = vld [vmem:[%s627 + $0x4] sm:$0xf]
        %v630 = vld [vmem:[%s627 + $0x8] sm:$0xf]
        %v631 = vld [vmem:[%s627 + $0xc] sm:$0xf]
        %v632 = vld [vmem:[%s627 + $0x10] sm:$0xf]
        %v633 = vld [vmem:[%s627 + $0x14] sm:$0xf]
        %v634 = vld [vmem:[%s627 + $0x18] sm:$0xf]
        %v635 = vld [vmem:[%s627 + $0x1c] sm:$0xf]
        %v636 = vld [vmem:[%s627 + $0x20] sm:$0xf]
        %v637 = vld [vmem:[%s627 + $0x24] sm:$0xf]
        %v638 = vld [vmem:[%s627 + $0x28] sm:$0xf]
        %v639 = vld [vmem:[%s627 + $0x2c] sm:$0xf]
        %v640 = vld [vmem:[%s627 + $0x30] sm:$0xf]
        %v641 = vld [vmem:[%s627 + $0x34] sm:$0xf]
        %v642 = vld [vmem:[%s627 + $0x38] sm:$0xf]
        %v643 = vld [vmem:[%s627 + $0x3c] sm:$0xf]
        %v645 = vunpack.c.l.b16 %v626
        %v646 = vpack.c.b16 %v313, %v645
        %vm647 = vcmask 1046528
        %v648 = vrot.slane %v646, 1
        %v649 = vrot.slane %v324, 1
        %v650 = vsel %vm647, %v648, %v649
        %v651 = vrot.slane %v325, 1
        %v652 = vsel %vm647, %v649, %v651
        %v653 = vrot.slane %v326, 1
        %v654 = vsel %vm647, %v651, %v653
        %v655 = vrot.slane %v327, 1
        %v656 = vsel %vm647, %v653, %v655
        %v657 = vrot.slane %v328, 1
        %v658 = vsel %vm647, %v655, %v657
        %v680 = vunpack.c.l.b16 %v628
        %v681 = vunpack.c.l.b16 %v629
        %v682 = vunpack.c.l.b16 %v630
        %v683 = vunpack.c.l.b16 %v631
        %v684 = vunpack.c.l.b16 %v632
        %v685 = vunpack.c.l.b16 %v633
        %v686 = vunpack.c.l.b16 %v634
        %v687 = vunpack.c.l.b16 %v635
        %v688 = vunpack.c.l.b16 %v636
        %v689 = vunpack.c.l.b16 %v637
        %v690 = vunpack.c.l.b16 %v638
        %v691 = vunpack.c.l.b16 %v639
        %v692 = vunpack.c.l.b16 %v640
        %v693 = vunpack.c.l.b16 %v641
        %v694 = vunpack.c.l.b16 %v642
        %v695 = vunpack.c.l.b16 %v643
        %v696 = vpack.c.b16 %v681, %v680
        %v697 = vpack.c.b16 %v683, %v682
        %v698 = vpack.c.b16 %v685, %v684
        %v699 = vpack.c.b16 %v687, %v686
        %v700 = vpack.c.b16 %v689, %v688
        %v701 = vpack.c.b16 %v691, %v690
        %v702 = vpack.c.b16 %v693, %v692
        %v703 = vpack.c.b16 %v695, %v694
        %712 = vmatprep.subr.bf16.mxu0 0
        %713 = vmatpush1.bf16.msra.mxu0 %v696
        %714 = vmatprep.subr.bf16.mxu0 0
        %715 = vmatpush1.bf16.msra.mxu0 %v697
        %716 = vmatprep.subr.bf16.mxu0 0
        %717 = vmatpush1.bf16.msra.mxu0 %v698
        %718 = vmatprep.subr.bf16.mxu0 0
        %719 = vmatpush1.bf16.msra.mxu0 %v699
        %720 = vmatprep.subr.bf16.mxu0 0
        %721 = vmatpush1.bf16.msra.mxu0 %v700
        %722 = vmatprep.subr.bf16.mxu0 0
        %723 = vmatpush1.bf16.msra.mxu0 %v701
        %724 = vmatprep.subr.bf16.mxu0 0
        %725 = vmatpush1.bf16.msra.mxu0 %v702
        %726 = vmatprep.subr.bf16.mxu0 0
        %727 = vmatpush1.bf16.msra.mxu0 %v703
        %728 = vmatprep.subr.bf16.mxu0 0
        %729 = vmatpush1.bf16.msra.mxu0 0
        %730 = vmatprep.subr.bf16.mxu0 0
        %731 = vmatpush1.bf16.msra.mxu0 0
        %732 = vmatprep.subr.bf16.mxu0 0
        %733 = vmatpush1.bf16.msra.mxu0 0
        %734 = vmatprep.subr.bf16.mxu0 0
        %735 = vmatpush1.bf16.msra.mxu0 0
        %736 = vmatprep.subr.bf16.mxu0 0
        %737 = vmatpush1.bf16.msra.mxu0 0
        %738 = vmatprep.subr.bf16.mxu0 0
        %739 = vmatpush1.bf16.msra.mxu0 0
        %740 = vmatprep.subr.bf16.mxu0 0
        %741 = vmatpush1.bf16.msra.mxu0 0
        %742 = vmatprep.subr.bf16.mxu0 0
        %743 = vmatpush1.bf16.msra.mxu0 0
        %744 = vmatprep.mubr.bf16.mxu0 0
        %745 = vmatmul.mubr.bf16.gmra.mrb[0].mxu0 %v650
        %v746 = vpop.f32.mrb[0].mxu0
        %v747 = vadd.f32 0.0, %v746
        %v748 = vpop.f32.mrb[0].mxu0
        %v749 = vpop.f32.mrb[0].mxu0
        %v750 = vadd.f32 0.0, %v749
        %v751 = vpop.f32.mrb[0].mxu0
        %752 = vmatprep.mubr.bf16.mxu0 0
        %753 = vmatmul.mubr.bf16.gmra.mrb[0].mxu0 %v652
        %v754 = vpop.f32.mrb[0].mxu0
        %v755 = vadd.f32 0.0, %v754
        %v756 = vpop.f32.mrb[0].mxu0
        %v757 = vpop.f32.mrb[0].mxu0
        %v758 = vadd.f32 0.0, %v757
        %v759 = vpop.f32.mrb[0].mxu0
        %760 = vmatprep.mubr.bf16.mxu0 0
        %761 = vmatmul.mubr.bf16.gmra.mrb[0].mxu0 %v654
        %v762 = vpop.f32.mrb[0].mxu0
        %v763 = vadd.f32 0.0, %v762
        %v764 = vpop.f32.mrb[0].mxu0
        %v765 = vpop.f32.mrb[0].mxu0
        %v766 = vadd.f32 0.0, %v765
        %v767 = vpop.f32.mrb[0].mxu0
        %768 = vmatprep.mubr.bf16.mxu0 0
        %769 = vmatmul.mubr.bf16.gmra.mrb[0].mxu0 %v656
        %v770 = vpop.f32.mrb[0].mxu0
        %v771 = vadd.f32 0.0, %v770
        %v772 = vpop.f32.mrb[0].mxu0
        %v773 = vpop.f32.mrb[0].mxu0
        %v774 = vadd.f32 0.0, %v773
        %v775 = vpop.f32.mrb[0].mxu0
        %776 = vmatprep.mubr.bf16.mxu0 0
        %777 = vmatmul.mubr.bf16.gmra.mrb[0].mxu0 %v658
        %v778 = vpop.f32.mrb[0].mxu0
        %v779 = vadd.f32 0.0, %v778
        %v780 = vpop.f32.mrb[0].mxu0
        %v781 = vpop.f32.mrb[0].mxu0
        %v782 = vadd.f32 0.0, %v781
        %v783 = vpop.f32.mrb[0].mxu0
        %784 = vdwg.mxu0
        %v785 = vadd.f32 %v588, %v747
        %v786 = vadd.f32 %v591, %v750
        %v787 = vadd.f32 %v596, %v755
        %v788 = vadd.f32 %v599, %v758
        %v789 = vadd.f32 %v604, %v763
        %v790 = vadd.f32 %v607, %v766
        %v791 = vadd.f32 %v612, %v771
        %v792 = vadd.f32 %v615, %v774
        %v793 = vadd.f32 %v620, %v779
        %v794 = vadd.f32 %v623, %v782
        %v795 = vld [vmem:[%s218 + $0x4] sm:$0xe]
        %v796 = vld [vmem:[%s218 + $0x8] sm:$0xf]
        %v797 = vld [vmem:[%s218 + $0xc] sm:$0xf]
        %v798 = vld [vmem:[%s218 + $0x10] sm:$0xf]
        %v799 = vld [vmem:[%s218 + $0x14] sm:$0xf]
        %v800 = vld [vmem:[%s218 + $0x18] sm:$0xf]
        %v801 = vld [vmem:[%s218 + $0x1c] sm:$0xf]
        %v802 = vld [vmem:[%s218 + $0x20] sm:$0xf]
        %v803 = vld [vmem:[%s218 + $0x24] sm:$0xf]
        %v804 = vld [vmem:[%s218 + $0x28] sm:$0xf]
        %v805 = vld [vmem:[%s218 + $0x2c] sm:$0x1]
        %s806 = scalar_lea.vmem [#allocation5], 192
        %v807 = vld [vmem:[%s806] sm:$0xf]
        %v808 = vld [vmem:[%s806 + $0x4] sm:$0xf]
        %v809 = vld [vmem:[%s806 + $0x8] sm:$0xf]
        %v810 = vld [vmem:[%s806 + $0xc] sm:$0xf]
        %v811 = vld [vmem:[%s806 + $0x10] sm:$0xf]
        %v812 = vld [vmem:[%s806 + $0x14] sm:$0xf]
        %v813 = vld [vmem:[%s806 + $0x18] sm:$0xf]
        %v814 = vld [vmem:[%s806 + $0x1c] sm:$0xf]
        %v815 = vld [vmem:[%s806 + $0x20] sm:$0xf]
        %v816 = vld [vmem:[%s806 + $0x24] sm:$0xf]
        %v817 = vld [vmem:[%s806 + $0x28] sm:$0xf]
        %v818 = vld [vmem:[%s806 + $0x2c] sm:$0xf]
        %v819 = vld [vmem:[%s806 + $0x30] sm:$0xf]
        %v820 = vld [vmem:[%s806 + $0x34] sm:$0xf]
        %v821 = vld [vmem:[%s806 + $0x38] sm:$0xf]
        %v822 = vld [vmem:[%s806 + $0x3c] sm:$0xf]
        %v834 = vunpack.c.l.b16 %v795
        %v835 = vunpack.c.l.b16 %v796
        %v836 = vunpack.c.l.b16 %v797
        %v837 = vunpack.c.l.b16 %v798
        %v838 = vunpack.c.l.b16 %v799
        %v839 = vunpack.c.l.b16 %v800
        %v840 = vunpack.c.l.b16 %v801
        %v841 = vunpack.c.l.b16 %v802
        %v842 = vunpack.c.l.b16 %v803
        %v843 = vunpack.c.l.b16 %v804
        %v844 = vunpack.c.l.b16 %v805
        %v845 = vpack.c.b16 %v835, %v834
        %v846 = vpack.c.b16 %v837, %v836
        %v847 = vpack.c.b16 %v839, %v838
        %v848 = vpack.c.b16 %v841, %v840
        %v849 = vpack.c.b16 %v843, %v842
        %v850 = vpack.c.b16 %v844, %v844
        %v851 = vrot.slane %v845, 1
        %v852 = vrot.slane %v846, 1
        %v853 = vsel %vm647, %v851, %v852
        %v854 = vrot.slane %v847, 1
        %v855 = vsel %vm647, %v852, %v854
        %v856 = vrot.slane %v848, 1
        %v857 = vsel %vm647, %v854, %v856
        %v858 = vrot.slane %v849, 1
        %v859 = vsel %vm647, %v856, %v858
        %v860 = vrot.slane %v850, 1
        %v861 = vsel %vm647, %v858, %v860
        %v883 = vunpack.c.l.b16 %v807
        %v884 = vunpack.c.l.b16 %v808
        %v885 = vunpack.c.l.b16 %v809
        %v886 = vunpack.c.l.b16 %v810
        %v887 = vunpack.c.l.b16 %v811
        %v888 = vunpack.c.l.b16 %v812
        %v889 = vunpack.c.l.b16 %v813
        %v890 = vunpack.c.l.b16 %v814
        %v891 = vunpack.c.l.b16 %v815
        %v892 = vunpack.c.l.b16 %v816
        %v893 = vunpack.c.l.b16 %v817
        %v894 = vunpack.c.l.b16 %v818
        %v895 = vunpack.c.l.b16 %v819
        %v896 = vunpack.c.l.b16 %v820
        %v897 = vunpack.c.l.b16 %v821
        %v898 = vunpack.c.l.b16 %v822
        %v899 = vpack.c.b16 %v884, %v883
        %v900 = vpack.c.b16 %v886, %v885
        %v901 = vpack.c.b16 %v888, %v887
        %v902 = vpack.c.b16 %v890, %v889
        %v903 = vpack.c.b16 %v892, %v891
        %v904 = vpack.c.b16 %v894, %v893
        %v905 = vpack.c.b16 %v896, %v895
        %v906 = vpack.c.b16 %v898, %v897
        %915 = vmatprep.subr.bf16.mxu0 0
        %916 = vmatpush1.bf16.msra.mxu0 %v899
        %917 = vmatprep.subr.bf16.mxu0 0
        %918 = vmatpush1.bf16.msra.mxu0 %v900
        %919 = vmatprep.subr.bf16.mxu0 0
        %920 = vmatpush1.bf16.msra.mxu0 %v901
        %921 = vmatprep.subr.bf16.mxu0 0
        %922 = vmatpush1.bf16.msra.mxu0 %v902
        %923 = vmatprep.subr.bf16.mxu0 0
        %924 = vmatpush1.bf16.msra.mxu0 %v903
        %925 = vmatprep.subr.bf16.mxu0 0
        %926 = vmatpush1.bf16.msra.mxu0 %v904
        %927 = vmatprep.subr.bf16.mxu0 0
        %928 = vmatpush1.bf16.msra.mxu0 %v905
        %929 = vmatprep.subr.bf16.mxu0 0
        %930 = vmatpush1.bf16.msra.mxu0 %v906
        %931 = vmatprep.subr.bf16.mxu0 0
        %932 = vmatpush1.bf16.msra.mxu0 0
        %933 = vmatprep.subr.bf16.mxu0 0
        %934 = vmatpush1.bf16.msra.mxu0 0
        %935 = vmatprep.subr.bf16.mxu0 0
        %936 = vmatpush1.bf16.msra.mxu0 0
        %937 = vmatprep.subr.bf16.mxu0 0
        %938 = vmatpush1.bf16.msra.mxu0 0
        %939 = vmatprep.subr.bf16.mxu0 0
        %940 = vmatpush1.bf16.msra.mxu0 0
        %941 = vmatprep.subr.bf16.mxu0 0
        %942 = vmatpush1.bf16.msra.mxu0 0
        %943 = vmatprep.subr.bf16.mxu0 0
        %944 = vmatpush1.bf16.msra.mxu0 0
        %945 = vmatprep.subr.bf16.mxu0 0
        %946 = vmatpush1.bf16.msra.mxu0 0
        %947 = vmatprep.mubr.bf16.mxu0 0
        %948 = vmatmul.mubr.bf16.gmra.mrb[0].mxu0 %v853
        %v949 = vpop.f32.mrb[0].mxu0
        %v950 = vadd.f32 0.0, %v949
        %v951 = vpop.f32.mrb[0].mxu0
        %v952 = vpop.f32.mrb[0].mxu0
        %v953 = vadd.f32 0.0, %v952
        %v954 = vpop.f32.mrb[0].mxu0
        %955 = vmatprep.mubr.bf16.mxu0 0
        %956 = vmatmul.mubr.bf16.gmra.mrb[0].mxu0 %v855
        %v957 = vpop.f32.mrb[0].mxu0
        %v958 = vadd.f32 0.0, %v957
        %v959 = vpop.f32.mrb[0].mxu0
        %v960 = vpop.f32.mrb[0].mxu0
        %v961 = vadd.f32 0.0, %v960
        %v962 = vpop.f32.mrb[0].mxu0
        %963 = vmatprep.mubr.bf16.mxu0 0
        %964 = vmatmul.mubr.bf16.gmra.mrb[0].mxu0 %v857
        %v965 = vpop.f32.mrb[0].mxu0
        %v966 = vadd.f32 0.0, %v965
        %v967 = vpop.f32.mrb[0].mxu0
        %v968 = vpop.f32.mrb[0].mxu0
        %v969 = vadd.f32 0.0, %v968
        %v970 = vpop.f32.mrb[0].mxu0
        %971 = vmatprep.mubr.bf16.mxu0 0
        %972 = vmatmul.mubr.bf16.gmra.mrb[0].mxu0 %v859
        %v973 = vpop.f32.mrb[0].mxu0
        %v974 = vadd.f32 0.0, %v973
        %v975 = vpop.f32.mrb[0].mxu0
        %v976 = vpop.f32.mrb[0].mxu0
        %v977 = vadd.f32 0.0, %v976
        %v978 = vpop.f32.mrb[0].mxu0
        %979 = vmatprep.mubr.bf16.mxu0 0
        %980 = vmatmul.mubr.bf16.gmra.mrb[0].mxu0 %v861
        %v981 = vpop.f32.mrb[0].mxu0
        %v982 = vadd.f32 0.0, %v981
        %v983 = vpop.f32.mrb[0].mxu0
        %v984 = vpop.f32.mrb[0].mxu0
        %v985 = vadd.f32 0.0, %v984
        %v986 = vpop.f32.mrb[0].mxu0
        %987 = vdwg.mxu0
        %v988 = vadd.f32 %v785, %v950
        %v989 = vadd.f32 %v786, %v953
        %v990 = vadd.f32 %v787, %v958
        %v991 = vadd.f32 %v788, %v961
        %v992 = vadd.f32 %v789, %v966
        %v993 = vadd.f32 %v790, %v969
        %v994 = vadd.f32 %v791, %v974
        %v995 = vadd.f32 %v792, %v977
        %v996 = vadd.f32 %v793, %v982
        %v997 = vadd.f32 %v794, %v985
        %v998 = vld [vmem:[%s218 + $0x2c] sm:$0x3]
        %s999 = scalar_lea.vmem [#allocation5], 256
        %v1000 = vld [vmem:[%s999] sm:$0xf]
        %v1001 = vld [vmem:[%s999 + $0x4] sm:$0xf]
        %v1002 = vld [vmem:[%s999 + $0x8] sm:$0xf]
        %v1003 = vld [vmem:[%s999 + $0xc] sm:$0xf]
        %v1004 = vld [vmem:[%s999 + $0x10] sm:$0xf]
        %v1005 = vld [vmem:[%s999 + $0x14] sm:$0xf]
        %v1006 = vld [vmem:[%s999 + $0x18] sm:$0xf]
        %v1007 = vld [vmem:[%s999 + $0x1c] sm:$0xf]
        %v1008 = vld [vmem:[%s999 + $0x20] sm:$0xf]
        %v1009 = vld [vmem:[%s999 + $0x24] sm:$0xf]
        %v1010 = vld [vmem:[%s999 + $0x28] sm:$0xf]
        %v1011 = vld [vmem:[%s999 + $0x2c] sm:$0xf]
        %v1012 = vld [vmem:[%s999 + $0x30] sm:$0xf]
        %v1013 = vld [vmem:[%s999 + $0x34] sm:$0xf]
        %v1014 = vld [vmem:[%s999 + $0x38] sm:$0xf]
        %v1015 = vld [vmem:[%s999 + $0x3c] sm:$0xf]
        %v1017 = vunpack.c.l.b16 %v998
        %v1018 = vpack.c.b16 %v1017, %v1017
        %vm1019 = vsmask.f32 6400
        %v1021 = vshrl.u32 %v845, 16
        %v1023 = vrot.slane %v1021, 1
        %v1024 = vshll.u32 %v845, 16
        %v1026 = vrot.slane %v1024, 2
        %v1027 = vor.u32 %v1023, %v1026
        %v1029 = vshrl.u32 %v846, 16
        %v1031 = vrot.slane %v1029, 1
        %v1032 = vshll.u32 %v846, 16
        %v1034 = vrot.slane %v1032, 2
        %v1035 = vor.u32 %v1031, %v1034
        %v1036 = vsel %vm1019, %v1027, %v1035
        %v1038 = vshrl.u32 %v847, 16
        %v1040 = vrot.slane %v1038, 1
        %v1041 = vshll.u32 %v847, 16
        %v1043 = vrot.slane %v1041, 2
        %v1044 = vor.u32 %v1040, %v1043
        %v1045 = vsel %vm1019, %v1035, %v1044
        %v1047 = vshrl.u32 %v848, 16
        %v1049 = vrot.slane %v1047, 1
        %v1050 = vshll.u32 %v848, 16
        %v1052 = vrot.slane %v1050, 2
        %v1053 = vor.u32 %v1049, %v1052
        %v1054 = vsel %vm1019, %v1044, %v1053
        %v1056 = vshrl.u32 %v849, 16
        %v1058 = vrot.slane %v1056, 1
        %v1059 = vshll.u32 %v849, 16
        %v1061 = vrot.slane %v1059, 2
        %v1062 = vor.u32 %v1058, %v1061
        %v1063 = vsel %vm1019, %v1053, %v1062
        %v1065 = vshrl.u32 %v1018, 16
        %v1067 = vrot.slane %v1065, 1
        %v1068 = vshll.u32 %v1018, 16
        %v1070 = vrot.slane %v1068, 2
        %v1071 = vor.u32 %v1067, %v1070
        %v1072 = vsel %vm1019, %v1062, %v1071
        %v1094 = vunpack.c.l.b16 %v1000
        %v1095 = vunpack.c.l.b16 %v1001
        %v1096 = vunpack.c.l.b16 %v1002
        %v1097 = vunpack.c.l.b16 %v1003
        %v1098 = vunpack.c.l.b16 %v1004
        %v1099 = vunpack.c.l.b16 %v1005
        %v1100 = vunpack.c.l.b16 %v1006
        %v1101 = vunpack.c.l.b16 %v1007
        %v1102 = vunpack.c.l.b16 %v1008
        %v1103 = vunpack.c.l.b16 %v1009
        %v1104 = vunpack.c.l.b16 %v1010
        %v1105 = vunpack.c.l.b16 %v1011
        %v1106 = vunpack.c.l.b16 %v1012
        %v1107 = vunpack.c.l.b16 %v1013
        %v1108 = vunpack.c.l.b16 %v1014
        %v1109 = vunpack.c.l.b16 %v1015
        %v1110 = vpack.c.b16 %v1095, %v1094
        %v1111 = vpack.c.b16 %v1097, %v1096
        %v1112 = vpack.c.b16 %v1099, %v1098
        %v1113 = vpack.c.b16 %v1101, %v1100
        %v1114 = vpack.c.b16 %v1103, %v1102
        %v1115 = vpack.c.b16 %v1105, %v1104
        %v1116 = vpack.c.b16 %v1107, %v1106
        %v1117 = vpack.c.b16 %v1109, %v1108
        %1126 = vmatprep.subr.bf16.mxu0 0
        %1127 = vmatpush1.bf16.msra.mxu0 %v1110
        %1128 = vmatprep.subr.bf16.mxu0 0
        %1129 = vmatpush1.bf16.msra.mxu0 %v1111
        %1130 = vmatprep.subr.bf16.mxu0 0
        %1131 = vmatpush1.bf16.msra.mxu0 %v1112
        %1132 = vmatprep.subr.bf16.mxu0 0
        %1133 = vmatpush1.bf16.msra.mxu0 %v1113
        %1134 = vmatprep.subr.bf16.mxu0 0
        %1135 = vmatpush1.bf16.msra.mxu0 %v1114
        %1136 = vmatprep.subr.bf16.mxu0 0
        %1137 = vmatpush1.bf16.msra.mxu0 %v1115
        %1138 = vmatprep.subr.bf16.mxu0 0
        %1139 = vmatpush1.bf16.msra.mxu0 %v1116
        %1140 = vmatprep.subr.bf16.mxu0 0
        %1141 = vmatpush1.bf16.msra.mxu0 %v1117
        %1142 = vmatprep.subr.bf16.mxu0 0
        %1143 = vmatpush1.bf16.msra.mxu0 0
        %1144 = vmatprep.subr.bf16.mxu0 0
        %1145 = vmatpush1.bf16.msra.mxu0 0
        %1146 = vmatprep.subr.bf16.mxu0 0
        %1147 = vmatpush1.bf16.msra.mxu0 0
        %1148 = vmatprep.subr.bf16.mxu0 0
        %1149 = vmatpush1.bf16.msra.mxu0 0
        %1150 = vmatprep.subr.bf16.mxu0 0
        %1151 = vmatpush1.bf16.msra.mxu0 0
        %1152 = vmatprep.subr.bf16.mxu0 0
        %1153 = vmatpush1.bf16.msra.mxu0 0
        %1154 = vmatprep.subr.bf16.mxu0 0
        %1155 = vmatpush1.bf16.msra.mxu0 0
        %1156 = vmatprep.subr.bf16.mxu0 0
        %1157 = vmatpush1.bf16.msra.mxu0 0
        %1158 = vmatprep.mubr.bf16.mxu0 0
        %1159 = vmatmul.mubr.bf16.gmra.mrb[0].mxu0 %v1036
        %v1160 = vpop.f32.mrb[0].mxu0
        %v1161 = vadd.f32 0.0, %v1160
        %v1162 = vpop.f32.mrb[0].mxu0
        %v1163 = vpop.f32.mrb[0].mxu0
        %v1164 = vadd.f32 0.0, %v1163
        %v1165 = vpop.f32.mrb[0].mxu0
        %1166 = vmatprep.mubr.bf16.mxu0 0
        %1167 = vmatmul.mubr.bf16.gmra.mrb[0].mxu0 %v1045
        %v1168 = vpop.f32.mrb[0].mxu0
        %v1169 = vadd.f32 0.0, %v1168
        %v1170 = vpop.f32.mrb[0].mxu0
        %v1171 = vpop.f32.mrb[0].mxu0
        %v1172 = vadd.f32 0.0, %v1171
        %v1173 = vpop.f32.mrb[0].mxu0
        %1174 = vmatprep.mubr.bf16.mxu0 0
        %1175 = vmatmul.mubr.bf16.gmra.mrb[0].mxu0 %v1054
        %v1176 = vpop.f32.mrb[0].mxu0
        %v1177 = vadd.f32 0.0, %v1176
        %v1178 = vpop.f32.mrb[0].mxu0
        %v1179 = vpop.f32.mrb[0].mxu0
        %v1180 = vadd.f32 0.0, %v1179
        %v1181 = vpop.f32.mrb[0].mxu0
        %1182 = vmatprep.mubr.bf16.mxu0 0
        %1183 = vmatmul.mubr.bf16.gmra.mrb[0].mxu0 %v1063
        %v1184 = vpop.f32.mrb[0].mxu0
        %v1185 = vadd.f32 0.0, %v1184
        %v1186 = vpop.f32.mrb[0].mxu0
        %v1187 = vpop.f32.mrb[0].mxu0
        %v1188 = vadd.f32 0.0, %v1187
        %v1189 = vpop.f32.mrb[0].mxu0
        %1190 = vmatprep.mubr.bf16.mxu0 0
        %1191 = vmatmul.mubr.bf16.gmra.mrb[0].mxu0 %v1072
        %v1192 = vpop.f32.mrb[0].mxu0
        %v1193 = vadd.f32 0.0, %v1192
        %v1194 = vpop.f32.mrb[0].mxu0
        %v1195 = vpop.f32.mrb[0].mxu0
        %v1196 = vadd.f32 0.0, %v1195
        %v1197 = vpop.f32.mrb[0].mxu0
        %1198 = vdwg.mxu0
        %v1199 = vadd.f32 %v988, %v1161
        %v1200 = vadd.f32 %v989, %v1164
        %v1201 = vadd.f32 %v990, %v1169
        %v1202 = vadd.f32 %v991, %v1172
        %v1203 = vadd.f32 %v992, %v1177
        %v1204 = vadd.f32 %v993, %v1180
        %v1205 = vadd.f32 %v994, %v1185
        %v1206 = vadd.f32 %v995, %v1188
        %v1207 = vadd.f32 %v996, %v1193
        %v1208 = vadd.f32 %v997, %v1196
        %v1209 = vld [vmem:[%s218 + $0x4] sm:$0xc]
        %s1210 = scalar_lea.vmem [#allocation5], 320
        %v1211 = vld [vmem:[%s1210] sm:$0xf]
        %v1212 = vld [vmem:[%s1210 + $0x4] sm:$0xf]
        %v1213 = vld [vmem:[%s1210 + $0x8] sm:$0xf]
        %v1214 = vld [vmem:[%s1210 + $0xc] sm:$0xf]
        %v1215 = vld [vmem:[%s1210 + $0x10] sm:$0xf]
        %v1216 = vld [vmem:[%s1210 + $0x14] sm:$0xf]
        %v1217 = vld [vmem:[%s1210 + $0x18] sm:$0xf]
        %v1218 = vld [vmem:[%s1210 + $0x1c] sm:$0xf]
        %v1219 = vld [vmem:[%s1210 + $0x20] sm:$0xf]
        %v1220 = vld [vmem:[%s1210 + $0x24] sm:$0xf]
        %v1221 = vld [vmem:[%s1210 + $0x28] sm:$0xf]
        %v1222 = vld [vmem:[%s1210 + $0x2c] sm:$0xf]
        %v1223 = vld [vmem:[%s1210 + $0x30] sm:$0xf]
        %v1224 = vld [vmem:[%s1210 + $0x34] sm:$0xf]
        %v1225 = vld [vmem:[%s1210 + $0x38] sm:$0xf]
        %v1226 = vld [vmem:[%s1210 + $0x3c] sm:$0xf]
        %v1228 = vunpack.c.l.b16 %v1209
        %v1229 = vpack.c.b16 %v835, %v1228
        %vm1230 = vcmask 1045504
        %v1231 = vrot.slane %v1229, 2
        %v1232 = vrot.slane %v846, 2
        %v1233 = vsel %vm1230, %v1231, %v1232
        %v1234 = vrot.slane %v847, 2
        %v1235 = vsel %vm1230, %v1232, %v1234
        %v1236 = vrot.slane %v848, 2
        %v1237 = vsel %vm1230, %v1234, %v1236
        %v1238 = vrot.slane %v849, 2
        %v1239 = vsel %vm1230, %v1236, %v1238
        %v1240 = vrot.slane %v1018, 2
        %v1241 = vsel %vm1230, %v1238, %v1240
        %v1263 = vunpack.c.l.b16 %v1211
        %v1264 = vunpack.c.l.b16 %v1212
        %v1265 = vunpack.c.l.b16 %v1213
        %v1266 = vunpack.c.l.b16 %v1214
        %v1267 = vunpack.c.l.b16 %v1215
        %v1268 = vunpack.c.l.b16 %v1216
        %v1269 = vunpack.c.l.b16 %v1217
        %v1270 = vunpack.c.l.b16 %v1218
        %v1271 = vunpack.c.l.b16 %v1219
        %v1272 = vunpack.c.l.b16 %v1220
        %v1273 = vunpack.c.l.b16 %v1221
        %v1274 = vunpack.c.l.b16 %v1222
        %v1275 = vunpack.c.l.b16 %v1223
        %v1276 = vunpack.c.l.b16 %v1224
        %v1277 = vunpack.c.l.b16 %v1225
        %v1278 = vunpack.c.l.b16 %v1226
        %v1279 = vpack.c.b16 %v1264, %v1263
        %v1280 = vpack.c.b16 %v1266, %v1265
        %v1281 = vpack.c.b16 %v1268, %v1267
        %v1282 = vpack.c.b16 %v1270, %v1269
        %v1283 = vpack.c.b16 %v1272, %v1271
        %v1284 = vpack.c.b16 %v1274, %v1273
        %v1285 = vpack.c.b16 %v1276, %v1275
        %v1286 = vpack.c.b16 %v1278, %v1277
        %1295 = vmatprep.subr.bf16.mxu0 0
        %1296 = vmatpush1.bf16.msra.mxu0 %v1279
        %1297 = vmatprep.subr.bf16.mxu0 0
        %1298 = vmatpush1.bf16.msra.mxu0 %v1280
        %1299 = vmatprep.subr.bf16.mxu0 0
        %1300 = vmatpush1.bf16.msra.mxu0 %v1281
        %1301 = vmatprep.subr.bf16.mxu0 0
        %1302 = vmatpush1.bf16.msra.mxu0 %v1282
        %1303 = vmatprep.subr.bf16.mxu0 0
        %1304 = vmatpush1.bf16.msra.mxu0 %v1283
        %1305 = vmatprep.subr.bf16.mxu0 0
        %1306 = vmatpush1.bf16.msra.mxu0 %v1284
        %1307 = vmatprep.subr.bf16.mxu0 0
        %1308 = vmatpush1.bf16.msra.mxu0 %v1285
        %1309 = vmatprep.subr.bf16.mxu0 0
        %1310 = vmatpush1.bf16.msra.mxu0 %v1286
        %1311 = vmatprep.subr.bf16.mxu0 0
        %1312 = vmatpush1.bf16.msra.mxu0 0
        %1313 = vmatprep.subr.bf16.mxu0 0
        %1314 = vmatpush1.bf16.msra.mxu0 0
        %1315 = vmatprep.subr.bf16.mxu0 0
        %1316 = vmatpush1.bf16.msra.mxu0 0
        %1317 = vmatprep.subr.bf16.mxu0 0
        %1318 = vmatpush1.bf16.msra.mxu0 0
        %1319 = vmatprep.subr.bf16.mxu0 0
        %1320 = vmatpush1.bf16.msra.mxu0 0
        %1321 = vmatprep.subr.bf16.mxu0 0
        %1322 = vmatpush1.bf16.msra.mxu0 0
        %1323 = vmatprep.subr.bf16.mxu0 0
        %1324 = vmatpush1.bf16.msra.mxu0 0
        %1325 = vmatprep.subr.bf16.mxu0 0
        %1326 = vmatpush1.bf16.msra.mxu0 0
        %1327 = vmatprep.mubr.bf16.mxu0 0
        %1328 = vmatmul.mubr.bf16.gmra.mrb[0].mxu0 %v1233
        %v1329 = vpop.f32.mrb[0].mxu0
        %v1330 = vadd.f32 0.0, %v1329
        %v1331 = vpop.f32.mrb[0].mxu0
        %v1332 = vpop.f32.mrb[0].mxu0
        %v1333 = vadd.f32 0.0, %v1332
        %v1334 = vpop.f32.mrb[0].mxu0
        %1335 = vmatprep.mubr.bf16.mxu0 0
        %1336 = vmatmul.mubr.bf16.gmra.mrb[0].mxu0 %v1235
        %v1337 = vpop.f32.mrb[0].mxu0
        %v1338 = vadd.f32 0.0, %v1337
        %v1339 = vpop.f32.mrb[0].mxu0
        %v1340 = vpop.f32.mrb[0].mxu0
        %v1341 = vadd.f32 0.0, %v1340
        %v1342 = vpop.f32.mrb[0].mxu0
        %1343 = vmatprep.mubr.bf16.mxu0 0
        %1344 = vmatmul.mubr.bf16.gmra.mrb[0].mxu0 %v1237
        %v1345 = vpop.f32.mrb[0].mxu0
        %v1346 = vadd.f32 0.0, %v1345
        %v1347 = vpop.f32.mrb[0].mxu0
        %v1348 = vpop.f32.mrb[0].mxu0
        %v1349 = vadd.f32 0.0, %v1348
        %v1350 = vpop.f32.mrb[0].mxu0
        %1351 = vmatprep.mubr.bf16.mxu0 0
        %1352 = vmatmul.mubr.bf16.gmra.mrb[0].mxu0 %v1239
        %v1353 = vpop.f32.mrb[0].mxu0
        %v1354 = vadd.f32 0.0, %v1353
        %v1355 = vpop.f32.mrb[0].mxu0
        %v1356 = vpop.f32.mrb[0].mxu0
        %v1357 = vadd.f32 0.0, %v1356
        %v1358 = vpop.f32.mrb[0].mxu0
        %1359 = vmatprep.mubr.bf16.mxu0 0
        %1360 = vmatmul.mubr.bf16.gmra.mrb[0].mxu0 %v1241
        %v1361 = vpop.f32.mrb[0].mxu0
        %v1362 = vadd.f32 0.0, %v1361
        %v1363 = vpop.f32.mrb[0].mxu0
        %v1364 = vpop.f32.mrb[0].mxu0
        %v1365 = vadd.f32 0.0, %v1364
        %v1366 = vpop.f32.mrb[0].mxu0
        %1367 = vdwg.mxu0
        %v1368 = vadd.f32 %v1199, %v1330
        %v1369 = vadd.f32 %v1200, %v1333
        %v1370 = vadd.f32 %v1201, %v1338
        %v1371 = vadd.f32 %v1202, %v1341
        %v1372 = vadd.f32 %v1203, %v1346
        %v1373 = vadd.f32 %v1204, %v1349
        %v1374 = vadd.f32 %v1205, %v1354
        %v1375 = vadd.f32 %v1206, %v1357
        %v1376 = vadd.f32 %v1207, %v1362
        %v1377 = vadd.f32 %v1208, %v1365
        %v1378 = vld [vmem:[%s218 + $0x8] sm:$0xc]
        %v1379 = vld [vmem:[%s218 + $0xc] sm:$0xf]
        %v1380 = vld [vmem:[%s218 + $0x10] sm:$0xf]
        %v1381 = vld [vmem:[%s218 + $0x14] sm:$0xf]
        %v1382 = vld [vmem:[%s218 + $0x18] sm:$0xf]
        %v1383 = vld [vmem:[%s218 + $0x1c] sm:$0xf]
        %v1384 = vld [vmem:[%s218 + $0x20] sm:$0xf]
        %v1385 = vld [vmem:[%s218 + $0x24] sm:$0xf]
        %v1386 = vld [vmem:[%s218 + $0x28] sm:$0xf]
        %v1387 = vld [vmem:[%s218 + $0x2c] sm:$0xf]
        %v1388 = vld [vmem:[%s218 + $0x30] sm:$0x3]
        %s1389 = scalar_lea.vmem [#allocation5], 384
        %v1390 = vld [vmem:[%s1389] sm:$0xf]
        %v1391 = vld [vmem:[%s1389 + $0x4] sm:$0xf]
        %v1392 = vld [vmem:[%s1389 + $0x8] sm:$0xf]
        %v1393 = vld [vmem:[%s1389 + $0xc] sm:$0xf]
        %v1394 = vld [vmem:[%s1389 + $0x10] sm:$0xf]
        %v1395 = vld [vmem:[%s1389 + $0x14] sm:$0xf]
        %v1396 = vld [vmem:[%s1389 + $0x18] sm:$0xf]
        %v1397 = vld [vmem:[%s1389 + $0x1c] sm:$0xf]
        %v1398 = vld [vmem:[%s1389 + $0x20] sm:$0xf]
        %v1399 = vld [vmem:[%s1389 + $0x24] sm:$0xf]
        %v1400 = vld [vmem:[%s1389 + $0x28] sm:$0xf]
        %v1401 = vld [vmem:[%s1389 + $0x2c] sm:$0xf]
        %v1402 = vld [vmem:[%s1389 + $0x30] sm:$0xf]
        %v1403 = vld [vmem:[%s1389 + $0x34] sm:$0xf]
        %v1404 = vld [vmem:[%s1389 + $0x38] sm:$0xf]
        %v1405 = vld [vmem:[%s1389 + $0x3c] sm:$0xf]
        %v1417 = vunpack.c.l.b16 %v1378
        %v1418 = vunpack.c.l.b16 %v1379
        %v1419 = vunpack.c.l.b16 %v1380
        %v1420 = vunpack.c.l.b16 %v1381
        %v1421 = vunpack.c.l.b16 %v1382
        %v1422 = vunpack.c.l.b16 %v1383
        %v1423 = vunpack.c.l.b16 %v1384
        %v1424 = vunpack.c.l.b16 %v1385
        %v1425 = vunpack.c.l.b16 %v1386
        %v1426 = vunpack.c.l.b16 %v1387
        %v1427 = vunpack.c.l.b16 %v1388
        %v1428 = vpack.c.b16 %v1418, %v1417
        %v1429 = vpack.c.b16 %v1420, %v1419
        %v1430 = vpack.c.b16 %v1422, %v1421
        %v1431 = vpack.c.b16 %v1424, %v1423
        %v1432 = vpack.c.b16 %v1426, %v1425
        %v1433 = vpack.c.b16 %v1427, %v1427
        %v1434 = vrot.slane %v1428, 2
        %v1435 = vrot.slane %v1429, 2
        %v1436 = vsel %vm1230, %v1434, %v1435
        %v1437 = vrot.slane %v1430, 2
        %v1438 = vsel %vm1230, %v1435, %v1437
        %v1439 = vrot.slane %v1431, 2
        %v1440 = vsel %vm1230, %v1437, %v1439
        %v1441 = vrot.slane %v1432, 2
        %v1442 = vsel %vm1230, %v1439, %v1441
        %v1443 = vrot.slane %v1433, 2
        %v1444 = vsel %vm1230, %v1441, %v1443
        %v1466 = vunpack.c.l.b16 %v1390
        %v1467 = vunpack.c.l.b16 %v1391
        %v1468 = vunpack.c.l.b16 %v1392
        %v1469 = vunpack.c.l.b16 %v1393
        %v1470 = vunpack.c.l.b16 %v1394
        %v1471 = vunpack.c.l.b16 %v1395
        %v1472 = vunpack.c.l.b16 %v1396
        %v1473 = vunpack.c.l.b16 %v1397
        %v1474 = vunpack.c.l.b16 %v1398
        %v1475 = vunpack.c.l.b16 %v1399
        %v1476 = vunpack.c.l.b16 %v1400
        %v1477 = vunpack.c.l.b16 %v1401
        %v1478 = vunpack.c.l.b16 %v1402
        %v1479 = vunpack.c.l.b16 %v1403
        %v1480 = vunpack.c.l.b16 %v1404
        %v1481 = vunpack.c.l.b16 %v1405
        %v1482 = vpack.c.b16 %v1467, %v1466
        %v1483 = vpack.c.b16 %v1469, %v1468
        %v1484 = vpack.c.b16 %v1471, %v1470
        %v1485 = vpack.c.b16 %v1473, %v1472
        %v1486 = vpack.c.b16 %v1475, %v1474
        %v1487 = vpack.c.b16 %v1477, %v1476
        %v1488 = vpack.c.b16 %v1479, %v1478
        %v1489 = vpack.c.b16 %v1481, %v1480
        %1498 = vmatprep.subr.bf16.mxu0 0
        %1499 = vmatpush1.bf16.msra.mxu0 %v1482
        %1500 = vmatprep.subr.bf16.mxu0 0
        %1501 = vmatpush1.bf16.msra.mxu0 %v1483
        %1502 = vmatprep.subr.bf16.mxu0 0
        %1503 = vmatpush1.bf16.msra.mxu0 %v1484
        %1504 = vmatprep.subr.bf16.mxu0 0
        %1505 = vmatpush1.bf16.msra.mxu0 %v1485
        %1506 = vmatprep.subr.bf16.mxu0 0
        %1507 = vmatpush1.bf16.msra.mxu0 %v1486
        %1508 = vmatprep.subr.bf16.mxu0 0
        %1509 = vmatpush1.bf16.msra.mxu0 %v1487
        %1510 = vmatprep.subr.bf16.mxu0 0
        %1511 = vmatpush1.bf16.msra.mxu0 %v1488
        %1512 = vmatprep.subr.bf16.mxu0 0
        %1513 = vmatpush1.bf16.msra.mxu0 %v1489
        %1514 = vmatprep.subr.bf16.mxu0 0
        %1515 = vmatpush1.bf16.msra.mxu0 0
        %1516 = vmatprep.subr.bf16.mxu0 0
        %1517 = vmatpush1.bf16.msra.mxu0 0
        %1518 = vmatprep.subr.bf16.mxu0 0
        %1519 = vmatpush1.bf16.msra.mxu0 0
        %1520 = vmatprep.subr.bf16.mxu0 0
        %1521 = vmatpush1.bf16.msra.mxu0 0
        %1522 = vmatprep.subr.bf16.mxu0 0
        %1523 = vmatpush1.bf16.msra.mxu0 0
        %1524 = vmatprep.subr.bf16.mxu0 0
        %1525 = vmatpush1.bf16.msra.mxu0 0
        %1526 = vmatprep.subr.bf16.mxu0 0
        %1527 = vmatpush1.bf16.msra.mxu0 0
        %1528 = vmatprep.subr.bf16.mxu0 0
        %1529 = vmatpush1.bf16.msra.mxu0 0
        %1530 = vmatprep.mubr.bf16.mxu0 0
        %1531 = vmatmul.mubr.bf16.gmra.mrb[0].mxu0 %v1436
        %v1532 = vpop.f32.mrb[0].mxu0
        %v1533 = vadd.f32 0.0, %v1532
        %v1534 = vpop.f32.mrb[0].mxu0
        %v1535 = vpop.f32.mrb[0].mxu0
        %v1536 = vadd.f32 0.0, %v1535
        %v1537 = vpop.f32.mrb[0].mxu0
        %1538 = vmatprep.mubr.bf16.mxu0 0
        %1539 = vmatmul.mubr.bf16.gmra.mrb[0].mxu0 %v1438
        %v1540 = vpop.f32.mrb[0].mxu0
        %v1541 = vadd.f32 0.0, %v1540
        %v1542 = vpop.f32.mrb[0].mxu0
        %v1543 = vpop.f32.mrb[0].mxu0
        %v1544 = vadd.f32 0.0, %v1543
        %v1545 = vpop.f32.mrb[0].mxu0
        %1546 = vmatprep.mubr.bf16.mxu0 0
        %1547 = vmatmul.mubr.bf16.gmra.mrb[0].mxu0 %v1440
        %v1548 = vpop.f32.mrb[0].mxu0
        %v1549 = vadd.f32 0.0, %v1548
        %v1550 = vpop.f32.mrb[0].mxu0
        %v1551 = vpop.f32.mrb[0].mxu0
        %v1552 = vadd.f32 0.0, %v1551
        %v1553 = vpop.f32.mrb[0].mxu0
        %1554 = vmatprep.mubr.bf16.mxu0 0
        %1555 = vmatmul.mubr.bf16.gmra.mrb[0].mxu0 %v1442
        %v1556 = vpop.f32.mrb[0].mxu0
        %v1557 = vadd.f32 0.0, %v1556
        %v1558 = vpop.f32.mrb[0].mxu0
        %v1559 = vpop.f32.mrb[0].mxu0
        %v1560 = vadd.f32 0.0, %v1559
        %v1561 = vpop.f32.mrb[0].mxu0
        %1562 = vmatprep.mubr.bf16.mxu0 0
        %1563 = vmatmul.mubr.bf16.gmra.mrb[0].mxu0 %v1444
        %v1564 = vpop.f32.mrb[0].mxu0
        %v1565 = vadd.f32 0.0, %v1564
        %v1566 = vpop.f32.mrb[0].mxu0
        %v1567 = vpop.f32.mrb[0].mxu0
        %v1568 = vadd.f32 0.0, %v1567
        %v1569 = vpop.f32.mrb[0].mxu0
        %1570 = vdwg.mxu0
        %v1571 = vadd.f32 %v1368, %v1533
        %v1572 = vadd.f32 %v1369, %v1536
        %v1573 = vadd.f32 %v1370, %v1541
        %v1574 = vadd.f32 %v1371, %v1544
        %v1575 = vadd.f32 %v1372, %v1549
        %v1576 = vadd.f32 %v1373, %v1552
        %v1577 = vadd.f32 %v1374, %v1557
        %v1578 = vadd.f32 %v1375, %v1560
        %v1579 = vadd.f32 %v1376, %v1565
        %v1580 = vadd.f32 %v1377, %v1568
        %v1581 = vld [vmem:[%s218 + $0x30] sm:$0x7]
        %s1582 = scalar_lea.vmem [#allocation5], 448
        %v1583 = vld [vmem:[%s1582] sm:$0xf]
        %v1584 = vld [vmem:[%s1582 + $0x4] sm:$0xf]
        %v1585 = vld [vmem:[%s1582 + $0x8] sm:$0xf]
        %v1586 = vld [vmem:[%s1582 + $0xc] sm:$0xf]
        %v1587 = vld [vmem:[%s1582 + $0x10] sm:$0xf]
        %v1588 = vld [vmem:[%s1582 + $0x14] sm:$0xf]
        %v1589 = vld [vmem:[%s1582 + $0x18] sm:$0xf]
        %v1590 = vld [vmem:[%s1582 + $0x1c] sm:$0xf]
        %v1591 = vld [vmem:[%s1582 + $0x20] sm:$0xf]
        %v1592 = vld [vmem:[%s1582 + $0x24] sm:$0xf]
        %v1593 = vld [vmem:[%s1582 + $0x28] sm:$0xf]
        %v1594 = vld [vmem:[%s1582 + $0x2c] sm:$0xf]
        %v1595 = vld [vmem:[%s1582 + $0x30] sm:$0xf]
        %v1596 = vld [vmem:[%s1582 + $0x34] sm:$0xf]
        %v1597 = vld [vmem:[%s1582 + $0x38] sm:$0xf]
        %v1598 = vld [vmem:[%s1582 + $0x3c] sm:$0xf]
        %v1600 = vunpack.c.l.b16 %v1581
        %v1601 = vpack.c.b16 %v1600, %v1600
        %vm1602 = vsmask.f32 5376
        %v1604 = vshrl.u32 %v1428, 16
        %v1606 = vrot.slane %v1604, 2
        %v1607 = vshll.u32 %v1428, 16
        %v1609 = vrot.slane %v1607, 3
        %v1610 = vor.u32 %v1606, %v1609
        %v1612 = vshrl.u32 %v1429, 16
        %v1614 = vrot.slane %v1612, 2
        %v1615 = vshll.u32 %v1429, 16
        %v1617 = vrot.slane %v1615, 3
        %v1618 = vor.u32 %v1614, %v1617
        %v1619 = vsel %vm1602, %v1610, %v1618
        %v1621 = vshrl.u32 %v1430, 16
        %v1623 = vrot.slane %v1621, 2
        %v1624 = vshll.u32 %v1430, 16
        %v1626 = vrot.slane %v1624, 3
        %v1627 = vor.u32 %v1623, %v1626
        %v1628 = vsel %vm1602, %v1618, %v1627
        %v1630 = vshrl.u32 %v1431, 16
        %v1632 = vrot.slane %v1630, 2
        %v1633 = vshll.u32 %v1431, 16
        %v1635 = vrot.slane %v1633, 3
        %v1636 = vor.u32 %v1632, %v1635
        %v1637 = vsel %vm1602, %v1627, %v1636
        %v1639 = vshrl.u32 %v1432, 16
        %v1641 = vrot.slane %v1639, 2
        %v1642 = vshll.u32 %v1432, 16
        %v1644 = vrot.slane %v1642, 3
        %v1645 = vor.u32 %v1641, %v1644
        %v1646 = vsel %vm1602, %v1636, %v1645
        %v1648 = vshrl.u32 %v1601, 16
        %v1650 = vrot.slane %v1648, 2
        %v1651 = vshll.u32 %v1601, 16
        %v1653 = vrot.slane %v1651, 3
        %v1654 = vor.u32 %v1650, %v1653
        %v1655 = vsel %vm1602, %v1645, %v1654
        %v1677 = vunpack.c.l.b16 %v1583
        %v1678 = vunpack.c.l.b16 %v1584
        %v1679 = vunpack.c.l.b16 %v1585
        %v1680 = vunpack.c.l.b16 %v1586
        %v1681 = vunpack.c.l.b16 %v1587
        %v1682 = vunpack.c.l.b16 %v1588
        %v1683 = vunpack.c.l.b16 %v1589
        %v1684 = vunpack.c.l.b16 %v1590
        %v1685 = vunpack.c.l.b16 %v1591
        %v1686 = vunpack.c.l.b16 %v1592
        %v1687 = vunpack.c.l.b16 %v1593
        %v1688 = vunpack.c.l.b16 %v1594
        %v1689 = vunpack.c.l.b16 %v1595
        %v1690 = vunpack.c.l.b16 %v1596
        %v1691 = vunpack.c.l.b16 %v1597
        %v1692 = vunpack.c.l.b16 %v1598
        %v1693 = vpack.c.b16 %v1678, %v1677
        %v1694 = vpack.c.b16 %v1680, %v1679
        %v1695 = vpack.c.b16 %v1682, %v1681
        %v1696 = vpack.c.b16 %v1684, %v1683
        %v1697 = vpack.c.b16 %v1686, %v1685
        %v1698 = vpack.c.b16 %v1688, %v1687
        %v1699 = vpack.c.b16 %v1690, %v1689
        %v1700 = vpack.c.b16 %v1692, %v1691
        %1709 = vmatprep.subr.bf16.mxu0 0
        %1710 = vmatpush1.bf16.msra.mxu0 %v1693
        %1711 = vmatprep.subr.bf16.mxu0 0
        %1712 = vmatpush1.bf16.msra.mxu0 %v1694
        %1713 = vmatprep.subr.bf16.mxu0 0
        %1714 = vmatpush1.bf16.msra.mxu0 %v1695
        %1715 = vmatprep.subr.bf16.mxu0 0
        %1716 = vmatpush1.bf16.msra.mxu0 %v1696
        %1717 = vmatprep.subr.bf16.mxu0 0
        %1718 = vmatpush1.bf16.msra.mxu0 %v1697
        %1719 = vmatprep.subr.bf16.mxu0 0
        %1720 = vmatpush1.bf16.msra.mxu0 %v1698
        %1721 = vmatprep.subr.bf16.mxu0 0
        %1722 = vmatpush1.bf16.msra.mxu0 %v1699
        %1723 = vmatprep.subr.bf16.mxu0 0
        %1724 = vmatpush1.bf16.msra.mxu0 %v1700
        %1725 = vmatprep.subr.bf16.mxu0 0
        %1726 = vmatpush1.bf16.msra.mxu0 0
        %1727 = vmatprep.subr.bf16.mxu0 0
        %1728 = vmatpush1.bf16.msra.mxu0 0
        %1729 = vmatprep.subr.bf16.mxu0 0
        %1730 = vmatpush1.bf16.msra.mxu0 0
        %1731 = vmatprep.subr.bf16.mxu0 0
        %1732 = vmatpush1.bf16.msra.mxu0 0
        %1733 = vmatprep.subr.bf16.mxu0 0
        %1734 = vmatpush1.bf16.msra.mxu0 0
        %1735 = vmatprep.subr.bf16.mxu0 0
        %1736 = vmatpush1.bf16.msra.mxu0 0
        %1737 = vmatprep.subr.bf16.mxu0 0
        %1738 = vmatpush1.bf16.msra.mxu0 0
        %1739 = vmatprep.subr.bf16.mxu0 0
        %1740 = vmatpush1.bf16.msra.mxu0 0
        %1741 = vmatprep.mubr.bf16.mxu0 0
        %1742 = vmatmul.mubr.bf16.gmra.mrb[0].mxu0 %v1619
        %v1743 = vpop.f32.mrb[0].mxu0
        %v1744 = vadd.f32 0.0, %v1743
        %v1745 = vpop.f32.mrb[0].mxu0
        %v1746 = vpop.f32.mrb[0].mxu0
        %v1747 = vadd.f32 0.0, %v1746
        %v1748 = vpop.f32.mrb[0].mxu0
        %1749 = vmatprep.mubr.bf16.mxu0 0
        %1750 = vmatmul.mubr.bf16.gmra.mrb[0].mxu0 %v1628
        %v1751 = vpop.f32.mrb[0].mxu0
        %v1752 = vadd.f32 0.0, %v1751
        %v1753 = vpop.f32.mrb[0].mxu0
        %v1754 = vpop.f32.mrb[0].mxu0
        %v1755 = vadd.f32 0.0, %v1754
        %v1756 = vpop.f32.mrb[0].mxu0
        %1757 = vmatprep.mubr.bf16.mxu0 0
        %1758 = vmatmul.mubr.bf16.gmra.mrb[0].mxu0 %v1637
        %v1759 = vpop.f32.mrb[0].mxu0
        %v1760 = vadd.f32 0.0, %v1759
        %v1761 = vpop.f32.mrb[0].mxu0
        %v1762 = vpop.f32.mrb[0].mxu0
        %v1763 = vadd.f32 0.0, %v1762
        %v1764 = vpop.f32.mrb[0].mxu0
        %1765 = vmatprep.mubr.bf16.mxu0 0
        %1766 = vmatmul.mubr.bf16.gmra.mrb[0].mxu0 %v1646
        %v1767 = vpop.f32.mrb[0].mxu0
        %v1768 = vadd.f32 0.0, %v1767
        %v1769 = vpop.f32.mrb[0].mxu0
        %v1770 = vpop.f32.mrb[0].mxu0
        %v1771 = vadd.f32 0.0, %v1770
        %v1772 = vpop.f32.mrb[0].mxu0
        %1773 = vmatprep.mubr.bf16.mxu0 0
        %1774 = vmatmul.mubr.bf16.gmra.mrb[0].mxu0 %v1655
        %v1775 = vpop.f32.mrb[0].mxu0
        %v1776 = vadd.f32 0.0, %v1775
        %v1777 = vpop.f32.mrb[0].mxu0
        %v1778 = vpop.f32.mrb[0].mxu0
        %v1779 = vadd.f32 0.0, %v1778
        %v1780 = vpop.f32.mrb[0].mxu0
        %1781 = vdwg.mxu0
        %v1782 = vadd.f32 %v1571, %v1744
        %v1783 = vadd.f32 %v1572, %v1747
        %v1784 = vadd.f32 %v1573, %v1752
        %v1785 = vadd.f32 %v1574, %v1755
        %v1786 = vadd.f32 %v1575, %v1760
        %v1787 = vadd.f32 %v1576, %v1763
        %v1788 = vadd.f32 %v1577, %v1768
        %v1789 = vadd.f32 %v1578, %v1771
        %v1790 = vadd.f32 %v1579, %v1776
        %v1791 = vadd.f32 %v1580, %v1779
        %v1792 = vld [vmem:[%s218 + $0x8] sm:$0x8]
        %s1793 = scalar_lea.vmem [#allocation5], 512
        %v1794 = vld [vmem:[%s1793] sm:$0xf]
        %v1795 = vld [vmem:[%s1793 + $0x4] sm:$0xf]
        %v1796 = vld [vmem:[%s1793 + $0x8] sm:$0xf]
        %v1797 = vld [vmem:[%s1793 + $0xc] sm:$0xf]
        %v1798 = vld [vmem:[%s1793 + $0x10] sm:$0xf]
        %v1799 = vld [vmem:[%s1793 + $0x14] sm:$0xf]
        %v1800 = vld [vmem:[%s1793 + $0x18] sm:$0xf]
        %v1801 = vld [vmem:[%s1793 + $0x1c] sm:$0xf]
        %v1802 = vld [vmem:[%s1793 + $0x20] sm:$0xf]
        %v1803 = vld [vmem:[%s1793 + $0x24] sm:$0xf]
        %v1804 = vld [vmem:[%s1793 + $0x28] sm:$0xf]
        %v1805 = vld [vmem:[%s1793 + $0x2c] sm:$0xf]
        %v1806 = vld [vmem:[%s1793 + $0x30] sm:$0xf]
        %v1807 = vld [vmem:[%s1793 + $0x34] sm:$0xf]
        %v1808 = vld [vmem:[%s1793 + $0x38] sm:$0xf]
        %v1809 = vld [vmem:[%s1793 + $0x3c] sm:$0xf]
        %v1811 = vunpack.c.l.b16 %v1792
        %v1812 = vpack.c.b16 %v1418, %v1811
        %vm1813 = vcmask 1044480
        %v1814 = vrot.slane %v1812, 3
        %v1815 = vrot.slane %v1429, 3
        %v1816 = vsel %vm1813, %v1814, %v1815
        %v1817 = vrot.slane %v1430, 3
        %v1818 = vsel %vm1813, %v1815, %v1817
        %v1819 = vrot.slane %v1431, 3
        %v1820 = vsel %vm1813, %v1817, %v1819
        %v1821 = vrot.slane %v1432, 3
        %v1822 = vsel %vm1813, %v1819, %v1821
        %v1823 = vrot.slane %v1601, 3
        %v1824 = vsel %vm1813, %v1821, %v1823
        %v1846 = vunpack.c.l.b16 %v1794
        %v1847 = vunpack.c.l.b16 %v1795
        %v1848 = vunpack.c.l.b16 %v1796
        %v1849 = vunpack.c.l.b16 %v1797
        %v1850 = vunpack.c.l.b16 %v1798
        %v1851 = vunpack.c.l.b16 %v1799
        %v1852 = vunpack.c.l.b16 %v1800
        %v1853 = vunpack.c.l.b16 %v1801
        %v1854 = vunpack.c.l.b16 %v1802
        %v1855 = vunpack.c.l.b16 %v1803
        %v1856 = vunpack.c.l.b16 %v1804
        %v1857 = vunpack.c.l.b16 %v1805
        %v1858 = vunpack.c.l.b16 %v1806
        %v1859 = vunpack.c.l.b16 %v1807
        %v1860 = vunpack.c.l.b16 %v1808
        %v1861 = vunpack.c.l.b16 %v1809
        %v1862 = vpack.c.b16 %v1847, %v1846
        %v1863 = vpack.c.b16 %v1849, %v1848
        %v1864 = vpack.c.b16 %v1851, %v1850
        %v1865 = vpack.c.b16 %v1853, %v1852
        %v1866 = vpack.c.b16 %v1855, %v1854
        %v1867 = vpack.c.b16 %v1857, %v1856
        %v1868 = vpack.c.b16 %v1859, %v1858
        %v1869 = vpack.c.b16 %v1861, %v1860
        %1878 = vmatprep.subr.bf16.mxu0 0
        %1879 = vmatpush1.bf16.msra.mxu0 %v1862
        %1880 = vmatprep.subr.bf16.mxu0 0
        %1881 = vmatpush1.bf16.msra.mxu0 %v1863
        %1882 = vmatprep.subr.bf16.mxu0 0
        %1883 = vmatpush1.bf16.msra.mxu0 %v1864
        %1884 = vmatprep.subr.bf16.mxu0 0
        %1885 = vmatpush1.bf16.msra.mxu0 %v1865
        %1886 = vmatprep.subr.bf16.mxu0 0
        %1887 = vmatpush1.bf16.msra.mxu0 %v1866
        %1888 = vmatprep.subr.bf16.mxu0 0
        %1889 = vmatpush1.bf16.msra.mxu0 %v1867
        %1890 = vmatprep.subr.bf16.mxu0 0
        %1891 = vmatpush1.bf16.msra.mxu0 %v1868
        %1892 = vmatprep.subr.bf16.mxu0 0
        %1893 = vmatpush1.bf16.msra.mxu0 %v1869
        %1894 = vmatprep.subr.bf16.mxu0 0
        %1895 = vmatpush1.bf16.msra.mxu0 0
        %1896 = vmatprep.subr.bf16.mxu0 0
        %1897 = vmatpush1.bf16.msra.mxu0 0
        %1898 = vmatprep.subr.bf16.mxu0 0
        %1899 = vmatpush1.bf16.msra.mxu0 0
        %1900 = vmatprep.subr.bf16.mxu0 0
        %1901 = vmatpush1.bf16.msra.mxu0 0
        %1902 = vmatprep.subr.bf16.mxu0 0
        %1903 = vmatpush1.bf16.msra.mxu0 0
        %1904 = vmatprep.subr.bf16.mxu0 0
        %1905 = vmatpush1.bf16.msra.mxu0 0
        %1906 = vmatprep.subr.bf16.mxu0 0
        %1907 = vmatpush1.bf16.msra.mxu0 0
        %1908 = vmatprep.subr.bf16.mxu0 0
        %1909 = vmatpush1.bf16.msra.mxu0 0
        %1910 = vmatprep.mubr.bf16.mxu0 0
        %1911 = vmatmul.mubr.bf16.gmra.mrb[0].mxu0 %v1816
        %v1912 = vpop.f32.mrb[0].mxu0
        %v1913 = vadd.f32 0.0, %v1912
        %v1914 = vpop.f32.mrb[0].mxu0
        %v1915 = vpop.f32.mrb[0].mxu0
        %v1916 = vadd.f32 0.0, %v1915
        %v1917 = vpop.f32.mrb[0].mxu0
        %1918 = vmatprep.mubr.bf16.mxu0 0
        %1919 = vmatmul.mubr.bf16.gmra.mrb[0].mxu0 %v1818
        %v1920 = vpop.f32.mrb[0].mxu0
        %v1921 = vadd.f32 0.0, %v1920
        %v1922 = vpop.f32.mrb[0].mxu0
        %v1923 = vpop.f32.mrb[0].mxu0
        %v1924 = vadd.f32 0.0, %v1923
        %v1925 = vpop.f32.mrb[0].mxu0
        %1926 = vmatprep.mubr.bf16.mxu0 0
        %1927 = vmatmul.mubr.bf16.gmra.mrb[0].mxu0 %v1820
        %v1928 = vpop.f32.mrb[0].mxu0
        %v1929 = vadd.f32 0.0, %v1928
        %v1930 = vpop.f32.mrb[0].mxu0
        %v1931 = vpop.f32.mrb[0].mxu0
        %v1932 = vadd.f32 0.0, %v1931
        %v1933 = vpop.f32.mrb[0].mxu0
        %1934 = vmatprep.mubr.bf16.mxu0 0
        %1935 = vmatmul.mubr.bf16.gmra.mrb[0].mxu0 %v1822
        %v1936 = vpop.f32.mrb[0].mxu0
        %v1937 = vadd.f32 0.0, %v1936
        %v1938 = vpop.f32.mrb[0].mxu0
        %v1939 = vpop.f32.mrb[0].mxu0
        %v1940 = vadd.f32 0.0, %v1939
        %v1941 = vpop.f32.mrb[0].mxu0
        %1942 = vmatprep.mubr.bf16.mxu0 0
        %1943 = vmatmul.mubr.bf16.gmra.mrb[0].mxu0 %v1824
        %v1944 = vpop.f32.mrb[0].mxu0
        %v1945 = vadd.f32 0.0, %v1944
        %v1946 = vpop.f32.mrb[0].mxu0
        %v1947 = vpop.f32.mrb[0].mxu0
        %v1948 = vadd.f32 0.0, %v1947
        %v1949 = vpop.f32.mrb[0].mxu0
        %1950 = vdwg.mxu0
        %v1951 = vadd.f32 %v1782, %v1913
        %v1952 = vadd.f32 %v1783, %v1916
        %v1953 = vadd.f32 %v1784, %v1921
        %v1954 = vadd.f32 %v1785, %v1924
        %v1955 = vadd.f32 %v1786, %v1929
        %v1956 = vadd.f32 %v1787, %v1932
        %v1957 = vadd.f32 %v1788, %v1937
        %v1958 = vadd.f32 %v1789, %v1940
        %v1959 = vadd.f32 %v1790, %v1945
        %v1960 = vadd.f32 %v1791, %v1948
        %1961 = vst [vmem:[%s248] sm:$0xff] %v1951
        %1962 = vst [vmem:[%s248 + $0x8] sm:$0xff] %v1952
        %1963 = vst [vmem:[%s248 + $0x10] sm:$0xff] %v1953
        %1964 = vst [vmem:[%s248 + $0x18] sm:$0xff] %v1954
        %1965 = vst [vmem:[%s248 + $0x20] sm:$0xff] %v1955
        %1966 = vst [vmem:[%s248 + $0x28] sm:$0xff] %v1956
        %1967 = vst [vmem:[%s248 + $0x30] sm:$0xff] %v1957
        %1968 = vst [vmem:[%s248 + $0x38] sm:$0xff] %v1958
        %1969 = vst [vmem:[%s248 + $0x40] sm:$0xff] %v1959
        %1970 = vst [vmem:[%s248 + $0x48] sm:$0xff] %v1960
        %v1971 = vld [vmem:[#allocation7] sm:$0xff]
        %v1972 = vld [vmem:[#allocation7 + $0x8] sm:$0xff]
        %v1973 = vld [vmem:[#allocation7 + $0x10] sm:$0xff]
        %v1974 = vld [vmem:[#allocation7 + $0x18] sm:$0xff]
        %v1975 = vld [vmem:[#allocation7 + $0x20] sm:$0xff]
        %v1976 = vld [vmem:[#allocation7 + $0x28] sm:$0xff]
        %v1977 = vld [vmem:[#allocation7 + $0x30] sm:$0xff]
        %v1978 = vld [vmem:[#allocation7 + $0x38] sm:$0xff]
        %v1979 = vld [vmem:[#allocation7 + $0x40] sm:$0xff]
        %v1980 = vld [vmem:[#allocation7 + $0x48] sm:$0xff]
        %1982 = vset.pattern.permute.xlu0 0
        %1983 = vperm.xlu0 %1982, %v1971
        %v1984 = vpop.permute.xlu0 %1983
        %1987 = vset.pattern.permute.xlu0 0
        %1988 = vperm.xlu0 %1987, %v1972
        %v1989 = vpop.permute.xlu0 %1988
        %1992 = vset.pattern.permute.xlu0 0
        %1993 = vperm.xlu0 %1992, %v1973
        %v1994 = vpop.permute.xlu0 %1993
        %1997 = vset.pattern.permute.xlu0 0
        %1998 = vperm.xlu0 %1997, %v1974
        %v1999 = vpop.permute.xlu0 %1998
        %2002 = vset.pattern.permute.xlu0 0
        %2003 = vperm.xlu0 %2002, %v1975
        %v2004 = vpop.permute.xlu0 %2003
        %2007 = vset.pattern.permute.xlu0 0
        %2008 = vperm.xlu0 %2007, %v1976
        %v2009 = vpop.permute.xlu0 %2008
        %2012 = vset.pattern.permute.xlu0 0
        %2013 = vperm.xlu0 %2012, %v1977
        %v2014 = vpop.permute.xlu0 %2013
        %2017 = vset.pattern.permute.xlu0 0
        %2018 = vperm.xlu0 %2017, %v1978
        %v2019 = vpop.permute.xlu0 %2018
        %2022 = vset.pattern.permute.xlu0 0
        %2023 = vperm.xlu0 %2022, %v1979
        %v2024 = vpop.permute.xlu0 %2023
        %2027 = vset.pattern.permute.xlu0 0
        %2028 = vperm.xlu0 %2027, %v1980
        %v2029 = vpop.permute.xlu0 %2028
        %v2031 = vmul.f32 %v1951, %v1984
        %v2032 = vmul.f32 %v1952, %v1989
        %v2033 = vmul.f32 %v1953, %v1994
        %v2034 = vmul.f32 %v1954, %v1999
        %v2035 = vmul.f32 %v1955, %v2004
        %v2036 = vmul.f32 %v1956, %v2009
        %v2037 = vmul.f32 %v1957, %v2014
        %v2038 = vmul.f32 %v1958, %v2019
        %v2039 = vmul.f32 %v1959, %v2024
        %v2040 = vmul.f32 %v1960, %v2029
        %v2041 = vadd.f32 %v2031, %v2032
        %v2042 = vadd.f32 %v2041, %v2033
        %v2043 = vadd.f32 %v2042, %v2034
        %v2044 = vadd.f32 %v2043, %v2035
        %v2045 = vadd.f32 %v2044, %v2036
        %v2046 = vadd.f32 %v2045, %v2037
        %v2047 = vadd.f32 %v2046, %v2038
        %v2048 = vadd.f32 %v2047, %v2039
        %v2049 = vadd.f32 %v2048, %v2040
        %v2050 = vrot.slane %v2049, 4
        %v2051 = vadd.f32 %v2049, %v2050
        %v2052 = vrot.slane %v2051, 2
        %v2053 = vadd.f32 %v2051, %v2052
        %v2054 = vrot.slane %v2053, 1
        %v2055 = vadd.f32 %v2053, %v2054
        %v2056 = vmul.f32 %v1951, %v1951
        %v2057 = vmul.f32 %v1952, %v1952
        %v2058 = vmul.f32 %v1953, %v1953
        %v2059 = vmul.f32 %v1954, %v1954
        %v2060 = vmul.f32 %v1955, %v1955
        %v2061 = vmul.f32 %v1956, %v1956
        %v2062 = vmul.f32 %v1957, %v1957
        %v2063 = vmul.f32 %v1958, %v1958
        %v2064 = vmul.f32 %v1959, %v1959
        %v2065 = vmul.f32 %v1960, %v1960
        %v2066 = vmul.f32 %v2056, %v1984
        %v2067 = vmul.f32 %v2057, %v1989
        %v2068 = vmul.f32 %v2058, %v1994
        %v2069 = vmul.f32 %v2059, %v1999
        %v2070 = vmul.f32 %v2060, %v2004
        %v2071 = vmul.f32 %v2061, %v2009
        %v2072 = vmul.f32 %v2062, %v2014
        %v2073 = vmul.f32 %v2063, %v2019
        %v2074 = vmul.f32 %v2064, %v2024
        %v2075 = vmul.f32 %v2065, %v2029
        %v2076 = vadd.f32 %v2066, %v2067
        %v2077 = vadd.f32 %v2076, %v2068
        %v2078 = vadd.f32 %v2077, %v2069
        %v2079 = vadd.f32 %v2078, %v2070
        %v2080 = vadd.f32 %v2079, %v2071
        %v2081 = vadd.f32 %v2080, %v2072
        %v2082 = vadd.f32 %v2081, %v2073
        %v2083 = vadd.f32 %v2082, %v2074
        %v2084 = vadd.f32 %v2083, %v2075
        %v2085 = vrot.slane %v2084, 4
        %v2086 = vadd.f32 %v2084, %v2085
        %v2087 = vrot.slane %v2086, 2
        %v2088 = vadd.f32 %v2086, %v2087
        %v2089 = vrot.slane %v2088, 1
        %v2090 = vadd.f32 %v2088, %v2089
        %vm2091 = vcmask 1040384
        %v2092 = vsel %vm2091, %v2055, %v2090
        %2093 = vst [vmem:[%s255] sm:$0x3] %v2092
        %s2094 = sand.u32 %s102, 1
        %s2095 = scalar_lea.sflag [#allocation4], %s2094
        %s2096 = sand.u32 %s102, 1
        %s2097 = smul.addr %s2096, 80
        %s2098 = scalar_lea.vmem [#allocation8], %s2097
        %s2099 = sand.u32 %s128, 1
        %s2100 = scalar_lea.sflag [#allocation10], %s2099
        %s2101 = sand.u32 %s128, 1
        %s2102 = smul.addr %s2101, 2
        %s2103 = scalar_lea.vmem [#allocation9], %s2102
        // Predicated region
        $region45: #{down_forward.6} parent=31 // pred_check
          %p2104 = pneg %p112
        $region46: #{down_forward.6} parent=31 // pred_check_branch
          %2106 = sbr.rel (%p2104) target = $region48
        $region47: #{down_forward.6} parent=31 // pred_region
          %s2108 = ssub.s32 1280, 1280
          %2109 = vsyncadd %s2095, %s2108
          %s2110 = smul.addr %s26, 10
          %s2111 = smul.addr %s2110, 128
          %s2112 = scalar_lea.hbm %s3, %s2111
          %s2113 = sshll.u32 %s2098, 4
          %s2114 = int_to_ptr.vmem [resolvable:$true] %s2113
          %2119 = dma.vmem_to_hbm [thread:$0]  %s2114, 1280, %s2112, %s2095, 128, 128, 8
        $region48: #{down_forward.6} parent=31 // pred_fallthru
          _
        // Predicated region
        $region49: #{down_forward.6} parent=31 // pred_check
          %p2120 = pneg %p138
        $region50: #{down_forward.6} parent=31 // pred_check_branch
          %2122 = sbr.rel (%p2120) target = $region52
        $region51: #{down_forward.6} parent=31 // pred_region
          %s2124 = ssub.s32 32, 32
          %2125 = vsyncadd %s2100, %s2124
          %s2126 = smul.addr %s26, 32
          %s2127 = scalar_lea.hbm %s4, %s2126
          %s2129 = sshll.u32 %s2103, 4
          %s2130 = int_to_ptr.vmem [resolvable:$true] %s2129
          %2132 = dma.vmem_to_hbm [thread:$0]  %s2130, 32, %s2127, %s2100
        $region52: #{down_forward.6} parent=31 // pred_fallthru
          _
      $region32: #{down_forward.6} parent=5 // pred_fallthru
        _
      %p2133 = scmp.le.s32.totalorder 2, %s21
      // Predicated region
      $region53: #{down_forward.6} parent=5 // pred_check
        %p2134 = pneg %p2133
      $region54: #{down_forward.6} parent=5 // pred_check_branch
        %2136 = sbr.rel (%p2134) target = $region56
      $region55: #{down_forward.6} parent=5 // pred_region
        %s2137 = ssub.s32 %s21, 2
        // Predicated region
        $region57: #{down_forward.6} parent=55 // pred_check
          %p2138 = pneg %p118
        $region58: #{down_forward.6} parent=55 // pred_check_branch
          %2140 = sbr.rel (%p2138) target = $region60
        $region59: #{down_forward.6} parent=55 // pred_region
          %s2141 = sand.u32 %s103, 1
          %s2142 = scalar_lea.sflag [#allocation4], %s2141
          %s2143 = sand.u32 %s103, 1
          %s2144 = smul.addr %s2143, 80
          %s2145 = scalar_lea.vmem [#allocation8], %s2144
          %2146 = dma.done %s2142, 1280
        $region60: #{down_forward.6} parent=55 // pred_fallthru
          _
        // Predicated region
        $region61: #{down_forward.6} parent=55 // pred_check
          %p2147 = pneg %p144
        $region62: #{down_forward.6} parent=55 // pred_check_branch
          %2149 = sbr.rel (%p2147) target = $region64
        $region63: #{down_forward.6} parent=55 // pred_region
          %s2150 = sand.u32 %s129, 1
          %s2151 = scalar_lea.sflag [#allocation10], %s2150
          %s2152 = sand.u32 %s129, 1
          %s2153 = smul.addr %s2152, 2
          %s2154 = scalar_lea.vmem [#allocation9], %s2153
          %2155 = dma.done %s2151, 32
        $region64: #{down_forward.6} parent=55 // pred_fallthru
          _
      $region56: #{down_forward.6} parent=5 // pred_fallthru
        _
    $region6: #{down_forward.6} parent=1 // loop_footer
      %s25 = sadd.s32 1, %s21
    $region7: #{down_forward.6} parent=1 // loop_footer_branch
      %20 = sbr.rel target = $region3
    $region8: #{down_forward.6} parent=1 // loop_exit
      _
    %2156 = vsyncpa [#allocation3], 1
    %s2157 = scalar_lea.sflag [#allocation3], 1
    %2158 = vsyncpa %s2157, 1
    %2159 = vsyncpa [#allocation6], 1
    %2160 = vsyncpa [#allocation4], 1
    %s2161 = scalar_lea.sflag [#allocation4], 1
    %2162 = vsyncpa %s2161, 1
    %2163 = vsyncpa [#allocation10], 1
    %s2164 = scalar_lea.sflag [#allocation10], 1
    %2165 = vsyncpa %s2164, 1

</llo_original>
